<compile_context>
chip_gen: v7x
topology: tpu7x:2x2x1
jax: 0.10.0
libtpu: 0.0.40
codegen_flags: <defaults>
</compile_context>

<pallas_src>
import functools

import jax
import jax.numpy as jnp
from jax.experimental import pallas as pl
from jax.experimental.pallas import tpu as pltpu

EPS = 1e-5

# Matmul-operand dtype: bf16 ~doubles MXU rate on v6e/v7x and halves operand
# traffic.  Non-matmul math stays f32 (v5e has no bf16 VPU/EUP).
MM_DTYPE = jnp.bfloat16
# Inter-stage activations (c1, c2) round-trip HBM in bf16 (the block is
# HBM-bandwidth bound at ResNet channel counts).  Block input/output stay f32.
ACT_DTYPE = jnp.bfloat16


# ---------------------------------------------------------------------------
# Generation-specific VMEM budget / tiling targets
# ---------------------------------------------------------------------------
def _query_vmem_capacity_bytes():
    try:
        info = pltpu.get_tpu_info()
        for name in ("vmem_capacity_bytes", "vmem_bytes", "vmem_size_bytes"):
            v = getattr(info, name, None)
            if v:
                return int(v)
    except Exception:
        pass
    return 64 * 1024 * 1024          # conservative (v7x-sized) fallback


_VMEM_CAP = _query_vmem_capacity_bytes()
# ~25% headroom so double-buffering + compiler scratch stay alive.
_VMEM_LIMIT = max(32 * 1024 * 1024, (_VMEM_CAP * 3) // 4)


def _cparams(num_grid_axes):
    return pltpu.CompilerParams(
        dimension_semantics=("parallel",) * num_grid_axes,
        vmem_limit_bytes=_VMEM_LIMIT)


def _row_tile_target(c_in, c_mid):
    # Heaviest 1x1 stage (stage 3) per-row VMEM bytes, double-buffered:
    # c2 tile (bf16,c_mid) + x tile (f32,c_in) in, out tile (f32,c_in).
    per_row = 2 * (2 * c_mid + 4 * c_in + 4 * c_in)
    return int(max(128, min(4096, _VMEM_LIMIT // (3 * max(per_row, 1)))))


def _h_tile_target(w, c_mid):
    # Stage-2 per-output-row bytes: bf16 in/out rows + ~8 f32 slab temporaries.
    per_row = w * c_mid * (2 + 2 + 8 * 4)
    return int(max(1, min(64, _VMEM_LIMIT // (3 * max(per_row, 1)))))


def _pick_tile_m(m, target):
    best = None
    t = 8
    while t <= m:
        if m % t == 0 and t <= target:
            best = t
        t *= 2
    if best is not None:
        return best
    d = (min(target, m) // 8) * 8
    while d >= 8:
        if m % d == 0:
            return d
        d -= 8
    return m


def _pick_tile_h(h, target):
    # Cap at H//2 so the stage-2 grid has some pipeline / megacore depth even
    # for small batch (review: grid=(N,) gave ~no depth at N=2).
    cap = min(target, max(h // 2, 1))
    best = 1
    for d in range(1, h + 1):
        if h % d == 0 and d <= cap:
            best = d
    return best


# ---------------------------------------------------------------------------
# Kernels
# ---------------------------------------------------------------------------
def _stats_kernel(x_ref, st_ref):
    """BN1 partials of the block input x, packed lane-dense as [1, 1, 2*C] =
    [row-sum | tile-mean-centered sum-of-squares] (Chan partials)."""
    x = x_ref[...].astype(jnp.float32)
    inv_n = 1.0 / x.shape[0]
    s = jnp.sum(x, axis=0, keepdims=True)
    q = jnp.sum((x - s * inv_n) ** 2, axis=0, keepdims=True)
    st_ref[...] = jnp.concatenate([s, q], axis=1)[None]


def _stage1_kernel(x_ref, sc_ref, sh_ref, w_ref, c_ref, st_ref):
    """Fused BN1 apply + relu -> 1x1 conv (MXU, bf16) -> bf16 c1 + BN2 partials."""
    y = jnp.maximum(x_ref[...] * sc_ref[...] + sh_ref[...], 0.0)
    c = jnp.dot(y.astype(MM_DTYPE), w_ref[...],
                preferred_element_type=jnp.float32)
    c_ref[...] = c.astype(c_ref.dtype)
    inv_n = 1.0 / c.shape[0]
    s = jnp.sum(c, axis=0, keepdims=True)
    q = jnp.sum((c - s * inv_n) ** 2, axis=0, keepdims=True)
    st_ref[...] = jnp.concatenate([s, q], axis=1)[None]


def _stage2_kernel(c_ref, up_ref, dn_ref, sc_ref, sh_ref, w_ref,
                   out_ref, st_ref, acc_ref, *, W, TH):
    """Fused BN2 apply + relu -> 3x3 conv (stride 1, pad 1) -> bf16 c2 + BN3
    partials, for one (image, H-tile) grid step.

    c_ref : [TH*W, Cin]  center rows of this H-tile (flattened NHWC rows)
    up_ref: [W,    Cin]  image row above the tile (zeroed at the top edge)
    dn_ref: [W,    Cin]  image row below the tile (zeroed at the bottom edge)
    w_ref : [3, 3*Cin, Cout]   taps with kw folded into K (row = kw*Cin + ci)
    out_ref: [TH*W, Cout]; st_ref: [1, 1, 2*Cout]; acc_ref: VMEM f32 accumulator
    """
    cf = sc_ref.shape[-1]
    h = pl.program_id(1)
    n_h = pl.num_programs(1)
    thw = TH * W
    slab = (TH + 2) * W

    sc = sc_ref[...]
    sh = sh_ref[...]

    def bnr(v):
        return jnp.maximum(v.astype(jnp.float32) * sc + sh, 0.0)

    up_ok = (h > 0).astype(jnp.float32)
    dn_ok = (h < n_h - 1).astype(jnp.float32)

    # H-padded slab: halo rows are BN'd then zeroed at image edges (the conv
    # zero-pads bn_relu2(c1), so zeroing after the affine is exact).
    y = jnp.concatenate([bnr(up_ref[...]) * up_ok,
                         bnr(c_ref[...]),
                         bnr(dn_ref[...]) * dn_ok], axis=0)          # [slab, Cin]

    # +/-1 column shifts built once on a zero-extended slab and reused by all
    # three kh taps (pltpu.roll on the XLU is an alternative data path).
    zrow = jnp.zeros((1, cf), jnp.float32)
    yext = jnp.concatenate([zrow, y, zrow], axis=0)                  # [slab+2, Cin]
    wcol = jax.lax.broadcasted_iota(jnp.int32, (slab, cf), 0) % W
    left = jnp.where(wcol == 0, 0.0, yext[0:slab])                   # column w-1
    right = jnp.where(wcol == W - 1, 0.0, yext[2:slab + 2])          # column w+1

    # kw folded into K: [slab, 3*Cin] operand, 3 MXU matmuls (one per kh)
    # instead of 9 -> 3x larger contraction and fewer accumulate passes.
    ycat = jnp.concatenate([left, y, right], axis=1).astype(MM_DTYPE)

    acc_ref[...] = jnp.zeros_like(acc_ref)
    for kh in range(3):                                  # kh slices are W-row
        win = ycat[kh * W:kh * W + thw]                  # aligned (W % 8 == 0)
        acc_ref[...] += jnp.dot(win, w_ref[kh],
                                preferred_element_type=jnp.float32)
    acc = acc_ref[...]

    out_ref[...] = acc.astype(out_ref.dtype)
    inv_n = 1.0 / thw
    s = jnp.sum(acc, axis=0, keepdims=True)
    q = jnp.sum((acc - s * inv_n) ** 2, axis=0, keepdims=True)
    st_ref[...] = jnp.concatenate([s, q], axis=1)[None]


def _stage3_kernel(c2_ref, sc3_ref, sh3_ref, w_ref, x_ref, sc1_ref, sh1_ref,
                   out_ref):
    """Fused BN3 apply + relu -> 1x1 conv -> residual add.  The identity
    shortcut bn_relu1(x) is recomputed from the raw x tile instead of being
    written to / read back from HBM."""
    y = jnp.maximum(c2_ref[...].astype(jnp.float32) * sc3_ref[...]
                    + sh3_ref[...], 0.0)
    c3 = jnp.dot(y.astype(MM_DTYPE), w_ref[...],
                 preferred_element_type=jnp.float32)
    res = jnp.maximum(x_ref[...] * sc1_ref[...] + sh1_ref[...], 0.0)
    out_ref[...] = (c3 + res).astype(out_ref.dtype)


# ---------------------------------------------------------------------------
# BN partial combine (Chan's parallel variance -> scale/shift)
# ---------------------------------------------------------------------------
def _finalize_bn(partials, rows_per_tile, gamma, beta):
    p = partials.reshape(partials.shape[0], -1).astype(jnp.float32)   # [T, 2C]
    c = p.shape[1] // 2
    s, q = p[:, :c], p[:, c:]
    n = float(rows_per_tile)
    total = n * p.shape[0]
    mean = jnp.sum(s, axis=0) / total
    mean_t = s / n
    m2 = jnp.sum(q, axis=0) + n * jnp.sum((mean_t - mean[None, :]) ** 2, axis=0)
    var = m2 / total                                   # biased (training) var
    scale = gamma.reshape(-1) * jax.lax.rsqrt(var + EPS)
    shift = beta.reshape(-1) - mean * scale
    return scale.reshape(1, c), shift.reshape(1, c)


# ---------------------------------------------------------------------------
# Forward (NHWC end-to-end)
# ---------------------------------------------------------------------------
def bottleneck_forward_nhwc(x_nhwc, params, tile_m=None, tile_h=None):
    N, H, W, C = x_nhwc.shape                  # C == filters (= 4 * fnf)
    fnf = params["w1"].shape[1]                # first_num_filters
    M = N * H * W
    assert W % 8 == 0, "image width must be a multiple of 8 (sublane tiling)"

    x = x_nhwc.reshape(M, C).astype(jnp.float32)

    tm = _pick_tile_m(M, _row_tile_target(C, fnf)) if tile_m is None else tile_m
    assert M % tm == 0 and (tm % 8 == 0 or tm == M), (M, tm)
    nmt = M // tm

    th = _pick_tile_h(H, _h_tile_target(W, fnf)) if tile_h is None else tile_h
    assert H % th == 0, (H, th)
    nh = H // th
    thw = th * W

    w1 = params["w1"].astype(MM_DTYPE)                           # [C, fnf]
    w2 = params["w2"].reshape(3, 3 * fnf, fnf).astype(MM_DTYPE)  # [3, 3*fnf, fnf]
    w3 = params["w3"].astype(MM_DTYPE)                           # [fnf, C]

    # ---- BN1 statistics over the block input (standalone pass; see TODO).
    st1 = pl.pallas_call(
        _stats_kernel,
        grid=(nmt,),
        in_specs=[pl.BlockSpec((tm, C), lambda i: (i, 0))],
        out_specs=pl.BlockSpec((1, 1, 2 * C), lambda i: (i, 0, 0)),
        out_shape=jax.ShapeDtypeStruct((nmt, 1, 2 * C), jnp.float32),
        compiler_params=_cparams(1),
    )(x)
    scale1, shift1 = _finalize_bn(st1, tm, params["g1"], params["b1"])

    # ---- Stage 1: BN1 apply+relu -> conv1 (1x1, C -> fnf) + BN2 partials.
    c1, st2 = pl.pallas_call(
        _stage1_kernel,
        grid=(nmt,),
        in_specs=[pl.BlockSpec((tm, C), lambda i: (i, 0)),
                  pl.BlockSpec((1, C), lambda i: (0, 0)),
                  pl.BlockSpec((1, C), lambda i: (0, 0)),
                  pl.BlockSpec((C, fnf), lambda i: (0, 0))],
        out_specs=(pl.BlockSpec((tm, fnf), lambda i: (i, 0)),
                   pl.BlockSpec((1, 1, 2 * fnf), lambda i: (i, 0, 0))),
        out_shape=(jax.ShapeDtypeStruct((M, fnf), ACT_DTYPE),
                   jax.ShapeDtypeStruct((nmt, 1, 2 * fnf), jnp.float32)),
        compiler_params=_cparams(1),
    )(x, scale1, shift1, w1)
    scale2, shift2 = _finalize_bn(st2, tm, params["g2"], params["b2"])

    # ---- Stage 2: BN2 apply+relu -> conv2 (3x3, fnf -> fnf) + BN3 partials.
    # Tiled over (image, H-tile) with a 1-row halo above/below, fetched as two
    # extra W-row blocks of c1 (no XLA pad, no whole-image grid steps).
    def center_map(n, h):
        return (n * nh + h, 0)

    def up_map(n, h):
        return (jnp.maximum(n * H + h * th - 1, 0), 0)

    def dn_map(n, h):
        return (jnp.minimum(n * H + h * th + th, N * H - 1), 0)

    c2, st3 = pl.pallas_call(
        functools.partial(_stage2_kernel, W=W, TH=th),
        grid=(N, nh),
        in_specs=[pl.BlockSpec((thw, fnf), center_map),
                  pl.BlockSpec((W, fnf), up_map),
                  pl.BlockSpec((W, fnf), dn_map),
                  pl.BlockSpec((1, fnf), lambda n, h: (0, 0)),
                  pl.BlockSpec((1, fnf), lambda n, h: (0, 0)),
                  pl.BlockSpec((3, 3 * fnf, fnf), lambda n, h: (0, 0, 0))],
        out_specs=(pl.BlockSpec((thw, fnf), center_map),
                   pl.BlockSpec((1, 1, 2 * fnf),
                                lambda n, h: (n * nh + h, 0, 0))),
        out_shape=(jax.ShapeDtypeStruct((M, fnf), ACT_DTYPE),
                   jax.ShapeDtypeStruct((N * nh, 1, 2 * fnf), jnp.float32)),
        scratch_shapes=[pltpu.VMEM((thw, fnf), jnp.float32)],
        compiler_params=_cparams(2),
    )(c1, c1, c1, scale2, shift2, w2)
    scale3, shift3 = _finalize_bn(st3, thw, params["g3"], params["b3"])

    # ---- Stage 3: BN3 apply+relu -> conv3 (1x1, fnf -> C) + identity shortcut.
    out = pl.pallas_call(
        _stage3_kernel,
        grid=(nmt,),
        in_specs=[pl.BlockSpec((tm, fnf), lambda i: (i, 0)),
                  pl.BlockSpec((1, fnf), lambda i: (0, 0)),
                  pl.BlockSpec((1, fnf), lambda i: (0, 0)),
                  pl.BlockSpec((fnf, C), lambda i: (0, 0)),
                  pl.BlockSpec((tm, C), lambda i: (i, 0)),
                  pl.BlockSpec((1, C), lambda i: (0, 0)),
                  pl.BlockSpec((1, C), lambda i: (0, 0))],
        out_specs=pl.BlockSpec((tm, C), lambda i: (i, 0)),
        out_shape=jax.ShapeDtypeStruct((M, C), jnp.float32),
        compiler_params=_cparams(1),
    )(c2, scale3, shift3, w3, x, scale1, shift1)

    return out.reshape(N, H, W, C)


def bottleneck_forward(x_nchw, params, tile_m=None, tile_h=None):
    """NCHW shim for parity with the PyTorch module (boundary transposes only;
    an NHWC model should call bottleneck_forward_nhwc directly)."""
    x = jnp.transpose(x_nchw, (0, 2, 3, 1))
    out = bottleneck_forward_nhwc(x, params, tile_m=tile_m, tile_h=tile_h)
    return jnp.transpose(out, (0, 3, 1, 2))


# ---------------------------------------------------------------------------
# Pure-JAX reference (independent: lax.conv / einsum, precision='highest')
# ---------------------------------------------------------------------------
def reference_forward(x_nchw, params):
    x = jnp.transpose(x_nchw, (0, 2, 3, 1))   # NHWC

    def bn_relu(v, g, b):
        m = jnp.mean(v, axis=(0, 1, 2), keepdims=True)
        var = jnp.mean((v - m) ** 2, axis=(0, 1, 2), keepdims=True)
        y = (v - m) * jax.lax.rsqrt(var + EPS) * g.reshape(1, 1, 1, -1) \
            + b.reshape(1, 1, 1, -1)
        return jnp.maximum(y, 0.0)

    bn1 = bn_relu(x, params["g1"], params["b1"])
    c1 = jnp.einsum('nhwc,cd->nhwd', bn1, params["w1"], precision='highest')
    bn2 = bn_relu(c1, params["g2"], params["b2"])
    c2 = jax.lax.conv_general_dilated(
        bn2, params["w2"], window_strides=(1, 1), padding='SAME',
        dimension_numbers=('NHWC', 'HWIO', 'NHWC'), precision='highest')
    bn3 = bn_relu(c2, params["g3"], params["b3"])
    c3 = jnp.einsum('nhwc,cd->nhwd', bn3, params["w3"], precision='highest') + bn1
    return jnp.transpose(c3, (0, 3, 1, 2))


# ---------------------------------------------------------------------------
def make_params(key, filters, fnf):
    ks = jax.random.split(key, 9)
    return {
        # conv weights: 1x1 as [Cin, Cout] matmuls, 3x3 as HWIO [3, 3, Cin, Cout]
        "w1": 0.1 * jax.random.normal(ks[0], (filters, fnf), jnp.float32),
        "w2": 0.1 * jax.random.normal(ks[1], (3, 3, fnf, fnf), jnp.float32),
        "w3": 0.1 * jax.random.normal(ks[2], (fnf, filters), jnp.float32),
        # batchnorm affine params, [1, C]
        "g1": 1.0 + 0.1 * jax.random.normal(ks[3], (1, filters), jnp.float32),
        "b1": 0.1 * jax.random.normal(ks[4], (1, filters), jnp.float32),
        "g2": 1.0 + 0.1 * jax.random.normal(ks[5], (1, fnf), jnp.float32),
        "b2": 0.1 * jax.random.normal(ks[6], (1, fnf), jnp.float32),
        "g3": 1.0 + 0.1 * jax.random.normal(ks[7], (1, fnf), jnp.float32),
        "b3": 0.1 * jax.random.normal(ks[8], (1, fnf), jnp.float32),
    }


if __name__ == "__main__":
    # Module config: first_num_filters=16 -> bottleneck filters_out = 64.
    N, H, W = 2, 16, 16
    first_num_filters = 16
    filters = 4 * first_num_filters            # 64

    key = jax.random.PRNGKey(0)
    kx, kp = jax.random.split(key)
    x = jax.random.normal(kx, (N, filters, H, W), jnp.float32)   # NCHW input
    params = make_params(kp, filters, first_num_filters)

    # tile_m=128 -> 4 row tiles; tile_h=8 -> (2 images x 2 H-tiles) for stage 2,
    # exercising the tiled BN-partial reduction and the halo paths.
    fwd = jax.jit(functools.partial(bottleneck_forward, tile_m=128, tile_h=8))
    out = jax.block_until_ready(fwd(x, params))

    ref = reference_forward(x, params)
    assert out.shape == (N, filters, H, W), out.shape
    max_err = float(jnp.max(jnp.abs(out - ref)))
    denom = max(1.0, float(jnp.max(jnp.abs(ref))))
    # bf16 matmul operands + bf16 inter-stage activations vs f32 'highest' ref.
    assert max_err / denom < 5e-2, f"relative max error {max_err / denom}"

    print("KERNEL_OK")
</pallas_src>

<mosaic_0001>
module attributes {stable_mosaic.version = 11 : i64} {
  func.func @_stats_kernel(%arg0: i32, %arg1: memref<128x64xf32, #tpu.memory_space<vmem>>, %arg2: memref<1x1x128xf32, #tpu.memory_space<vmem>>) attributes {dimension_semantics = [#tpu.dimension_semantics<parallel>], iteration_bounds = array<i64: 4>, scalar_prefetch = 0 : i64, scratch_operands = 0 : i64, tpu.core_type = #tpu.core_type<tc>, window_params = [{transform_indices = @transform_0, window_bounds = array<i64: 128, 64>}, {transform_indices = @transform_1, window_bounds = array<i64: 1, 1, 128>}]} {
    %c0 = arith.constant 0 : index
    %c0_0 = arith.constant 0 : index
    %0 = vector.load %arg1[%c0, %c0_0] : memref<128x64xf32, #tpu.memory_space<vmem>>, vector<128x64xf32>
    %cst = arith.constant dense<0.000000e+00> : vector<64xf32>
    %1 = vector.multi_reduction <add>, %0, %cst [0] : vector<128x64xf32> to vector<64xf32>
    %2 = vector.shape_cast %1 : vector<64xf32> to vector<1x64xf32>
    %cst_1 = arith.constant 7.812500e-03 : f32
    %3 = vector.broadcast %cst_1 : f32 to vector<1x64xf32>
    %4 = arith.mulf %2, %3 : vector<1x64xf32>
    %5 = vector.broadcast %4 : vector<1x64xf32> to vector<128x64xf32>
    %6 = arith.subf %0, %5 : vector<128x64xf32>
    %7 = arith.mulf %6, %6 : vector<128x64xf32>
    %cst_2 = arith.constant dense<0.000000e+00> : vector<64xf32>
    %8 = vector.multi_reduction <add>, %7, %cst_2 [0] : vector<128x64xf32> to vector<64xf32>
    %9 = vector.shape_cast %8 : vector<64xf32> to vector<1x64xf32>
    %10 = tpu.concatenate %2, %9 in 1 : vector<1x64xf32>, vector<1x64xf32> -> vector<1x128xf32>
    %11 = vector.shape_cast %10 : vector<1x128xf32> to vector<1x1x128xf32>
    %c0_3 = arith.constant 0 : index
    %c0_4 = arith.constant 0 : index
    %c0_5 = arith.constant 0 : index
    %12 = vector.load %arg2[%c0_3, %c0_4, %c0_5] : memref<1x1x128xf32, #tpu.memory_space<vmem>>, vector<1x1x128xf32>
    tpu.vector_store %arg2[%c0_3, %c0_4, %c0_5], %11 {strides = array<i32>} : memref<1x1x128xf32, #tpu.memory_space<vmem>>, vector<1x1x128xf32>,
    return
  }
  func.func @transform_0(%arg0: i32) -> (i32, i32) {
    %c0_i32 = arith.constant 0 : i32
    %c0_i32_0 = arith.constant 0 : i32
    return %arg0, %c0_i32 : i32, i32
  }
  func.func @transform_1(%arg0: i32) -> (i32, i32, i32) {
    %c0_i32 = arith.constant 0 : i32
    %c0_i32_0 = arith.constant 0 : i32
    %c0_i32_1 = arith.constant 0 : i32
    return %arg0, %c0_i32, %c0_i32_0 : i32, i32, i32
  }
}

module attributes {stable_mosaic.version = 11 : i64} {
  func.func @_stage1_kernel(%arg0: i32, %arg1: memref<128x64xf32, #tpu.memory_space<vmem>>, %arg2: memref<1x64xf32, #tpu.memory_space<vmem>>, %arg3: memref<1x64xf32, #tpu.memory_space<vmem>>, %arg4: memref<64x16xbf16, #tpu.memory_space<vmem>>, %arg5: memref<128x16xbf16, #tpu.memory_space<vmem>>, %arg6: memref<1x1x32xf32, #tpu.memory_space<vmem>>) attributes {dimension_semantics = [#tpu.dimension_semantics<parallel>], iteration_bounds = array<i64: 4>, scalar_prefetch = 0 : i64, scratch_operands = 0 : i64, tpu.core_type = #tpu.core_type<tc>, window_params = [{transform_indices = @transform_0, window_bounds = array<i64: 128, 64>}, {pipeline_mode = #tpu.pipeline_mode<synchronous>, transform_indices = @transform_1, window_bounds = array<i64: 1, 64>}, {pipeline_mode = #tpu.pipeline_mode<synchronous>, transform_indices = @transform_2, window_bounds = array<i64: 1, 64>}, {pipeline_mode = #tpu.pipeline_mode<synchronous>, transform_indices = @transform_3, window_bounds = array<i64: 64, 16>}, {transform_indices = @transform_4, window_bounds = array<i64: 128, 16>}, {transform_indices = @transform_5, window_bounds = array<i64: 1, 1, 32>}]} {
    %c0 = arith.constant 0 : index
    %c0_0 = arith.constant 0 : index
    %0 = vector.load %arg1[%c0, %c0_0] : memref<128x64xf32, #tpu.memory_space<vmem>>, vector<128x64xf32>
    %c0_1 = arith.constant 0 : index
    %c0_2 = arith.constant 0 : index
    %1 = vector.load %arg2[%c0_1, %c0_2] : memref<1x64xf32, #tpu.memory_space<vmem>>, vector<1x64xf32>
    %2 = vector.broadcast %1 : vector<1x64xf32> to vector<128x64xf32>
    %3 = arith.mulf %0, %2 : vector<128x64xf32>
    %c0_3 = arith.constant 0 : index
    %c0_4 = arith.constant 0 : index
    %4 = vector.load %arg3[%c0_3, %c0_4] : memref<1x64xf32, #tpu.memory_space<vmem>>, vector<1x64xf32>
    %5 = vector.broadcast %4 : vector<1x64xf32> to vector<128x64xf32>
    %6 = arith.addf %3, %5 : vector<128x64xf32>
    %cst = arith.constant 0.000000e+00 : f32
    %7 = vector.broadcast %cst : f32 to vector<128x64xf32>
    %8 = arith.maximumf %6, %7 : vector<128x64xf32>
    %9 = arith.truncf %8 : vector<128x64xf32> to vector<128x64xbf16>
    %c0_5 = arith.constant 0 : index
    %c0_6 = arith.constant 0 : index
    %10 = vector.load %arg4[%c0_5, %c0_6] : memref<64x16xbf16, #tpu.memory_space<vmem>>, vector<64x16xbf16>
    %cst_7 = arith.constant dense<0.000000e+00> : vector<128x16xf32>
    %11 = tpu.matmul %9, %10, %cst_7 {dimension_numbers = #tpu.dot_dimension_numbers<[1], [0], [0], [1], [0, 0, 1, 1], [], []>} : vector<128x64xbf16>, vector<64x16xbf16>, vector<128x16xf32> -> vector<128x16xf32>
    %12 = arith.truncf %11 : vector<128x16xf32> to vector<128x16xbf16>
    %c0_8 = arith.constant 0 : index
    %c0_9 = arith.constant 0 : index
    %13 = vector.load %arg5[%c0_8, %c0_9] : memref<128x16xbf16, #tpu.memory_space<vmem>>, vector<128x16xbf16>
    tpu.vector_store %arg5[%c0_8, %c0_9], %12 {strides = array<i32>} : memref<128x16xbf16, #tpu.memory_space<vmem>>, vector<128x16xbf16>,
    %cst_10 = arith.constant dense<0.000000e+00> : vector<16xf32>
    %14 = vector.multi_reduction <add>, %11, %cst_10 [0] : vector<128x16xf32> to vector<16xf32>
    %15 = vector.shape_cast %14 : vector<16xf32> to vector<1x16xf32>
    %cst_11 = arith.constant 7.812500e-03 : f32
    %16 = vector.broadcast %cst_11 : f32 to vector<1x16xf32>
    %17 = arith.mulf %15, %16 : vector<1x16xf32>
    %18 = vector.broadcast %17 : vector<1x16xf32> to vector<128x16xf32>
    %19 = arith.subf %11, %18 : vector<128x16xf32>
    %20 = arith.mulf %19, %19 : vector<128x16xf32>
    %cst_12 = arith.constant dense<0.000000e+00> : vector<16xf32>
    %21 = vector.multi_reduction <add>, %20, %cst_12 [0] : vector<128x16xf32> to vector<16xf32>
    %22 = vector.shape_cast %21 : vector<16xf32> to vector<1x16xf32>
    %23 = tpu.concatenate %15, %22 in 1 : vector<1x16xf32>, vector<1x16xf32> -> vector<1x32xf32>
    %24 = vector.shape_cast %23 : vector<1x32xf32> to vector<1x1x32xf32>
    %c0_13 = arith.constant 0 : index
    %c0_14 = arith.constant 0 : index
    %c0_15 = arith.constant 0 : index
    %25 = vector.load %arg6[%c0_13, %c0_14, %c0_15] : memref<1x1x32xf32, #tpu.memory_space<vmem>>, vector<1x1x32xf32>
    tpu.vector_store %arg6[%c0_13, %c0_14, %c0_15], %24 {strides = array<i32>} : memref<1x1x32xf32, #tpu.memory_space<vmem>>, vector<1x1x32xf32>,
    return
  }
  func.func @transform_0(%arg0: i32) -> (i32, i32) {
    %c0_i32 = arith.constant 0 : i32
    %c0_i32_0 = arith.constant 0 : i32
    return %arg0, %c0_i32 : i32, i32
  }
  func.func @transform_1(%arg0: i32) -> (i32, i32) {
    %c0_i32 = arith.constant 0 : i32
    %c0_i32_0 = arith.constant 0 : i32
    %c0_i32_1 = arith.constant 0 : i32
    return %c0_i32, %c0_i32_0 : i32, i32
  }
  func.func @transform_2(%arg0: i32) -> (i32, i32) {
    %c0_i32 = arith.constant 0 : i32
    %c0_i32_0 = arith.constant 0 : i32
    %c0_i32_1 = arith.constant 0 : i32
    return %c0_i32, %c0_i32_0 : i32, i32
  }
  func.func @transform_3(%arg0: i32) -> (i32, i32) {
    %c0_i32 = arith.constant 0 : i32
    %c0_i32_0 = arith.constant 0 : i32
    %c0_i32_1 = arith.constant 0 : i32
    return %c0_i32, %c0_i32_0 : i32, i32
  }
  func.func @transform_4(%arg0: i32) -> (i32, i32) {
    %c0_i32 = arith.constant 0 : i32
    %c0_i32_0 = arith.constant 0 : i32
    return %arg0, %c0_i32 : i32, i32
  }
  func.func @transform_5(%arg0: i32) -> (i32, i32, i32) {
    %c0_i32 = arith.constant 0 : i32
    %c0_i32_0 = arith.constant 0 : i32
    %c0_i32_1 = arith.constant 0 : i32
    return %arg0, %c0_i32, %c0_i32_0 : i32, i32, i32
  }
}

module attributes {stable_mosaic.version = 11 : i64} {
  func.func @_stage3_kernel(%arg0: i32, %arg1: memref<128x16xbf16, #tpu.memory_space<vmem>>, %arg2: memref<1x16xf32, #tpu.memory_space<vmem>>, %arg3: memref<1x16xf32, #tpu.memory_space<vmem>>, %arg4: memref<16x64xbf16, #tpu.memory_space<vmem>>, %arg5: memref<128x64xf32, #tpu.memory_space<vmem>>, %arg6: memref<1x64xf32, #tpu.memory_space<vmem>>, %arg7: memref<1x64xf32, #tpu.memory_space<vmem>>, %arg8: memref<128x64xf32, #tpu.memory_space<vmem>>) attributes {dimension_semantics = [#tpu.dimension_semantics<parallel>], iteration_bounds = array<i64: 4>, scalar_prefetch = 0 : i64, scratch_operands = 0 : i64, tpu.core_type = #tpu.core_type<tc>, window_params = [{transform_indices = @transform_0, window_bounds = array<i64: 128, 16>}, {pipeline_mode = #tpu.pipeline_mode<synchronous>, transform_indices = @transform_1, window_bounds = array<i64: 1, 16>}, {pipeline_mode = #tpu.pipeline_mode<synchronous>, transform_indices = @transform_2, window_bounds = array<i64: 1, 16>}, {pipeline_mode = #tpu.pipeline_mode<synchronous>, transform_indices = @transform_3, window_bounds = array<i64: 16, 64>}, {transform_indices = @transform_4, window_bounds = array<i64: 128, 64>}, {pipeline_mode = #tpu.pipeline_mode<synchronous>, transform_indices = @transform_5, window_bounds = array<i64: 1, 64>}, {pipeline_mode = #tpu.pipeline_mode<synchronous>, transform_indices = @transform_6, window_bounds = array<i64: 1, 64>}, {transform_indices = @transform_7, window_bounds = array<i64: 128, 64>}]} {
    %c0 = arith.constant 0 : index
    %c0_0 = arith.constant 0 : index
    %0 = vector.load %arg1[%c0, %c0_0] : memref<128x16xbf16, #tpu.memory_space<vmem>>, vector<128x16xbf16>
    %1 = arith.extf %0 : vector<128x16xbf16> to vector<128x16xf32>
    %c0_1 = arith.constant 0 : index
    %c0_2 = arith.constant 0 : index
    %2 = vector.load %arg2[%c0_1, %c0_2] : memref<1x16xf32, #tpu.memory_space<vmem>>, vector<1x16xf32>
    %3 = vector.broadcast %2 : vector<1x16xf32> to vector<128x16xf32>
    %4 = arith.mulf %1, %3 : vector<128x16xf32>
    %c0_3 = arith.constant 0 : index
    %c0_4 = arith.constant 0 : index
    %5 = vector.load %arg3[%c0_3, %c0_4] : memref<1x16xf32, #tpu.memory_space<vmem>>, vector<1x16xf32>
    %6 = vector.broadcast %5 : vector<1x16xf32> to vector<128x16xf32>
    %7 = arith.addf %4, %6 : vector<128x16xf32>
    %cst = arith.constant 0.000000e+00 : f32
    %8 = vector.broadcast %cst : f32 to vector<128x16xf32>
    %9 = arith.maximumf %7, %8 : vector<128x16xf32>
    %10 = arith.truncf %9 : vector<128x16xf32> to vector<128x16xbf16>
    %c0_5 = arith.constant 0 : index
    %c0_6 = arith.constant 0 : index
    %11 = vector.load %arg4[%c0_5, %c0_6] : memref<16x64xbf16, #tpu.memory_space<vmem>>, vector<16x64xbf16>
    %cst_7 = arith.constant dense<0.000000e+00> : vector<128x64xf32>
    %12 = tpu.matmul %10, %11, %cst_7 {dimension_numbers = #tpu.dot_dimension_numbers<[1], [0], [0], [1], [0, 0, 1, 1], [], []>} : vector<128x16xbf16>, vector<16x64xbf16>, vector<128x64xf32> -> vector<128x64xf32>
    %c0_8 = arith.constant 0 : index
    %c0_9 = arith.constant 0 : index
    %13 = vector.load %arg5[%c0_8, %c0_9] : memref<128x64xf32, #tpu.memory_space<vmem>>, vector<128x64xf32>
    %c0_10 = arith.constant 0 : index
    %c0_11 = arith.constant 0 : index
    %14 = vector.load %arg6[%c0_10, %c0_11] : memref<1x64xf32, #tpu.memory_space<vmem>>, vector<1x64xf32>
    %15 = vector.broadcast %14 : vector<1x64xf32> to vector<128x64xf32>
    %16 = arith.mulf %13, %15 : vector<128x64xf32>
    %c0_12 = arith.constant 0 : index
    %c0_13 = arith.constant 0 : index
    %17 = vector.load %arg7[%c0_12, %c0_13] : memref<1x64xf32, #tpu.memory_space<vmem>>, vector<1x64xf32>
    %18 = vector.broadcast %17 : vector<1x64xf32> to vector<128x64xf32>
    %19 = arith.addf %16, %18 : vector<128x64xf32>
    %cst_14 = arith.constant 0.000000e+00 : f32
    %20 = vector.broadcast %cst_14 : f32 to vector<128x64xf32>
    %21 = arith.maximumf %19, %20 : vector<128x64xf32>
    %22 = arith.addf %12, %21 : vector<128x64xf32>
    %c0_15 = arith.constant 0 : index
    %c0_16 = arith.constant 0 : index
    %23 = vector.load %arg8[%c0_15, %c0_16] : memref<128x64xf32, #tpu.memory_space<vmem>>, vector<128x64xf32>
    tpu.vector_store %arg8[%c0_15, %c0_16], %22 {strides = array<i32>} : memref<128x64xf32, #tpu.memory_space<vmem>>, vector<128x64xf32>,
    return
  }
  func.func @transform_0(%arg0: i32) -> (i32, i32) {
    %c0_i32 = arith.constant 0 : i32
    %c0_i32_0 = arith.constant 0 : i32
    return %arg0, %c0_i32 : i32, i32
  }
  func.func @transform_1(%arg0: i32) -> (i32, i32) {
    %c0_i32 = arith.constant 0 : i32
    %c0_i32_0 = arith.constant 0 : i32
    %c0_i32_1 = arith.constant 0 : i32
    return %c0_i32, %c0_i32_0 : i32, i32
  }
  func.func @transform_2(%arg0: i32) -> (i32, i32) {
    %c0_i32 = arith.constant 0 : i32
    %c0_i32_0 = arith.constant 0 : i32
    %c0_i32_1 = arith.constant 0 : i32
    return %c0_i32, %c0_i32_0 : i32, i32
  }
  func.func @transform_3(%arg0: i32) -> (i32, i32) {
    %c0_i32 = arith.constant 0 : i32
    %c0_i32_0 = arith.constant 0 : i32
    %c0_i32_1 = arith.constant 0 : i32
    return %c0_i32, %c0_i32_0 : i32, i32
  }
  func.func @transform_4(%arg0: i32) -> (i32, i32) {
    %c0_i32 = arith.constant 0 : i32
    %c0_i32_0 = arith.constant 0 : i32
    return %arg0, %c0_i32 : i32, i32
  }
  func.func @transform_5(%arg0: i32) -> (i32, i32) {
    %c0_i32 = arith.constant 0 : i32
    %c0_i32_0 = arith.constant 0 : i32
    %c0_i32_1 = arith.constant 0 : i32
    return %c0_i32, %c0_i32_0 : i32, i32
  }
  func.func @transform_6(%arg0: i32) -> (i32, i32) {
    %c0_i32 = arith.constant 0 : i32
    %c0_i32_0 = arith.constant 0 : i32
    %c0_i32_1 = arith.constant 0 : i32
    return %c0_i32, %c0_i32_0 : i32, i32
  }
  func.func @transform_7(%arg0: i32) -> (i32, i32) {
    %c0_i32 = arith.constant 0 : i32
    %c0_i32_0 = arith.constant 0 : i32
    return %arg0, %c0_i32 : i32, i32
  }
}

module attributes {stable_mosaic.version = 11 : i64} {
  func.func @_stage2_kernel(%arg0: i32, %arg1: i32, %arg2: memref<128x16xbf16, #tpu.memory_space<vmem>>, %arg3: memref<16x16xbf16, #tpu.memory_space<vmem>>, %arg4: memref<16x16xbf16, #tpu.memory_space<vmem>>, %arg5: memref<1x16xf32, #tpu.memory_space<vmem>>, %arg6: memref<1x16xf32, #tpu.memory_space<vmem>>, %arg7: memref<3x48x16xbf16, #tpu.memory_space<vmem>>, %arg8: memref<128x16xbf16, #tpu.memory_space<vmem>>, %arg9: memref<1x1x32xf32, #tpu.memory_space<vmem>>, %arg10: memref<128x16xf32, #tpu.memory_space<vmem>>) attributes {dimension_semantics = [#tpu.dimension_semantics<parallel>, #tpu.dimension_semantics<parallel>], iteration_bounds = array<i64: 2, 2>, scalar_prefetch = 0 : i64, scratch_operands = 1 : i64, tpu.core_type = #tpu.core_type<tc>, window_params = [{transform_indices = @transform_0, window_bounds = array<i64: 128, 16>}, {transform_indices = @transform_1, window_bounds = array<i64: 16, 16>}, {transform_indices = @transform_2, window_bounds = array<i64: 16, 16>}, {pipeline_mode = #tpu.pipeline_mode<synchronous>, transform_indices = @transform_3, window_bounds = array<i64: 1, 16>}, {pipeline_mode = #tpu.pipeline_mode<synchronous>, transform_indices = @transform_4, window_bounds = array<i64: 1, 16>}, {pipeline_mode = #tpu.pipeline_mode<synchronous>, transform_indices = @transform_5, window_bounds = array<i64: 3, 48, 16>}, {transform_indices = @transform_6, window_bounds = array<i64: 128, 16>}, {transform_indices = @transform_7, window_bounds = array<i64: 1, 1, 32>}]} {
    %c0 = arith.constant 0 : index
    %c0_0 = arith.constant 0 : index
    %0 = vector.load %arg5[%c0, %c0_0] : memref<1x16xf32, #tpu.memory_space<vmem>>, vector<1x16xf32>
    %c0_1 = arith.constant 0 : index
    %c0_2 = arith.constant 0 : index
    %1 = vector.load %arg6[%c0_1, %c0_2] : memref<1x16xf32, #tpu.memory_space<vmem>>, vector<1x16xf32>
    %c0_i32 = arith.constant 0 : i32
    %2 = arith.cmpi sgt, %arg1, %c0_i32 : i32
    %3 = arith.extui %2 : i1 to i32
    %4 = arith.sitofp %3 : i32 to f32
    %c1_i32 = arith.constant 1 : i32
    %5 = arith.cmpi slt, %arg1, %c1_i32 : i32
    %6 = arith.extui %5 : i1 to i32
    %7 = arith.sitofp %6 : i32 to f32
    %c0_3 = arith.constant 0 : index
    %c0_4 = arith.constant 0 : index
    %8 = vector.load %arg3[%c0_3, %c0_4] : memref<16x16xbf16, #tpu.memory_space<vmem>>, vector<16x16xbf16>
    %9 = arith.extf %8 : vector<16x16xbf16> to vector<16x16xf32>
    %10 = vector.broadcast %0 : vector<1x16xf32> to vector<16x16xf32>
    %11 = arith.mulf %9, %10 : vector<16x16xf32>
    %12 = vector.broadcast %1 : vector<1x16xf32> to vector<16x16xf32>
    %13 = arith.addf %11, %12 : vector<16x16xf32>
    %cst = arith.constant 0.000000e+00 : f32
    %14 = vector.broadcast %cst : f32 to vector<16x16xf32>
    %15 = arith.maximumf %13, %14 : vector<16x16xf32>
    %16 = vector.broadcast %4 : f32 to vector<16x16xf32>
    %17 = arith.mulf %15, %16 : vector<16x16xf32>
    %c0_5 = arith.constant 0 : index
    %c0_6 = arith.constant 0 : index
    %18 = vector.load %arg2[%c0_5, %c0_6] : memref<128x16xbf16, #tpu.memory_space<vmem>>, vector<128x16xbf16>
    %19 = arith.extf %18 : vector<128x16xbf16> to vector<128x16xf32>
    %20 = vector.broadcast %0 : vector<1x16xf32> to vector<128x16xf32>
    %21 = arith.mulf %19, %20 : vector<128x16xf32>
    %22 = vector.broadcast %1 : vector<1x16xf32> to vector<128x16xf32>
    %23 = arith.addf %21, %22 : vector<128x16xf32>
    %cst_7 = arith.constant 0.000000e+00 : f32
    %24 = vector.broadcast %cst_7 : f32 to vector<128x16xf32>
    %25 = arith.maximumf %23, %24 : vector<128x16xf32>
    %c0_8 = arith.constant 0 : index
    %c0_9 = arith.constant 0 : index
    %26 = vector.load %arg4[%c0_8, %c0_9] : memref<16x16xbf16, #tpu.memory_space<vmem>>, vector<16x16xbf16>
    %27 = arith.extf %26 : vector<16x16xbf16> to vector<16x16xf32>
    %28 = vector.broadcast %0 : vector<1x16xf32> to vector<16x16xf32>
    %29 = arith.mulf %27, %28 : vector<16x16xf32>
    %30 = vector.broadcast %1 : vector<1x16xf32> to vector<16x16xf32>
    %31 = arith.addf %29, %30 : vector<16x16xf32>
    %cst_10 = arith.constant 0.000000e+00 : f32
    %32 = vector.broadcast %cst_10 : f32 to vector<16x16xf32>
    %33 = arith.maximumf %31, %32 : vector<16x16xf32>
    %34 = vector.broadcast %7 : f32 to vector<16x16xf32>
    %35 = arith.mulf %33, %34 : vector<16x16xf32>
    %36 = tpu.concatenate %17, %25, %35 in 0 : vector<16x16xf32>, vector<128x16xf32>, vector<16x16xf32> -> vector<160x16xf32>
    %cst_11 = arith.constant 0.000000e+00 : f32
    %37 = vector.broadcast %cst_11 : f32 to vector<1x16xf32>
    %38 = tpu.concatenate %37, %36, %37 in 0 : vector<1x16xf32>, vector<160x16xf32>, vector<1x16xf32> -> vector<162x16xf32>
    %39 = tpu.iota {dimensions = array<i32: 0>} : vector<160x16xi32>
    %c16_i32 = arith.constant 16 : i32
    %c0_i32_12 = arith.constant 0 : i32
    %40 = arith.cmpi eq, %c16_i32, %c0_i32_12 : i32
    %c1_i32_13 = arith.constant 1 : i32
    %41 = arith.select %40, %c1_i32_13, %c16_i32 : i32
    %42 = vector.broadcast %41 : i32 to vector<160x16xi32>
    %43 = arith.remsi %39, %42 : vector<160x16xi32>
    %c0_i32_14 = arith.constant 0 : i32
    %44 = vector.broadcast %c0_i32_14 : i32 to vector<160x16xi32>
    %45 = arith.cmpi ne, %43, %44 : vector<160x16xi32>
    %c0_i32_15 = arith.constant 0 : i32
    %46 = vector.broadcast %c0_i32_15 : i32 to vector<160x16xi32>
    %47 = arith.cmpi slt, %43, %46 : vector<160x16xi32>
    %c0_i32_16 = arith.constant 0 : i32
    %48 = arith.cmpi slt, %41, %c0_i32_16 : i32
    %49 = vector.broadcast %48 : i1 to vector<160x16xi1>
    %50 = vector.broadcast %49 : vector<160x16xi1> to vector<160x16xi1>
    %51 = arith.xori %47, %50 : vector<160x16xi1>
    %52 = arith.andi %51, %45 : vector<160x16xi1>
    %53 = vector.broadcast %41 : i32 to vector<160x16xi32>
    %54 = arith.addi %43, %53 : vector<160x16xi32>
    %55 = arith.select %52, %54, %43 : vector<160x16xi1>, vector<160x16xi32>
    %c0_i32_17 = arith.constant 0 : i32
    %56 = vector.broadcast %c0_i32_17 : i32 to vector<160x16xi32>
    %57 = arith.cmpi eq, %55, %56 : vector<160x16xi32>
    %58 = vector.extract_strided_slice %38 {offsets = [0, 0], sizes = [160, 16], strides = [1, 1]} : vector<162x16xf32> to vector<160x16xf32>
    %cst_18 = arith.constant 0.000000e+00 : f32
    %59 = vector.broadcast %cst_18 : f32 to vector<160x16xf32>
    %60 = arith.select %57, %59, %58 : vector<160x16xi1>, vector<160x16xf32>
    %c15_i32 = arith.constant 15 : i32
    %61 = vector.broadcast %c15_i32 : i32 to vector<160x16xi32>
    %62 = arith.cmpi eq, %55, %61 : vector<160x16xi32>
    %63 = vector.extract_strided_slice %38 {offsets = [2, 0], sizes = [160, 16], strides = [1, 1]} : vector<162x16xf32> to vector<160x16xf32>
    %cst_19 = arith.constant 0.000000e+00 : f32
    %64 = vector.broadcast %cst_19 : f32 to vector<160x16xf32>
    %65 = arith.select %62, %64, %63 : vector<160x16xi1>, vector<160x16xf32>
    %66 = tpu.concatenate %60, %36, %65 in 1 : vector<160x16xf32>, vector<160x16xf32>, vector<160x16xf32> -> vector<160x48xf32>
    %67 = arith.truncf %66 : vector<160x48xf32> to vector<160x48xbf16>
    %cst_20 = arith.constant 0.000000e+00 : f32
    %68 = vector.broadcast %cst_20 : f32 to vector<128x16xf32>
    %c0_21 = arith.constant 0 : index
    %c0_22 = arith.constant 0 : index
    %69 = vector.load %arg10[%c0_21, %c0_22] : memref<128x16xf32, #tpu.memory_space<vmem>>, vector<128x16xf32>
    tpu.vector_store %arg10[%c0_21, %c0_22], %68 {strides = array<i32>} : memref<128x16xf32, #tpu.memory_space<vmem>>, vector<128x16xf32>,
    %70 = vector.extract_strided_slice %67 {offsets = [0, 0], sizes = [128, 48], strides = [1, 1]} : vector<160x48xbf16> to vector<128x48xbf16>
    %c0_23 = arith.constant 0 : index
    %c0_24 = arith.constant 0 : index
    %71 = vector.load %arg10[%c0_23, %c0_24] : memref<128x16xf32, #tpu.memory_space<vmem>>, vector<128x16xf32>
    %c0_25 = arith.constant 0 : index
    %c0_26 = arith.constant 0 : index
    %c0_27 = arith.constant 0 : index
    %72 = vector.load %arg7[%c0_25, %c0_26, %c0_27] : memref<3x48x16xbf16, #tpu.memory_space<vmem>>, vector<1x48x16xbf16>
    %73 = vector.shape_cast %72 : vector<1x48x16xbf16> to vector<48x16xbf16>
    %cst_28 = arith.constant dense<0.000000e+00> : vector<128x16xf32>
    %74 = tpu.matmul %70, %73, %cst_28 {dimension_numbers = #tpu.dot_dimension_numbers<[1], [0], [0], [1], [0, 0, 1, 1], [], []>} : vector<128x48xbf16>, vector<48x16xbf16>, vector<128x16xf32> -> vector<128x16xf32>
    %75 = arith.addf %71, %74 : vector<128x16xf32>
    %c0_29 = arith.constant 0 : index
    %c0_30 = arith.constant 0 : index
    %76 = vector.load %arg10[%c0_29, %c0_30] : memref<128x16xf32, #tpu.memory_space<vmem>>, vector<128x16xf32>
    tpu.vector_store %arg10[%c0_29, %c0_30], %75 {strides = array<i32>} : memref<128x16xf32, #tpu.memory_space<vmem>>, vector<128x16xf32>,
    %77 = vector.extract_strided_slice %67 {offsets = [16, 0], sizes = [128, 48], strides = [1, 1]} : vector<160x48xbf16> to vector<128x48xbf16>
    %c0_31 = arith.constant 0 : index
    %c0_32 = arith.constant 0 : index
    %78 = vector.load %arg10[%c0_31, %c0_32] : memref<128x16xf32, #tpu.memory_space<vmem>>, vector<128x16xf32>
    %c1 = arith.constant 1 : index
    %c0_33 = arith.constant 0 : index
    %c0_34 = arith.constant 0 : index
    %79 = vector.load %arg7[%c1, %c0_33, %c0_34] : memref<3x48x16xbf16, #tpu.memory_space<vmem>>, vector<1x48x16xbf16>
    %80 = vector.shape_cast %79 : vector<1x48x16xbf16> to vector<48x16xbf16>
    %cst_35 = arith.constant dense<0.000000e+00> : vector<128x16xf32>
    %81 = tpu.matmul %77, %80, %cst_35 {dimension_numbers = #tpu.dot_dimension_numbers<[1], [0], [0], [1], [0, 0, 1, 1], [], []>} : vector<128x48xbf16>, vector<48x16xbf16>, vector<128x16xf32> -> vector<128x16xf32>
    %82 = arith.addf %78, %81 : vector<128x16xf32>
    %c0_36 = arith.constant 0 : index
    %c0_37 = arith.constant 0 : index
    %83 = vector.load %arg10[%c0_36, %c0_37] : memref<128x16xf32, #tpu.memory_space<vmem>>, vector<128x16xf32>
    tpu.vector_store %arg10[%c0_36, %c0_37], %82 {strides = array<i32>} : memref<128x16xf32, #tpu.memory_space<vmem>>, vector<128x16xf32>,
    %84 = vector.extract_strided_slice %67 {offsets = [32, 0], sizes = [128, 48], strides = [1, 1]} : vector<160x48xbf16> to vector<128x48xbf16>
    %c0_38 = arith.constant 0 : index
    %c0_39 = arith.constant 0 : index
    %85 = vector.load %arg10[%c0_38, %c0_39] : memref<128x16xf32, #tpu.memory_space<vmem>>, vector<128x16xf32>
    %c2 = arith.constant 2 : index
    %c0_40 = arith.constant 0 : index
    %c0_41 = arith.constant 0 : index
    %86 = vector.load %arg7[%c2, %c0_40, %c0_41] : memref<3x48x16xbf16, #tpu.memory_space<vmem>>, vector<1x48x16xbf16>
    %87 = vector.shape_cast %86 : vector<1x48x16xbf16> to vector<48x16xbf16>
    %cst_42 = arith.constant dense<0.000000e+00> : vector<128x16xf32>
    %88 = tpu.matmul %84, %87, %cst_42 {dimension_numbers = #tpu.dot_dimension_numbers<[1], [0], [0], [1], [0, 0, 1, 1], [], []>} : vector<128x48xbf16>, vector<48x16xbf16>, vector<128x16xf32> -> vector<128x16xf32>
    %89 = arith.addf %85, %88 : vector<128x16xf32>
    %c0_43 = arith.constant 0 : index
    %c0_44 = arith.constant 0 : index
    %90 = vector.load %arg10[%c0_43, %c0_44] : memref<128x16xf32, #tpu.memory_space<vmem>>, vector<128x16xf32>
    tpu.vector_store %arg10[%c0_43, %c0_44], %89 {strides = array<i32>} : memref<128x16xf32, #tpu.memory_space<vmem>>, vector<128x16xf32>,
    %c0_45 = arith.constant 0 : index
    %c0_46 = arith.constant 0 : index
    %91 = vector.load %arg10[%c0_45, %c0_46] : memref<128x16xf32, #tpu.memory_space<vmem>>, vector<128x16xf32>
    %92 = arith.truncf %91 : vector<128x16xf32> to vector<128x16xbf16>
    %c0_47 = arith.constant 0 : index
    %c0_48 = arith.constant 0 : index
    %93 = vector.load %arg8[%c0_47, %c0_48] : memref<128x16xbf16, #tpu.memory_space<vmem>>, vector<128x16xbf16>
    tpu.vector_store %arg8[%c0_47, %c0_48], %92 {strides = array<i32>} : memref<128x16xbf16, #tpu.memory_space<vmem>>, vector<128x16xbf16>,
    %cst_49 = arith.constant dense<0.000000e+00> : vector<16xf32>
    %94 = vector.multi_reduction <add>, %91, %cst_49 [0] : vector<128x16xf32> to vector<16xf32>
    %95 = vector.shape_cast %94 : vector<16xf32> to vector<1x16xf32>
    %cst_50 = arith.constant 7.812500e-03 : f32
    %96 = vector.broadcast %cst_50 : f32 to vector<1x16xf32>
    %97 = arith.mulf %95, %96 : vector<1x16xf32>
    %98 = vector.broadcast %97 : vector<1x16xf32> to vector<128x16xf32>
    %99 = arith.subf %91, %98 : vector<128x16xf32>
    %100 = arith.mulf %99, %99 : vector<128x16xf32>
    %cst_51 = arith.constant dense<0.000000e+00> : vector<16xf32>
    %101 = vector.multi_reduction <add>, %100, %cst_51 [0] : vector<128x16xf32> to vector<16xf32>
    %102 = vector.shape_cast %101 : vector<16xf32> to vector<1x16xf32>
    %103 = tpu.concatenate %95, %102 in 1 : vector<1x16xf32>, vector<1x16xf32> -> vector<1x32xf32>
    %104 = vector.shape_cast %103 : vector<1x32xf32> to vector<1x1x32xf32>
    %c0_52 = arith.constant 0 : index
    %c0_53 = arith.constant 0 : index
    %c0_54 = arith.constant 0 : index
    %105 = vector.load %arg9[%c0_52, %c0_53, %c0_54] : memref<1x1x32xf32, #tpu.memory_space<vmem>>, vector<1x1x32xf32>
    tpu.vector_store %arg9[%c0_52, %c0_53, %c0_54], %104 {strides = array<i32>} : memref<1x1x32xf32, #tpu.memory_space<vmem>>, vector<1x1x32xf32>,
    return
  }
  func.func @transform_0(%arg0: i32, %arg1: i32) -> (i32, i32) {
    %c2_i32 = arith.constant 2 : i32
    %0 = arith.muli %arg0, %c2_i32 : i32
    %1 = arith.addi %0, %arg1 : i32
    %c0_i32 = arith.constant 0 : i32
    %c0_i32_0 = arith.constant 0 : i32
    return %1, %c0_i32 : i32, i32
  }
  func.func @transform_1(%arg0: i32, %arg1: i32) -> (i32, i32) {
    %c16_i32 = arith.constant 16 : i32
    %0 = arith.muli %arg0, %c16_i32 : i32
    %c8_i32 = arith.constant 8 : i32
    %1 = arith.muli %arg1, %c8_i32 : i32
    %2 = arith.addi %0, %1 : i32
    %c1_i32 = arith.constant 1 : i32
    %3 = arith.subi %2, %c1_i32 : i32
    %c0_i32 = arith.constant 0 : i32
    %4 = arith.maxsi %3, %c0_i32 : i32
    %c0_i32_0 = arith.constant 0 : i32
    %c0_i32_1 = arith.constant 0 : i32
    return %4, %c0_i32_0 : i32, i32
  }
  func.func @transform_2(%arg0: i32, %arg1: i32) -> (i32, i32) {
    %c16_i32 = arith.constant 16 : i32
    %0 = arith.muli %arg0, %c16_i32 : i32
    %c8_i32 = arith.constant 8 : i32
    %1 = arith.muli %arg1, %c8_i32 : i32
    %2 = arith.addi %0, %1 : i32
    %c8_i32_0 = arith.constant 8 : i32
    %3 = arith.addi %2, %c8_i32_0 : i32
    %c31_i32 = arith.constant 31 : i32
    %4 = arith.minsi %3, %c31_i32 : i32
    %c0_i32 = arith.constant 0 : i32
    %c0_i32_1 = arith.constant 0 : i32
    return %4, %c0_i32 : i32, i32
  }
  func.func @transform_3(%arg0: i32, %arg1: i32) -> (i32, i32) {
    %c0_i32 = arith.constant 0 : i32
    %c0_i32_0 = arith.constant 0 : i32
    %c0_i32_1 = arith.constant 0 : i32
    return %c0_i32, %c0_i32_0 : i32, i32
  }
  func.func @transform_4(%arg0: i32, %arg1: i32) -> (i32, i32) {
    %c0_i32 = arith.constant 0 : i32
    %c0_i32_0 = arith.constant 0 : i32
    %c0_i32_1 = arith.constant 0 : i32
    return %c0_i32, %c0_i32_0 : i32, i32
  }
  func.func @transform_5(%arg0: i32, %arg1: i32) -> (i32, i32, i32) {
    %c0_i32 = arith.constant 0 : i32
    %c0_i32_0 = arith.constant 0 : i32
    %c0_i32_1 = arith.constant 0 : i32
    %c0_i32_2 = arith.constant 0 : i32
    return %c0_i32, %c0_i32_0, %c0_i32_1 : i32, i32, i32
  }
  func.func @transform_6(%arg0: i32, %arg1: i32) -> (i32, i32) {
    %c2_i32 = arith.constant 2 : i32
    %0 = arith.muli %arg0, %c2_i32 : i32
    %1 = arith.addi %0, %arg1 : i32
    %c0_i32 = arith.constant 0 : i32
    %c0_i32_0 = arith.constant 0 : i32
    return %1, %c0_i32 : i32, i32
  }
  func.func @transform_7(%arg0: i32, %arg1: i32) -> (i32, i32, i32) {
    %c2_i32 = arith.constant 2 : i32
    %0 = arith.muli %arg0, %c2_i32 : i32
    %1 = arith.addi %0, %arg1 : i32
    %c0_i32 = arith.constant 0 : i32
    %c0_i32_0 = arith.constant 0 : i32
    %c0_i32_1 = arith.constant 0 : i32
    return %1, %c0_i32, %c0_i32_0 : i32, i32, i32
  }
}

</mosaic_0001>

<llo_original>
// kernel: bottleneck_forward.4
$region0: #{bottleneck_forward.4}
  #allocation0 [shape = 'u32[]', space=smem, size = 0x4, offset = 0x4, fixed_abs, tag = 'smem constant byte address 0x4 - core index']
  #allocation1 [shape = 'u32[144,128]{1,0:T(1,128)}', space=vmem, size = 0x12000, scoped, tag = 'internal scratch']
  %s0 = inlined_call_operand.hbm [shape: f32[512,64], index: 0, kind: input, shape index: {}]
  %s1 = inlined_call_operand.vmem [shape: f32[4,1,128], index: 1, kind: output, shape index: {}]
  %s2 = sld [smem:[#allocation0]]
  $region41: #{bottleneck_forward.4} parent=0
    _
  %s4 = ssub.s32 1, %s2
  %s5 = scalar_select 0, %s4, %s2
  $region1: #{bottleneck_forward.4} parent=0
    #allocation2 [shape = 'u8[131072]{0}', space=vmem, size = 0x20000, scoped, tag = 'input window, operand 0']
    #allocation3 [shape = 's32[2]{0}', space=sflag, size = 0x8, scoped, tag = 'scoped memory for bottleneck_forward.4']
    %6 = vsyncpa [#allocation3], 0
    %s7 = scalar_lea.sflag [#allocation3], 1
    %8 = vsyncpa %s7, 0
    loop: start=0, step=1, limit=6
    $region2: #{bottleneck_forward.4} parent=1 // loop_pre_header
      _
    $region3: #{bottleneck_forward.4} parent=1 // loop_header
      %s10 = sphi 0, %s14
      %p11 = scmp.ge.s32.totalorder %s10, 6
      %s20 = sphi 0, %s22
      %s23 = sphi 0, %s20
      %s24 = sphi 0, %s23
      %s40 = sphi 0, %s24
      %s46 = sphi 0, %s48
      %s49 = sphi 0, %s46
      %s50 = sphi 0, %s49
      %s66 = sphi 0, %s50
    $region4: #{bottleneck_forward.4} parent=1 // loop_header_branch
      %13 = sbr.rel (%p11) target = $region8
    $region5: #{bottleneck_forward.4} parent=1 // loop_body
      %s15 = ssub.s32 %s10, 1
      %s16 = ssub.s32 %s10, 2
      %s17 = sadd.s32 %s10, 1
      %s18 = ssub.s32 %s10, %s17
      %p19 = scmp.eq.s32.totalorder %s18, 0
      %s21 = sadd.s32 %s20, 1
      %s22 = scalar_select %p19, %s20, %s21
      %p25 = pneg %p19
      %p26 = scmp.eq.s32.totalorder %s10, 3
      %p27 = por %p25, %p26
      %p28 = scmp.ne.s32.totalorder %s20, %s23
      %p29 = scmp.eq.s32.totalorder %s10, 0
      %p30 = por %p28, %p29
      %p31 = scmp.ne.s32.totalorder %s20, %s23
      %p32 = scmp.eq.s32.totalorder %s15, 3
      %p33 = por %p31, %p32
      %p34 = scmp.ne.s32.totalorder %s23, %s24
      %p35 = scmp.eq.s32.totalorder %s15, 0
      %p36 = por %p34, %p35
      %p37 = scmp.ne.s32.totalorder %s23, %s24
      %p38 = scmp.eq.s32.totalorder %s16, 3
      %p39 = por %p37, %p38
      %p41 = scmp.ne.s32.totalorder %s24, %s40
      %p42 = scmp.eq.s32.totalorder %s16, 0
      %p43 = por %p41, %p42
      %s44 = ssub.s32 %s10, %s17
      %p45 = scmp.eq.s32.totalorder %s44, 0
      %s47 = sadd.s32 %s46, 1
      %s48 = scalar_select %p45, %s46, %s47
      %p51 = pneg %p45
      %p52 = scmp.eq.s32.totalorder %s10, 3
      %p53 = por %p51, %p52
      %p54 = scmp.ne.s32.totalorder %s46, %s49
      %p55 = scmp.eq.s32.totalorder %s10, 0
      %p56 = por %p54, %p55
      %p57 = scmp.ne.s32.totalorder %s46, %s49
      %p58 = scmp.eq.s32.totalorder %s15, 3
      %p59 = por %p57, %p58
      %p60 = scmp.ne.s32.totalorder %s49, %s50
      %p61 = scmp.eq.s32.totalorder %s15, 0
      %p62 = por %p60, %p61
      %p63 = scmp.ne.s32.totalorder %s49, %s50
      %p64 = scmp.eq.s32.totalorder %s16, 3
      %p65 = por %p63, %p64
      %p67 = scmp.ne.s32.totalorder %s50, %s66
      %p68 = scmp.eq.s32.totalorder %s16, 0
      %p69 = por %p67, %p68
      %p70 = scmp.le.s32.totalorder 1, %s10
      %p71 = scmp.lt.s32.totalorder %s10, 5
      %p72 = pnand %p70, %p71
      %p73 = pneg %p72
      // Predicated region
      $region9: #{bottleneck_forward.4} parent=5 // pred_check
        _
      $region10: #{bottleneck_forward.4} parent=5 // pred_check_branch
        %75 = sbr.rel (%p72) target = $region12
      $region11: #{bottleneck_forward.4} parent=5 // pred_region
        %s76 = ssub.s32 %s10, 1
      $region12: #{bottleneck_forward.4} parent=5 // pred_fallthru
        _
      %p77 = scmp.lt.s32.totalorder %s10, 4
      // Predicated region
      $region13: #{bottleneck_forward.4} parent=5 // pred_check
        %p78 = pneg %p77
      $region14: #{bottleneck_forward.4} parent=5 // pred_check_branch
        %80 = sbr.rel (%p78) target = $region16
      $region15: #{bottleneck_forward.4} parent=5 // pred_region
        // Predicated region
        $region17: #{bottleneck_forward.4} parent=15 // pred_check
          %p81 = pneg %p30
        $region18: #{bottleneck_forward.4} parent=15 // pred_check_branch
          %83 = sbr.rel (%p81) target = $region20
        $region19: #{bottleneck_forward.4} parent=15 // pred_region
          %s84 = sand.u32 %s20, 1
          %s85 = scalar_lea.sflag [#allocation3], %s84
          %s86 = sand.u32 %s20, 1
          %s87 = smul.addr %s86, 128
          %s88 = scalar_lea.vmem [#allocation2], %s87
          %s89 = smul.u32 16, %s10
          %s91 = ssub.s32 2048, 2048
          %92 = vsyncadd %s85, %s91
          %s93 = smul.addr %s89, 128
          %s94 = scalar_lea.hbm %s0, %s93
          %s95 = sshll.u32 %s88, 4
          %s96 = int_to_ptr.vmem [resolvable:$true] %s95
          %101 = dma.hbm_to_vmem [thread:$0]  %s94, 2048, %s96, %s85, 128, 128, 8
        $region20: #{bottleneck_forward.4} parent=15 // pred_fallthru
          _
      $region16: #{bottleneck_forward.4} parent=5 // pred_fallthru
        _
      %p102 = scmp.le.s32.totalorder 1, %s10
      %p103 = scmp.lt.s32.totalorder %s10, 5
      %p104 = pnand %p102, %p103
      %p105 = pneg %p104
      // Predicated region
      $region21: #{bottleneck_forward.4} parent=5 // pred_check
        _
      $region22: #{bottleneck_forward.4} parent=5 // pred_check_branch
        %107 = sbr.rel (%p104) target = $region24
      $region23: #{bottleneck_forward.4} parent=5 // pred_region
        %s108 = ssub.s32 %s10, 1
        %s109 = sand.u32 %s23, 1
        %s110 = scalar_lea.sflag [#allocation3], %s109
        %s111 = sand.u32 %s23, 1
        %s112 = smul.addr %s111, 128
        %s113 = scalar_lea.vmem [#allocation2], %s112
        // Predicated region
        $region25: #{bottleneck_forward.4} parent=23 // pred_check
          %p114 = pneg %p36
        $region26: #{bottleneck_forward.4} parent=23 // pred_check_branch
          %116 = sbr.rel (%p114) target = $region28
        $region27: #{bottleneck_forward.4} parent=23 // pred_region
          %117 = dma.done %s110, 2048
        $region28: #{bottleneck_forward.4} parent=23 // pred_fallthru
          _
        %s118 = sand.u32 %s23, 1
        %s119 = scalar_lea.sflag [#allocation3], %s118
        %s120 = sand.u32 %s23, 1
        %s121 = smul.addr %s120, 128
        %s122 = scalar_lea.vmem [#allocation2], %s121
        %p123 = pneg %p36
        %p124 = pneg %p33
        %p125 = pneg %p62
        %p126 = pneg %p59
        %p127 = scmp.lt.s32.totalorder %s15, 3
        %s128 = scalar_select %p127, %s15, 3
        %s129 = scalar_lea.vmem %s1, %s128
        %s130 = smul.u32 16, %s15
        %p131 = scmp.lt.s32.totalorder %s15, 3
        %s132 = scalar_select %p131, %s15, 3
        %s133 = scalar_lea.vmem %s1, %s132
        %v134 = vld [vmem:[%s113] sm:$0xff]
        %v135 = vld [vmem:[%s113 + $0x8] sm:$0xff]
        %v136 = vld [vmem:[%s113 + $0x10] sm:$0xff]
        %v137 = vld [vmem:[%s113 + $0x18] sm:$0xff]
        %v138 = vld [vmem:[%s113 + $0x20] sm:$0xff]
        %v139 = vld [vmem:[%s113 + $0x28] sm:$0xff]
        %v140 = vld [vmem:[%s113 + $0x30] sm:$0xff]
        %v141 = vld [vmem:[%s113 + $0x38] sm:$0xff]
        %v142 = vld [vmem:[%s113 + $0x40] sm:$0xff]
        %v143 = vld [vmem:[%s113 + $0x48] sm:$0xff]
        %v144 = vld [vmem:[%s113 + $0x50] sm:$0xff]
        %v145 = vld [vmem:[%s113 + $0x58] sm:$0xff]
        %v146 = vld [vmem:[%s113 + $0x60] sm:$0xff]
        %v147 = vld [vmem:[%s113 + $0x68] sm:$0xff]
        %v148 = vld [vmem:[%s113 + $0x70] sm:$0xff]
        %v149 = vld [vmem:[%s113 + $0x78] sm:$0xff]
        %vm150 = vcmask 523264
        %v151 = vsel %vm150, %v134, 0.0
        %v152 = vsel %vm150, %v135, 0.0
        %v153 = vadd.f32 %v151, %v152
        %v154 = vsel %vm150, %v136, 0.0
        %v155 = vadd.f32 %v153, %v154
        %v156 = vsel %vm150, %v137, 0.0
        %v157 = vadd.f32 %v155, %v156
        %v158 = vsel %vm150, %v138, 0.0
        %v159 = vadd.f32 %v157, %v158
        %v160 = vsel %vm150, %v139, 0.0
        %v161 = vadd.f32 %v159, %v160
        %v162 = vsel %vm150, %v140, 0.0
        %v163 = vadd.f32 %v161, %v162
        %v164 = vsel %vm150, %v141, 0.0
        %v165 = vadd.f32 %v163, %v164
        %v166 = vsel %vm150, %v142, 0.0
        %v167 = vadd.f32 %v165, %v166
        %v168 = vsel %vm150, %v143, 0.0
        %v169 = vadd.f32 %v167, %v168
        %v170 = vsel %vm150, %v144, 0.0
        %v171 = vadd.f32 %v169, %v170
        %v172 = vsel %vm150, %v145, 0.0
        %v173 = vadd.f32 %v171, %v172
        %v174 = vsel %vm150, %v146, 0.0
        %v175 = vadd.f32 %v173, %v174
        %v176 = vsel %vm150, %v147, 0.0
        %v177 = vadd.f32 %v175, %v176
        %v178 = vsel %vm150, %v148, 0.0
        %v179 = vadd.f32 %v177, %v178
        %v180 = vsel %vm150, %v149, 0.0
        %v181 = vadd.f32 %v179, %v180
        %v182 = vrot.slane %v181, 4
        %v183 = vadd.f32 %v181, %v182
        %v184 = vrot.slane %v183, 2
        %v185 = vadd.f32 %v183, %v184
        %v186 = vrot.slane %v185, 1
        %v187 = vadd.f32 %v185, %v186
        %v188 = vmul.f32 %v187, 0.0078125
        %v189 = vsub.f32 %v134, %v188
        %v190 = vsub.f32 %v135, %v188
        %v191 = vsub.f32 %v136, %v188
        %v192 = vsub.f32 %v137, %v188
        %v193 = vsub.f32 %v138, %v188
        %v194 = vsub.f32 %v139, %v188
        %v195 = vsub.f32 %v140, %v188
        %v196 = vsub.f32 %v141, %v188
        %v197 = vsub.f32 %v142, %v188
        %v198 = vsub.f32 %v143, %v188
        %v199 = vsub.f32 %v144, %v188
        %v200 = vsub.f32 %v145, %v188
        %v201 = vsub.f32 %v146, %v188
        %v202 = vsub.f32 %v147, %v188
        %v203 = vsub.f32 %v148, %v188
        %v204 = vsub.f32 %v149, %v188
        %v205 = vmul.f32 %v189, %v189
        %v206 = vmul.f32 %v190, %v190
        %v207 = vmul.f32 %v191, %v191
        %v208 = vmul.f32 %v192, %v192
        %v209 = vmul.f32 %v193, %v193
        %v210 = vmul.f32 %v194, %v194
        %v211 = vmul.f32 %v195, %v195
        %v212 = vmul.f32 %v196, %v196
        %v213 = vmul.f32 %v197, %v197
        %v214 = vmul.f32 %v198, %v198
        %v215 = vmul.f32 %v199, %v199
        %v216 = vmul.f32 %v200, %v200
        %v217 = vmul.f32 %v201, %v201
        %v218 = vmul.f32 %v202, %v202
        %v219 = vmul.f32 %v203, %v203
        %v220 = vmul.f32 %v204, %v204
        %v221 = vsel %vm150, %v205, 0.0
        %v222 = vsel %vm150, %v206, 0.0
        %v223 = vadd.f32 %v221, %v222
        %v224 = vsel %vm150, %v207, 0.0
        %v225 = vadd.f32 %v223, %v224
        %v226 = vsel %vm150, %v208, 0.0
        %v227 = vadd.f32 %v225, %v226
        %v228 = vsel %vm150, %v209, 0.0
        %v229 = vadd.f32 %v227, %v228
        %v230 = vsel %vm150, %v210, 0.0
        %v231 = vadd.f32 %v229, %v230
        %v232 = vsel %vm150, %v211, 0.0
        %v233 = vadd.f32 %v231, %v232
        %v234 = vsel %vm150, %v212, 0.0
        %v235 = vadd.f32 %v233, %v234
        %v236 = vsel %vm150, %v213, 0.0
        %v237 = vadd.f32 %v235, %v236
        %v238 = vsel %vm150, %v214, 0.0
        %v239 = vadd.f32 %v237, %v238
        %v240 = vsel %vm150, %v215, 0.0
        %v241 = vadd.f32 %v239, %v240
        %v242 = vsel %vm150, %v216, 0.0
        %v243 = vadd.f32 %v241, %v242
        %v244 = vsel %vm150, %v217, 0.0
        %v245 = vadd.f32 %v243, %v244
        %v246 = vsel %vm150, %v218, 0.0
        %v247 = vadd.f32 %v245, %v246
        %v248 = vsel %vm150, %v219, 0.0
        %v249 = vadd.f32 %v247, %v248
        %v250 = vsel %vm150, %v220, 0.0
        %v251 = vadd.f32 %v249, %v250
        %v252 = vrot.slane %v251, 4
        %v253 = vadd.f32 %v251, %v252
        %v254 = vrot.slane %v253, 2
        %v255 = vadd.f32 %v253, %v254
        %v256 = vrot.slane %v255, 1
        %v257 = vadd.f32 %v255, %v256
        %259 = vrot.lane.b32.xlu0 %v257, 64
        %v260 = vpop.permute.xlu0 %259
        %v262 = vsel %vm150, %v187, %v260
        %263 = vst [vmem:[%s133] sm:$0x1] %v262
        %p264 = scmp.lt.s32.totalorder %s15, 3
        %s265 = scalar_select %p264, %s15, 3
        %s266 = scalar_lea.vmem %s1, %s265
        // Predicated region
        $region29: #{bottleneck_forward.4} parent=23 // pred_check
          %p267 = pneg %p59
        $region30: #{bottleneck_forward.4} parent=23 // pred_check_branch
          %269 = sbr.rel (%p267) target = $region32
        $region31: #{bottleneck_forward.4} parent=23 // pred_region
          _
        $region32: #{bottleneck_forward.4} parent=23 // pred_fallthru
          _
      $region24: #{bottleneck_forward.4} parent=5 // pred_fallthru
        _
      %p270 = scmp.le.s32.totalorder 2, %s10
      // Predicated region
      $region33: #{bottleneck_forward.4} parent=5 // pred_check
        %p271 = pneg %p270
      $region34: #{bottleneck_forward.4} parent=5 // pred_check_branch
        %273 = sbr.rel (%p271) target = $region36
      $region35: #{bottleneck_forward.4} parent=5 // pred_region
        %s274 = ssub.s32 %s10, 2
        // Predicated region
        $region37: #{bottleneck_forward.4} parent=35 // pred_check
          %p275 = pneg %p65
        $region38: #{bottleneck_forward.4} parent=35 // pred_check_branch
          %277 = sbr.rel (%p275) target = $region40
        $region39: #{bottleneck_forward.4} parent=35 // pred_region
          %p278 = scmp.lt.s32.totalorder %s16, 3
          %s279 = scalar_select %p278, %s16, 3
          %s280 = scalar_lea.vmem %s1, %s279
        $region40: #{bottleneck_forward.4} parent=35 // pred_fallthru
          _
      $region36: #{bottleneck_forward.4} parent=5 // pred_fallthru
        _
    $region6: #{bottleneck_forward.4} parent=1 // loop_footer
      %s14 = sadd.s32 1, %s10
    $region7: #{bottleneck_forward.4} parent=1 // loop_footer_branch
      %9 = sbr.rel target = $region3
    $region8: #{bottleneck_forward.4} parent=1 // loop_exit
      _
    %281 = vsyncpa [#allocation3], 1
    %s282 = scalar_lea.sflag [#allocation3], 1
    %283 = vsyncpa %s282, 1

// kernel: bottleneck_forward.7
$region0: #{bottleneck_forward.7}
  #allocation0 [shape = 'u32[]', space=smem, size = 0x4, offset = 0x4, fixed_abs, tag = 'smem constant byte address 0x4 - core index']
  #allocation1 [shape = 'u32[144,128]{1,0:T(1,128)}', space=vmem, size = 0x12000, scoped, tag = 'internal scratch']
  %s0 = inlined_call_operand.vmem [shape: bf16[512,16], index: 0, kind: input, shape index: {}]
  %s1 = inlined_call_operand.vmem [shape: f32[1,16], index: 1, kind: input, shape index: {}]
  %s2 = inlined_call_operand.vmem [shape: f32[1,16], index: 2, kind: input, shape index: {}]
  %s3 = inlined_call_operand.vmem [shape: bf16[16,64], index: 3, kind: input, shape index: {}]
  %s4 = inlined_call_operand.vmem [shape: f32[512,64], index: 4, kind: input, shape index: {}]
  %s5 = inlined_call_operand.vmem [shape: f32[1,64], index: 5, kind: input, shape index: {}]
  %s6 = inlined_call_operand.vmem [shape: f32[1,64], index: 6, kind: input, shape index: {}]
  %s7 = inlined_call_operand.hbm [shape: f32[512,64], index: 7, kind: output, shape index: {}]
  %s8 = sld [smem:[#allocation0]]
  $region61: #{bottleneck_forward.7} parent=0
    _
  %s10 = ssub.s32 1, %s8
  %s11 = scalar_select 0, %s10, %s8
  $region1: #{bottleneck_forward.7} parent=0
    #allocation2 [shape = 'u8[131072]{0}', space=vmem, size = 0x20000, scoped, tag = 'output window, operand 0']
    #allocation3 [shape = 's32[2]{0}', space=sflag, size = 0x8, scoped, tag = 'scoped memory for bottleneck_forward.7']
    %12 = vsyncpa [#allocation3], 0
    %s13 = scalar_lea.sflag [#allocation3], 1
    %14 = vsyncpa %s13, 0
    loop: start=0, step=1, limit=6
    $region2: #{bottleneck_forward.7} parent=1 // loop_pre_header
      _
    $region3: #{bottleneck_forward.7} parent=1 // loop_header
      %s16 = sphi 0, %s20
      %p17 = scmp.ge.s32.totalorder %s16, 6
      %s26 = sphi 0, %s28
      %s29 = sphi 0, %s26
      %s30 = sphi 0, %s29
      %s46 = sphi 0, %s30
      %s50 = sphi 0, %s50
      %s52 = sphi 0, %s50
      %s53 = sphi 0, %s52
      %s67 = sphi 0, %s53
      %s71 = sphi 0, %s71
      %s73 = sphi 0, %s71
      %s74 = sphi 0, %s73
      %s88 = sphi 0, %s74
      %s92 = sphi 0, %s92
      %s94 = sphi 0, %s92
      %s95 = sphi 0, %s94
      %s109 = sphi 0, %s95
      %s115 = sphi 0, %s117
      %s118 = sphi 0, %s115
      %s119 = sphi 0, %s118
      %s135 = sphi 0, %s119
      %s139 = sphi 0, %s139
      %s141 = sphi 0, %s139
      %s142 = sphi 0, %s141
      %s156 = sphi 0, %s142
      %s160 = sphi 0, %s160
      %s162 = sphi 0, %s160
      %s163 = sphi 0, %s162
      %s177 = sphi 0, %s163
      %s183 = sphi 0, %s185
      %s186 = sphi 0, %s183
      %s187 = sphi 0, %s186
      %s203 = sphi 0, %s187
    $region4: #{bottleneck_forward.7} parent=1 // loop_header_branch
      %19 = sbr.rel (%p17) target = $region8
    $region5: #{bottleneck_forward.7} parent=1 // loop_body
      %s21 = ssub.s32 %s16, 1
      %s22 = ssub.s32 %s16, 2
      %s23 = sadd.s32 %s16, 1
      %s24 = ssub.s32 %s16, %s23
      %p25 = scmp.eq.s32.totalorder %s24, 0
      %s27 = sadd.s32 %s26, 1
      %s28 = scalar_select %p25, %s26, %s27
      %p31 = pneg %p25
      %p32 = scmp.eq.s32.totalorder %s16, 3
      %p33 = por %p31, %p32
      %p34 = scmp.ne.s32.totalorder %s26, %s29
      %p35 = scmp.eq.s32.totalorder %s16, 0
      %p36 = por %p34, %p35
      %p37 = scmp.ne.s32.totalorder %s26, %s29
      %p38 = scmp.eq.s32.totalorder %s21, 3
      %p39 = por %p37, %p38
      %p40 = scmp.ne.s32.totalorder %s29, %s30
      %p41 = scmp.eq.s32.totalorder %s21, 0
      %p42 = por %p40, %p41
      %p43 = scmp.ne.s32.totalorder %s29, %s30
      %p44 = scmp.eq.s32.totalorder %s22, 3
      %p45 = por %p43, %p44
      %p47 = scmp.ne.s32.totalorder %s30, %s46
      %p48 = scmp.eq.s32.totalorder %s22, 0
      %p49 = por %p47, %p48
      %s51 = sadd.s32 %s50, 1
      %p54 = scmp.eq.s32.totalorder %s16, 3
      %p55 = scmp.ne.s32.totalorder %s50, %s52
      %p56 = scmp.eq.s32.totalorder %s16, 0
      %p57 = por %p55, %p56
      %p58 = scmp.ne.s32.totalorder %s50, %s52
      %p59 = scmp.eq.s32.totalorder %s21, 3
      %p60 = por %p58, %p59
      %p61 = scmp.ne.s32.totalorder %s52, %s53
      %p62 = scmp.eq.s32.totalorder %s21, 0
      %p63 = por %p61, %p62
      %p64 = scmp.ne.s32.totalorder %s52, %s53
      %p65 = scmp.eq.s32.totalorder %s22, 3
      %p66 = por %p64, %p65
      %p68 = scmp.ne.s32.totalorder %s53, %s67
      %p69 = scmp.eq.s32.totalorder %s22, 0
      %p70 = por %p68, %p69
      %s72 = sadd.s32 %s71, 1
      %p75 = scmp.eq.s32.totalorder %s16, 3
      %p76 = scmp.ne.s32.totalorder %s71, %s73
      %p77 = scmp.eq.s32.totalorder %s16, 0
      %p78 = por %p76, %p77
      %p79 = scmp.ne.s32.totalorder %s71, %s73
      %p80 = scmp.eq.s32.totalorder %s21, 3
      %p81 = por %p79, %p80
      %p82 = scmp.ne.s32.totalorder %s73, %s74
      %p83 = scmp.eq.s32.totalorder %s21, 0
      %p84 = por %p82, %p83
      %p85 = scmp.ne.s32.totalorder %s73, %s74
      %p86 = scmp.eq.s32.totalorder %s22, 3
      %p87 = por %p85, %p86
      %p89 = scmp.ne.s32.totalorder %s74, %s88
      %p90 = scmp.eq.s32.totalorder %s22, 0
      %p91 = por %p89, %p90
      %s93 = sadd.s32 %s92, 1
      %p96 = scmp.eq.s32.totalorder %s16, 3
      %p97 = scmp.ne.s32.totalorder %s92, %s94
      %p98 = scmp.eq.s32.totalorder %s16, 0
      %p99 = por %p97, %p98
      %p100 = scmp.ne.s32.totalorder %s92, %s94
      %p101 = scmp.eq.s32.totalorder %s21, 3
      %p102 = por %p100, %p101
      %p103 = scmp.ne.s32.totalorder %s94, %s95
      %p104 = scmp.eq.s32.totalorder %s21, 0
      %p105 = por %p103, %p104
      %p106 = scmp.ne.s32.totalorder %s94, %s95
      %p107 = scmp.eq.s32.totalorder %s22, 3
      %p108 = por %p106, %p107
      %p110 = scmp.ne.s32.totalorder %s95, %s109
      %p111 = scmp.eq.s32.totalorder %s22, 0
      %p112 = por %p110, %p111
      %s113 = ssub.s32 %s16, %s23
      %p114 = scmp.eq.s32.totalorder %s113, 0
      %s116 = sadd.s32 %s115, 1
      %s117 = scalar_select %p114, %s115, %s116
      %p120 = pneg %p114
      %p121 = scmp.eq.s32.totalorder %s16, 3
      %p122 = por %p120, %p121
      %p123 = scmp.ne.s32.totalorder %s115, %s118
      %p124 = scmp.eq.s32.totalorder %s16, 0
      %p125 = por %p123, %p124
      %p126 = scmp.ne.s32.totalorder %s115, %s118
      %p127 = scmp.eq.s32.totalorder %s21, 3
      %p128 = por %p126, %p127
      %p129 = scmp.ne.s32.totalorder %s118, %s119
      %p130 = scmp.eq.s32.totalorder %s21, 0
      %p131 = por %p129, %p130
      %p132 = scmp.ne.s32.totalorder %s118, %s119
      %p133 = scmp.eq.s32.totalorder %s22, 3
      %p134 = por %p132, %p133
      %p136 = scmp.ne.s32.totalorder %s119, %s135
      %p137 = scmp.eq.s32.totalorder %s22, 0
      %p138 = por %p136, %p137
      %s140 = sadd.s32 %s139, 1
      %p143 = scmp.eq.s32.totalorder %s16, 3
      %p144 = scmp.ne.s32.totalorder %s139, %s141
      %p145 = scmp.eq.s32.totalorder %s16, 0
      %p146 = por %p144, %p145
      %p147 = scmp.ne.s32.totalorder %s139, %s141
      %p148 = scmp.eq.s32.totalorder %s21, 3
      %p149 = por %p147, %p148
      %p150 = scmp.ne.s32.totalorder %s141, %s142
      %p151 = scmp.eq.s32.totalorder %s21, 0
      %p152 = por %p150, %p151
      %p153 = scmp.ne.s32.totalorder %s141, %s142
      %p154 = scmp.eq.s32.totalorder %s22, 3
      %p155 = por %p153, %p154
      %p157 = scmp.ne.s32.totalorder %s142, %s156
      %p158 = scmp.eq.s32.totalorder %s22, 0
      %p159 = por %p157, %p158
      %s161 = sadd.s32 %s160, 1
      %p164 = scmp.eq.s32.totalorder %s16, 3
      %p165 = scmp.ne.s32.totalorder %s160, %s162
      %p166 = scmp.eq.s32.totalorder %s16, 0
      %p167 = por %p165, %p166
      %p168 = scmp.ne.s32.totalorder %s160, %s162
      %p169 = scmp.eq.s32.totalorder %s21, 3
      %p170 = por %p168, %p169
      %p171 = scmp.ne.s32.totalorder %s162, %s163
      %p172 = scmp.eq.s32.totalorder %s21, 0
      %p173 = por %p171, %p172
      %p174 = scmp.ne.s32.totalorder %s162, %s163
      %p175 = scmp.eq.s32.totalorder %s22, 3
      %p176 = por %p174, %p175
      %p178 = scmp.ne.s32.totalorder %s163, %s177
      %p179 = scmp.eq.s32.totalorder %s22, 0
      %p180 = por %p178, %p179
      %s181 = ssub.s32 %s16, %s23
      %p182 = scmp.eq.s32.totalorder %s181, 0
      %s184 = sadd.s32 %s183, 1
      %s185 = scalar_select %p182, %s183, %s184
      %p188 = pneg %p182
      %p189 = scmp.eq.s32.totalorder %s16, 3
      %p190 = por %p188, %p189
      %p191 = scmp.ne.s32.totalorder %s183, %s186
      %p192 = scmp.eq.s32.totalorder %s16, 0
      %p193 = por %p191, %p192
      %p194 = scmp.ne.s32.totalorder %s183, %s186
      %p195 = scmp.eq.s32.totalorder %s21, 3
      %p196 = por %p194, %p195
      %p197 = scmp.ne.s32.totalorder %s186, %s187
      %p198 = scmp.eq.s32.totalorder %s21, 0
      %p199 = por %p197, %p198
      %p200 = scmp.ne.s32.totalorder %s186, %s187
      %p201 = scmp.eq.s32.totalorder %s22, 3
      %p202 = por %p200, %p201
      %p204 = scmp.ne.s32.totalorder %s187, %s203
      %p205 = scmp.eq.s32.totalorder %s22, 0
      %p206 = por %p204, %p205
      %p207 = scmp.le.s32.totalorder 1, %s16
      %p208 = scmp.lt.s32.totalorder %s16, 5
      %p209 = pnand %p207, %p208
      %p210 = pneg %p209
      // Predicated region
      $region9: #{bottleneck_forward.7} parent=5 // pred_check
        _
      $region10: #{bottleneck_forward.7} parent=5 // pred_check_branch
        %212 = sbr.rel (%p209) target = $region12
      $region11: #{bottleneck_forward.7} parent=5 // pred_region
        %s213 = ssub.s32 %s16, 1
        // Predicated region
        $region13: #{bottleneck_forward.7} parent=11 // pred_check
          %p214 = pneg %p63
        $region14: #{bottleneck_forward.7} parent=11 // pred_check_branch
          %216 = sbr.rel (%p214) target = $region16
        $region15: #{bottleneck_forward.7} parent=11 // pred_region
          _
        $region16: #{bottleneck_forward.7} parent=11 // pred_fallthru
          _
        // Predicated region
        $region17: #{bottleneck_forward.7} parent=11 // pred_check
          %p217 = pneg %p84
        $region18: #{bottleneck_forward.7} parent=11 // pred_check_branch
          %219 = sbr.rel (%p217) target = $region20
        $region19: #{bottleneck_forward.7} parent=11 // pred_region
          _
        $region20: #{bottleneck_forward.7} parent=11 // pred_fallthru
          _
        // Predicated region
        $region21: #{bottleneck_forward.7} parent=11 // pred_check
          %p220 = pneg %p105
        $region22: #{bottleneck_forward.7} parent=11 // pred_check_branch
          %222 = sbr.rel (%p220) target = $region24
        $region23: #{bottleneck_forward.7} parent=11 // pred_region
          _
        $region24: #{bottleneck_forward.7} parent=11 // pred_fallthru
          _
        // Predicated region
        $region25: #{bottleneck_forward.7} parent=11 // pred_check
          %p223 = pneg %p152
        $region26: #{bottleneck_forward.7} parent=11 // pred_check_branch
          %225 = sbr.rel (%p223) target = $region28
        $region27: #{bottleneck_forward.7} parent=11 // pred_region
          _
        $region28: #{bottleneck_forward.7} parent=11 // pred_fallthru
          _
        // Predicated region
        $region29: #{bottleneck_forward.7} parent=11 // pred_check
          %p226 = pneg %p173
        $region30: #{bottleneck_forward.7} parent=11 // pred_check_branch
          %228 = sbr.rel (%p226) target = $region32
        $region31: #{bottleneck_forward.7} parent=11 // pred_region
          _
        $region32: #{bottleneck_forward.7} parent=11 // pred_fallthru
          _
      $region12: #{bottleneck_forward.7} parent=5 // pred_fallthru
        _
      %p229 = scmp.lt.s32.totalorder %s16, 4
      // Predicated region
      $region33: #{bottleneck_forward.7} parent=5 // pred_check
        %p230 = pneg %p229
      $region34: #{bottleneck_forward.7} parent=5 // pred_check_branch
        %232 = sbr.rel (%p230) target = $region36
      $region35: #{bottleneck_forward.7} parent=5 // pred_region
        // Predicated region
        $region37: #{bottleneck_forward.7} parent=35 // pred_check
          %p233 = pneg %p36
        $region38: #{bottleneck_forward.7} parent=35 // pred_check_branch
          %235 = sbr.rel (%p233) target = $region40
        $region39: #{bottleneck_forward.7} parent=35 // pred_region
          %s236 = smul.u32 16, %s16
          %p237 = scmp.lt.s32.totalorder %s236, 63
          %s238 = scalar_select %p237, %s236, 63
          %s239 = smul.addr %s238, 4
          %s240 = scalar_lea.vmem %s0, %s239
          %s241 = smul.u32 16, %s16
        $region40: #{bottleneck_forward.7} parent=35 // pred_fallthru
          _
        // Predicated region
        $region41: #{bottleneck_forward.7} parent=35 // pred_check
          %p242 = pneg %p125
        $region42: #{bottleneck_forward.7} parent=35 // pred_check_branch
          %244 = sbr.rel (%p242) target = $region44
        $region43: #{bottleneck_forward.7} parent=35 // pred_region
          %s245 = smul.u32 16, %s16
          %p246 = scmp.lt.s32.totalorder %s245, 63
          %s247 = scalar_select %p246, %s245, 63
          %s248 = smul.addr %s247, 8
          %s249 = scalar_lea.vmem %s4, %s248
          %s250 = smul.u32 16, %s16
        $region44: #{bottleneck_forward.7} parent=35 // pred_fallthru
          _
      $region36: #{bottleneck_forward.7} parent=5 // pred_fallthru
        _
      %p251 = scmp.le.s32.totalorder 1, %s16
      %p252 = scmp.lt.s32.totalorder %s16, 5
      %p253 = pnand %p251, %p252
      %p254 = pneg %p253
      // Predicated region
      $region45: #{bottleneck_forward.7} parent=5 // pred_check
        _
      $region46: #{bottleneck_forward.7} parent=5 // pred_check_branch
        %256 = sbr.rel (%p253) target = $region48
      $region47: #{bottleneck_forward.7} parent=5 // pred_region
        %s257 = ssub.s32 %s16, 1
        %s258 = smul.u32 16, %s21
        %p259 = scmp.lt.s32.totalorder %s258, 63
        %s260 = scalar_select %p259, %s258, 63
        %s261 = smul.addr %s260, 4
        %s262 = scalar_lea.vmem %s0, %s261
        %p263 = pneg %p42
        %p264 = pneg %p39
        %p265 = pneg %p63
        %p266 = pneg %p60
        %p267 = pneg %p84
        %p268 = pneg %p81
        %p269 = pneg %p105
        %p270 = pneg %p102
        %s271 = smul.u32 16, %s21
        %p272 = scmp.lt.s32.totalorder %s271, 63
        %s273 = scalar_select %p272, %s271, 63
        %s274 = smul.addr %s273, 8
        %s275 = scalar_lea.vmem %s4, %s274
        %p276 = pneg %p131
        %p277 = pneg %p128
        %p278 = pneg %p152
        %p279 = pneg %p149
        %p280 = pneg %p173
        %p281 = pneg %p170
        %p282 = pneg %p199
        %p283 = pneg %p196
        %s284 = sand.u32 %s186, 1
        %s285 = scalar_lea.sflag [#allocation3], %s284
        %s286 = sand.u32 %s186, 1
        %s287 = smul.addr %s286, 128
        %s288 = scalar_lea.vmem [#allocation2], %s287
        %s289 = smul.u32 16, %s21
        %p290 = scmp.lt.s32.totalorder %s289, 63
        %s291 = scalar_select %p290, %s289, 63
        %s292 = smul.addr %s291, 4
        %s293 = scalar_lea.vmem %s0, %s292
        %s294 = smul.u32 16, %s21
        %s295 = smul.u32 16, %s21
        %p296 = scmp.lt.s32.totalorder %s295, 63
        %s297 = scalar_select %p296, %s295, 63
        %s298 = smul.addr %s297, 8
        %s299 = scalar_lea.vmem %s4, %s298
        %s300 = smul.u32 16, %s21
        %s301 = smul.u32 16, %s21
        %v303 = vld [vmem:[%s293] sm:$0xf]
        %v304 = vld [vmem:[%s293 + $0x4] sm:$0xf]
        %v305 = vld [vmem:[%s293 + $0x8] sm:$0xf]
        %v306 = vld [vmem:[%s293 + $0xc] sm:$0xf]
        %v307 = vld [vmem:[%s293 + $0x10] sm:$0xf]
        %v308 = vld [vmem:[%s293 + $0x14] sm:$0xf]
        %v309 = vld [vmem:[%s293 + $0x18] sm:$0xf]
        %v310 = vld [vmem:[%s293 + $0x1c] sm:$0xf]
        %v311 = vld [vmem:[%s293 + $0x20] sm:$0xf]
        %v312 = vld [vmem:[%s293 + $0x24] sm:$0xf]
        %v313 = vld [vmem:[%s293 + $0x28] sm:$0xf]
        %v314 = vld [vmem:[%s293 + $0x2c] sm:$0xf]
        %v315 = vld [vmem:[%s293 + $0x30] sm:$0xf]
        %v316 = vld [vmem:[%s293 + $0x34] sm:$0xf]
        %v317 = vld [vmem:[%s293 + $0x38] sm:$0xf]
        %v318 = vld [vmem:[%s293 + $0x3c] sm:$0xf]
        %v319 = vunpack.c.l.bf16 %v303
        %v320 = vunpack.c.l.bf16 %v304
        %v321 = vunpack.c.l.bf16 %v305
        %v322 = vunpack.c.l.bf16 %v306
        %v323 = vunpack.c.l.bf16 %v307
        %v324 = vunpack.c.l.bf16 %v308
        %v325 = vunpack.c.l.bf16 %v309
        %v326 = vunpack.c.l.bf16 %v310
        %v327 = vunpack.c.l.bf16 %v311
        %v328 = vunpack.c.l.bf16 %v312
        %v329 = vunpack.c.l.bf16 %v313
        %v330 = vunpack.c.l.bf16 %v314
        %v331 = vunpack.c.l.bf16 %v315
        %v332 = vunpack.c.l.bf16 %v316
        %v333 = vunpack.c.l.bf16 %v317
        %v334 = vunpack.c.l.bf16 %v318
        %v335 = vld [vmem:[%s1] sm:$0x1]
        %v337 = vlaneseq
        %v338 = vshrl.u32 %v337, 7
        %v339 = vsub.s32 0, %v338
        %v340 = vrot.slane %v335, %v339
        %v342 = vmul.f32 %v319, %v340
        %v343 = vmul.f32 %v320, %v340
        %v344 = vmul.f32 %v321, %v340
        %v345 = vmul.f32 %v322, %v340
        %v346 = vmul.f32 %v323, %v340
        %v347 = vmul.f32 %v324, %v340
        %v348 = vmul.f32 %v325, %v340
        %v349 = vmul.f32 %v326, %v340
        %v350 = vmul.f32 %v327, %v340
        %v351 = vmul.f32 %v328, %v340
        %v352 = vmul.f32 %v329, %v340
        %v353 = vmul.f32 %v330, %v340
        %v354 = vmul.f32 %v331, %v340
        %v355 = vmul.f32 %v332, %v340
        %v356 = vmul.f32 %v333, %v340
        %v357 = vmul.f32 %v334, %v340
        %v358 = vld [vmem:[%s2] sm:$0x1]
        %v360 = vlaneseq
        %v361 = vshrl.u32 %v360, 7
        %v362 = vsub.s32 0, %v361
        %v363 = vrot.slane %v358, %v362
        %v365 = vadd.f32 %v342, %v363
        %v366 = vadd.f32 %v343, %v363
        %v367 = vadd.f32 %v344, %v363
        %v368 = vadd.f32 %v345, %v363
        %v369 = vadd.f32 %v346, %v363
        %v370 = vadd.f32 %v347, %v363
        %v371 = vadd.f32 %v348, %v363
        %v372 = vadd.f32 %v349, %v363
        %v373 = vadd.f32 %v350, %v363
        %v374 = vadd.f32 %v351, %v363
        %v375 = vadd.f32 %v352, %v363
        %v376 = vadd.f32 %v353, %v363
        %v377 = vadd.f32 %v354, %v363
        %v378 = vadd.f32 %v355, %v363
        %v379 = vadd.f32 %v356, %v363
        %v380 = vadd.f32 %v357, %v363
        %v381 = vmax.f32 %v365, 0.0
        %v382 = vmax.f32 %v366, 0.0
        %v383 = vmax.f32 %v367, 0.0
        %v384 = vmax.f32 %v368, 0.0
        %v385 = vmax.f32 %v369, 0.0
        %v386 = vmax.f32 %v370, 0.0
        %v387 = vmax.f32 %v371, 0.0
        %v388 = vmax.f32 %v372, 0.0
        %v389 = vmax.f32 %v373, 0.0
        %v390 = vmax.f32 %v374, 0.0
        %v391 = vmax.f32 %v375, 0.0
        %v392 = vmax.f32 %v376, 0.0
        %v393 = vmax.f32 %v377, 0.0
        %v394 = vmax.f32 %v378, 0.0
        %v395 = vmax.f32 %v379, 0.0
        %v396 = vmax.f32 %v380, 0.0
        %v397 = vpack.c.bf16 %v382, %v381
        %v398 = vpack.c.bf16 %v384, %v383
        %v399 = vpack.c.bf16 %v386, %v385
        %v400 = vpack.c.bf16 %v388, %v387
        %v401 = vpack.c.bf16 %v390, %v389
        %v402 = vpack.c.bf16 %v392, %v391
        %v403 = vpack.c.bf16 %v394, %v393
        %v404 = vpack.c.bf16 %v396, %v395
        %v405 = vld [vmem:[%s3] sm:$0xf]
        %v406 = vld [vmem:[%s3 + $0x4] sm:$0xf]
        %v407 = vld [vmem:[%s299] sm:$0xff]
        %v408 = vld [vmem:[%s299 + $0x8] sm:$0xff]
        %v409 = vld [vmem:[%s299 + $0x10] sm:$0xff]
        %v410 = vld [vmem:[%s299 + $0x18] sm:$0xff]
        %v411 = vld [vmem:[%s299 + $0x20] sm:$0xff]
        %v412 = vld [vmem:[%s299 + $0x28] sm:$0xff]
        %v413 = vld [vmem:[%s299 + $0x30] sm:$0xff]
        %v414 = vld [vmem:[%s299 + $0x38] sm:$0xff]
        %v415 = vld [vmem:[%s299 + $0x40] sm:$0xff]
        %v416 = vld [vmem:[%s299 + $0x48] sm:$0xff]
        %v417 = vld [vmem:[%s299 + $0x50] sm:$0xff]
        %v418 = vld [vmem:[%s299 + $0x58] sm:$0xff]
        %v419 = vld [vmem:[%s299 + $0x60] sm:$0xff]
        %v420 = vld [vmem:[%s299 + $0x68] sm:$0xff]
        %v421 = vld [vmem:[%s299 + $0x70] sm:$0xff]
        %v422 = vld [vmem:[%s299 + $0x78] sm:$0xff]
        %v423 = vld [vmem:[%s5] sm:$0x1]
        %v425 = vlaneseq
        %v426 = vshrl.u32 %v425, 7
        %v427 = vsub.s32 0, %v426
        %v428 = vrot.slane %v423, %v427
        %v430 = vmul.f32 %v407, %v428
        %v431 = vmul.f32 %v408, %v428
        %v432 = vmul.f32 %v409, %v428
        %v433 = vmul.f32 %v410, %v428
        %v434 = vmul.f32 %v411, %v428
        %v435 = vmul.f32 %v412, %v428
        %v436 = vmul.f32 %v413, %v428
        %v437 = vmul.f32 %v414, %v428
        %v438 = vmul.f32 %v415, %v428
        %v439 = vmul.f32 %v416, %v428
        %v440 = vmul.f32 %v417, %v428
        %v441 = vmul.f32 %v418, %v428
        %v442 = vmul.f32 %v419, %v428
        %v443 = vmul.f32 %v420, %v428
        %v444 = vmul.f32 %v421, %v428
        %v445 = vmul.f32 %v422, %v428
        %v446 = vld [vmem:[%s6] sm:$0x1]
        %v448 = vlaneseq
        %v449 = vshrl.u32 %v448, 7
        %v450 = vsub.s32 0, %v449
        %v451 = vrot.slane %v446, %v450
        %v453 = vadd.f32 %v430, %v451
        %v454 = vadd.f32 %v431, %v451
        %v455 = vadd.f32 %v432, %v451
        %v456 = vadd.f32 %v433, %v451
        %v457 = vadd.f32 %v434, %v451
        %v458 = vadd.f32 %v435, %v451
        %v459 = vadd.f32 %v436, %v451
        %v460 = vadd.f32 %v437, %v451
        %v461 = vadd.f32 %v438, %v451
        %v462 = vadd.f32 %v439, %v451
        %v463 = vadd.f32 %v440, %v451
        %v464 = vadd.f32 %v441, %v451
        %v465 = vadd.f32 %v442, %v451
        %v466 = vadd.f32 %v443, %v451
        %v467 = vadd.f32 %v444, %v451
        %v468 = vadd.f32 %v445, %v451
        %v469 = vmax.f32 %v453, 0.0
        %v470 = vmax.f32 %v454, 0.0
        %v471 = vmax.f32 %v455, 0.0
        %v472 = vmax.f32 %v456, 0.0
        %v473 = vmax.f32 %v457, 0.0
        %v474 = vmax.f32 %v458, 0.0
        %v475 = vmax.f32 %v459, 0.0
        %v476 = vmax.f32 %v460, 0.0
        %v477 = vmax.f32 %v461, 0.0
        %v478 = vmax.f32 %v462, 0.0
        %v479 = vmax.f32 %v463, 0.0
        %v480 = vmax.f32 %v464, 0.0
        %v481 = vmax.f32 %v465, 0.0
        %v482 = vmax.f32 %v466, 0.0
        %v483 = vmax.f32 %v467, 0.0
        %v484 = vmax.f32 %v468, 0.0
        %v487 = vunpack.c.l.b16 %v405
        %v488 = vunpack.c.l.b16 %v406
        %v489 = vpack.c.b16 %v488, %v487
        %vm491 = vcmask 130048
        %v493 = vsel %vm491, %v397, 0
        %v496 = vsel %vm491, %v398, 0
        %v499 = vsel %vm491, %v399, 0
        %v502 = vsel %vm491, %v400, 0
        %v505 = vsel %vm491, %v401, 0
        %v508 = vsel %vm491, %v402, 0
        %v511 = vsel %vm491, %v403, 0
        %v514 = vsel %vm491, %v404, 0
        %516 = vmatprep.subr.bf16.mxu0 0
        %517 = vmatpush1.bf16.msra.mxu0 %v489
        %518 = vmatprep.subr.bf16.mxu0 0
        %519 = vmatpush1.bf16.msra.mxu0 0
        %520 = vmatprep.subr.bf16.mxu0 0
        %521 = vmatpush1.bf16.msra.mxu0 0
        %522 = vmatprep.subr.bf16.mxu0 0
        %523 = vmatpush1.bf16.msra.mxu0 0
        %524 = vmatprep.subr.bf16.mxu0 0
        %525 = vmatpush1.bf16.msra.mxu0 0
        %526 = vmatprep.subr.bf16.mxu0 0
        %527 = vmatpush1.bf16.msra.mxu0 0
        %528 = vmatprep.subr.bf16.mxu0 0
        %529 = vmatpush1.bf16.msra.mxu0 0
        %530 = vmatprep.subr.bf16.mxu0 0
        %531 = vmatpush1.bf16.msra.mxu0 0
        %532 = vmatprep.subr.bf16.mxu0 0
        %533 = vmatpush1.bf16.msra.mxu0 0
        %534 = vmatprep.subr.bf16.mxu0 0
        %535 = vmatpush1.bf16.msra.mxu0 0
        %536 = vmatprep.subr.bf16.mxu0 0
        %537 = vmatpush1.bf16.msra.mxu0 0
        %538 = vmatprep.subr.bf16.mxu0 0
        %539 = vmatpush1.bf16.msra.mxu0 0
        %540 = vmatprep.subr.bf16.mxu0 0
        %541 = vmatpush1.bf16.msra.mxu0 0
        %542 = vmatprep.subr.bf16.mxu0 0
        %543 = vmatpush1.bf16.msra.mxu0 0
        %544 = vmatprep.subr.bf16.mxu0 0
        %545 = vmatpush1.bf16.msra.mxu0 0
        %546 = vmatprep.subr.bf16.mxu0 0
        %547 = vmatpush1.bf16.msra.mxu0 0
        %548 = vmatprep.mubr.bf16.mxu0 0
        %549 = vmatmul.mubr.bf16.gmra.mrb[0].mxu0 %v493
        %v550 = vpop.f32.mrb[0].mxu0
        %v551 = vadd.f32 %v469, %v550
        %v552 = vpop.f32.mrb[0].mxu0
        %v553 = vpop.f32.mrb[0].mxu0
        %v554 = vadd.f32 %v470, %v553
        %v555 = vpop.f32.mrb[0].mxu0
        %556 = vmatprep.mubr.bf16.mxu0 0
        %557 = vmatmul.mubr.bf16.gmra.mrb[0].mxu0 %v496
        %v558 = vpop.f32.mrb[0].mxu0
        %v559 = vadd.f32 %v471, %v558
        %v560 = vpop.f32.mrb[0].mxu0
        %v561 = vpop.f32.mrb[0].mxu0
        %v562 = vadd.f32 %v472, %v561
        %v563 = vpop.f32.mrb[0].mxu0
        %564 = vmatprep.mubr.bf16.mxu0 0
        %565 = vmatmul.mubr.bf16.gmra.mrb[0].mxu0 %v499
        %v566 = vpop.f32.mrb[0].mxu0
        %v567 = vadd.f32 %v473, %v566
        %v568 = vpop.f32.mrb[0].mxu0
        %v569 = vpop.f32.mrb[0].mxu0
        %v570 = vadd.f32 %v474, %v569
        %v571 = vpop.f32.mrb[0].mxu0
        %572 = vmatprep.mubr.bf16.mxu0 0
        %573 = vmatmul.mubr.bf16.gmra.mrb[0].mxu0 %v502
        %v574 = vpop.f32.mrb[0].mxu0
        %v575 = vadd.f32 %v475, %v574
        %v576 = vpop.f32.mrb[0].mxu0
        %v577 = vpop.f32.mrb[0].mxu0
        %v578 = vadd.f32 %v476, %v577
        %v579 = vpop.f32.mrb[0].mxu0
        %580 = vmatprep.mubr.bf16.mxu0 0
        %581 = vmatmul.mubr.bf16.gmra.mrb[0].mxu0 %v505
        %v582 = vpop.f32.mrb[0].mxu0
        %v583 = vadd.f32 %v477, %v582
        %v584 = vpop.f32.mrb[0].mxu0
        %v585 = vpop.f32.mrb[0].mxu0
        %v586 = vadd.f32 %v478, %v585
        %v587 = vpop.f32.mrb[0].mxu0
        %588 = vmatprep.mubr.bf16.mxu0 0
        %589 = vmatmul.mubr.bf16.gmra.mrb[0].mxu0 %v508
        %v590 = vpop.f32.mrb[0].mxu0
        %v591 = vadd.f32 %v479, %v590
        %v592 = vpop.f32.mrb[0].mxu0
        %v593 = vpop.f32.mrb[0].mxu0
        %v594 = vadd.f32 %v480, %v593
        %v595 = vpop.f32.mrb[0].mxu0
        %596 = vmatprep.mubr.bf16.mxu0 0
        %597 = vmatmul.mubr.bf16.gmra.mrb[0].mxu0 %v511
        %v598 = vpop.f32.mrb[0].mxu0
        %v599 = vadd.f32 %v481, %v598
        %v600 = vpop.f32.mrb[0].mxu0
        %v601 = vpop.f32.mrb[0].mxu0
        %v602 = vadd.f32 %v482, %v601
        %v603 = vpop.f32.mrb[0].mxu0
        %604 = vmatprep.mubr.bf16.mxu0 0
        %605 = vmatmul.mubr.bf16.gmra.mrb[0].mxu0 %v514
        %v606 = vpop.f32.mrb[0].mxu0
        %v607 = vadd.f32 %v483, %v606
        %v608 = vpop.f32.mrb[0].mxu0
        %v609 = vpop.f32.mrb[0].mxu0
        %v610 = vadd.f32 %v484, %v609
        %v611 = vpop.f32.mrb[0].mxu0
        %612 = vdwg.mxu0
        %vm613 = vcmask 523264
        %614 = vst.msk [vmem:[%s288] sm:$0xff] %vm613, %v551
        %615 = vst.msk [vmem:[%s288 + $0x8] sm:$0xff] %vm613, %v554
        %616 = vst.msk [vmem:[%s288 + $0x10] sm:$0xff] %vm613, %v559
        %617 = vst.msk [vmem:[%s288 + $0x18] sm:$0xff] %vm613, %v562
        %618 = vst.msk [vmem:[%s288 + $0x20] sm:$0xff] %vm613, %v567
        %619 = vst.msk [vmem:[%s288 + $0x28] sm:$0xff] %vm613, %v570
        %620 = vst.msk [vmem:[%s288 + $0x30] sm:$0xff] %vm613, %v575
        %621 = vst.msk [vmem:[%s288 + $0x38] sm:$0xff] %vm613, %v578
        %622 = vst.msk [vmem:[%s288 + $0x40] sm:$0xff] %vm613, %v583
        %623 = vst.msk [vmem:[%s288 + $0x48] sm:$0xff] %vm613, %v586
        %624 = vst.msk [vmem:[%s288 + $0x50] sm:$0xff] %vm613, %v591
        %625 = vst.msk [vmem:[%s288 + $0x58] sm:$0xff] %vm613, %v594
        %626 = vst.msk [vmem:[%s288 + $0x60] sm:$0xff] %vm613, %v599
        %627 = vst.msk [vmem:[%s288 + $0x68] sm:$0xff] %vm613, %v602
        %628 = vst.msk [vmem:[%s288 + $0x70] sm:$0xff] %vm613, %v607
        %629 = vst.msk [vmem:[%s288 + $0x78] sm:$0xff] %vm613, %v610
        %s630 = sand.u32 %s186, 1
        %s631 = scalar_lea.sflag [#allocation3], %s630
        %s632 = sand.u32 %s186, 1
        %s633 = smul.addr %s632, 128
        %s634 = scalar_lea.vmem [#allocation2], %s633
        // Predicated region
        $region49: #{bottleneck_forward.7} parent=47 // pred_check
          %p635 = pneg %p196
        $region50: #{bottleneck_forward.7} parent=47 // pred_check_branch
          %637 = sbr.rel (%p635) target = $region52
        $region51: #{bottleneck_forward.7} parent=47 // pred_region
          %s638 = smul.u32 16, %s21
          %s640 = ssub.s32 2048, 2048
          %641 = vsyncadd %s631, %s640
          %s642 = smul.addr %s638, 128
          %s643 = scalar_lea.hbm %s7, %s642
          %s644 = sshll.u32 %s634, 4
          %s645 = int_to_ptr.vmem [resolvable:$true] %s644
          %650 = dma.vmem_to_hbm [thread:$0]  %s645, 2048, %s643, %s631, 128, 128, 8
        $region52: #{bottleneck_forward.7} parent=47 // pred_fallthru
          _
      $region48: #{bottleneck_forward.7} parent=5 // pred_fallthru
        _
      %p651 = scmp.le.s32.totalorder 2, %s16
      // Predicated region
      $region53: #{bottleneck_forward.7} parent=5 // pred_check
        %p652 = pneg %p651
      $region54: #{bottleneck_forward.7} parent=5 // pred_check_branch
        %654 = sbr.rel (%p652) target = $region56
      $region55: #{bottleneck_forward.7} parent=5 // pred_region
        %s655 = ssub.s32 %s16, 2
        // Predicated region
        $region57: #{bottleneck_forward.7} parent=55 // pred_check
          %p656 = pneg %p202
        $region58: #{bottleneck_forward.7} parent=55 // pred_check_branch
          %658 = sbr.rel (%p656) target = $region60
        $region59: #{bottleneck_forward.7} parent=55 // pred_region
          %s659 = sand.u32 %s187, 1
          %s660 = scalar_lea.sflag [#allocation3], %s659
          %s661 = sand.u32 %s187, 1
          %s662 = smul.addr %s661, 128
          %s663 = scalar_lea.vmem [#allocation2], %s662
          %664 = dma.done %s660, 2048
        $region60: #{bottleneck_forward.7} parent=55 // pred_fallthru
          _
      $region56: #{bottleneck_forward.7} parent=5 // pred_fallthru
        _
    $region6: #{bottleneck_forward.7} parent=1 // loop_footer
      %s20 = sadd.s32 1, %s16
    $region7: #{bottleneck_forward.7} parent=1 // loop_footer_branch
      %15 = sbr.rel target = $region3
    $region8: #{bottleneck_forward.7} parent=1 // loop_exit
      _
    %665 = vsyncpa [#allocation3], 1
    %s666 = scalar_lea.sflag [#allocation3], 1
    %667 = vsyncpa %s666, 1

// kernel: bottleneck_forward.5
$region0: #{bottleneck_forward.5}
  #allocation0 [shape = 'u32[]', space=smem, size = 0x4, offset = 0x4, fixed_abs, tag = 'smem constant byte address 0x4 - core index']
  #allocation1 [shape = 'u32[144,128]{1,0:T(1,128)}', space=vmem, size = 0x12000, scoped, tag = 'internal scratch']
  %s0 = inlined_call_operand.vmem [shape: f32[512,64], index: 0, kind: input, shape index: {}]
  %s1 = inlined_call_operand.vmem [shape: f32[1,64], index: 1, kind: input, shape index: {}]
  %s2 = inlined_call_operand.vmem [shape: f32[1,64], index: 2, kind: input, shape index: {}]
  %s3 = inlined_call_operand.vmem [shape: bf16[64,16], index: 3, kind: input, shape index: {}]
  %s4 = inlined_call_operand.vmem [shape: bf16[512,16], index: 4, kind: output, shape index: {0}]
  %s5 = inlined_call_operand.vmem [shape: f32[4,1,32], index: 5, kind: output, shape index: {1}]
  %6 = xla_tuple %s4, %s5
  %s7 = sld [smem:[#allocation0]]
  $region57: #{bottleneck_forward.5} parent=0
    _
  %s9 = ssub.s32 1, %s7
  %s10 = scalar_select 0, %s9, %s7
  loop: start=0, step=1, limit=6
  $region2: #{bottleneck_forward.5} parent=0 // loop_pre_header
    _
  $region3: #{bottleneck_forward.5} parent=0 // loop_header
    %s12 = sphi 0, %s16
    %p13 = scmp.ge.s32.totalorder %s12, 6
    %s22 = sphi 0, %s24
    %s25 = sphi 0, %s22
    %s26 = sphi 0, %s25
    %s42 = sphi 0, %s26
    %s46 = sphi 0, %s46
    %s48 = sphi 0, %s46
    %s49 = sphi 0, %s48
    %s63 = sphi 0, %s49
    %s67 = sphi 0, %s67
    %s69 = sphi 0, %s67
    %s70 = sphi 0, %s69
    %s84 = sphi 0, %s70
    %s88 = sphi 0, %s88
    %s90 = sphi 0, %s88
    %s91 = sphi 0, %s90
    %s105 = sphi 0, %s91
    %s111 = sphi 0, %s113
    %s114 = sphi 0, %s111
    %s115 = sphi 0, %s114
    %s131 = sphi 0, %s115
    %s137 = sphi 0, %s139
    %s140 = sphi 0, %s137
    %s141 = sphi 0, %s140
    %s157 = sphi 0, %s141
  $region4: #{bottleneck_forward.5} parent=0 // loop_header_branch
    %15 = sbr.rel (%p13) target = $region8
  $region5: #{bottleneck_forward.5} parent=0 // loop_body
    %s17 = ssub.s32 %s12, 1
    %s18 = ssub.s32 %s12, 2
    %s19 = sadd.s32 %s12, 1
    %s20 = ssub.s32 %s12, %s19
    %p21 = scmp.eq.s32.totalorder %s20, 0
    %s23 = sadd.s32 %s22, 1
    %s24 = scalar_select %p21, %s22, %s23
    %p27 = pneg %p21
    %p28 = scmp.eq.s32.totalorder %s12, 3
    %p29 = por %p27, %p28
    %p30 = scmp.ne.s32.totalorder %s22, %s25
    %p31 = scmp.eq.s32.totalorder %s12, 0
    %p32 = por %p30, %p31
    %p33 = scmp.ne.s32.totalorder %s22, %s25
    %p34 = scmp.eq.s32.totalorder %s17, 3
    %p35 = por %p33, %p34
    %p36 = scmp.ne.s32.totalorder %s25, %s26
    %p37 = scmp.eq.s32.totalorder %s17, 0
    %p38 = por %p36, %p37
    %p39 = scmp.ne.s32.totalorder %s25, %s26
    %p40 = scmp.eq.s32.totalorder %s18, 3
    %p41 = por %p39, %p40
    %p43 = scmp.ne.s32.totalorder %s26, %s42
    %p44 = scmp.eq.s32.totalorder %s18, 0
    %p45 = por %p43, %p44
    %s47 = sadd.s32 %s46, 1
    %p50 = scmp.eq.s32.totalorder %s12, 3
    %p51 = scmp.ne.s32.totalorder %s46, %s48
    %p52 = scmp.eq.s32.totalorder %s12, 0
    %p53 = por %p51, %p52
    %p54 = scmp.ne.s32.totalorder %s46, %s48
    %p55 = scmp.eq.s32.totalorder %s17, 3
    %p56 = por %p54, %p55
    %p57 = scmp.ne.s32.totalorder %s48, %s49
    %p58 = scmp.eq.s32.totalorder %s17, 0
    %p59 = por %p57, %p58
    %p60 = scmp.ne.s32.totalorder %s48, %s49
    %p61 = scmp.eq.s32.totalorder %s18, 3
    %p62 = por %p60, %p61
    %p64 = scmp.ne.s32.totalorder %s49, %s63
    %p65 = scmp.eq.s32.totalorder %s18, 0
    %p66 = por %p64, %p65
    %s68 = sadd.s32 %s67, 1
    %p71 = scmp.eq.s32.totalorder %s12, 3
    %p72 = scmp.ne.s32.totalorder %s67, %s69
    %p73 = scmp.eq.s32.totalorder %s12, 0
    %p74 = por %p72, %p73
    %p75 = scmp.ne.s32.totalorder %s67, %s69
    %p76 = scmp.eq.s32.totalorder %s17, 3
    %p77 = por %p75, %p76
    %p78 = scmp.ne.s32.totalorder %s69, %s70
    %p79 = scmp.eq.s32.totalorder %s17, 0
    %p80 = por %p78, %p79
    %p81 = scmp.ne.s32.totalorder %s69, %s70
    %p82 = scmp.eq.s32.totalorder %s18, 3
    %p83 = por %p81, %p82
    %p85 = scmp.ne.s32.totalorder %s70, %s84
    %p86 = scmp.eq.s32.totalorder %s18, 0
    %p87 = por %p85, %p86
    %s89 = sadd.s32 %s88, 1
    %p92 = scmp.eq.s32.totalorder %s12, 3
    %p93 = scmp.ne.s32.totalorder %s88, %s90
    %p94 = scmp.eq.s32.totalorder %s12, 0
    %p95 = por %p93, %p94
    %p96 = scmp.ne.s32.totalorder %s88, %s90
    %p97 = scmp.eq.s32.totalorder %s17, 3
    %p98 = por %p96, %p97
    %p99 = scmp.ne.s32.totalorder %s90, %s91
    %p100 = scmp.eq.s32.totalorder %s17, 0
    %p101 = por %p99, %p100
    %p102 = scmp.ne.s32.totalorder %s90, %s91
    %p103 = scmp.eq.s32.totalorder %s18, 3
    %p104 = por %p102, %p103
    %p106 = scmp.ne.s32.totalorder %s91, %s105
    %p107 = scmp.eq.s32.totalorder %s18, 0
    %p108 = por %p106, %p107
    %s109 = ssub.s32 %s12, %s19
    %p110 = scmp.eq.s32.totalorder %s109, 0
    %s112 = sadd.s32 %s111, 1
    %s113 = scalar_select %p110, %s111, %s112
    %p116 = pneg %p110
    %p117 = scmp.eq.s32.totalorder %s12, 3
    %p118 = por %p116, %p117
    %p119 = scmp.ne.s32.totalorder %s111, %s114
    %p120 = scmp.eq.s32.totalorder %s12, 0
    %p121 = por %p119, %p120
    %p122 = scmp.ne.s32.totalorder %s111, %s114
    %p123 = scmp.eq.s32.totalorder %s17, 3
    %p124 = por %p122, %p123
    %p125 = scmp.ne.s32.totalorder %s114, %s115
    %p126 = scmp.eq.s32.totalorder %s17, 0
    %p127 = por %p125, %p126
    %p128 = scmp.ne.s32.totalorder %s114, %s115
    %p129 = scmp.eq.s32.totalorder %s18, 3
    %p130 = por %p128, %p129
    %p132 = scmp.ne.s32.totalorder %s115, %s131
    %p133 = scmp.eq.s32.totalorder %s18, 0
    %p134 = por %p132, %p133
    %s135 = ssub.s32 %s12, %s19
    %p136 = scmp.eq.s32.totalorder %s135, 0
    %s138 = sadd.s32 %s137, 1
    %s139 = scalar_select %p136, %s137, %s138
    %p142 = pneg %p136
    %p143 = scmp.eq.s32.totalorder %s12, 3
    %p144 = por %p142, %p143
    %p145 = scmp.ne.s32.totalorder %s137, %s140
    %p146 = scmp.eq.s32.totalorder %s12, 0
    %p147 = por %p145, %p146
    %p148 = scmp.ne.s32.totalorder %s137, %s140
    %p149 = scmp.eq.s32.totalorder %s17, 3
    %p150 = por %p148, %p149
    %p151 = scmp.ne.s32.totalorder %s140, %s141
    %p152 = scmp.eq.s32.totalorder %s17, 0
    %p153 = por %p151, %p152
    %p154 = scmp.ne.s32.totalorder %s140, %s141
    %p155 = scmp.eq.s32.totalorder %s18, 3
    %p156 = por %p154, %p155
    %p158 = scmp.ne.s32.totalorder %s141, %s157
    %p159 = scmp.eq.s32.totalorder %s18, 0
    %p160 = por %p158, %p159
    %p161 = scmp.le.s32.totalorder 1, %s12
    %p162 = scmp.lt.s32.totalorder %s12, 5
    %p163 = pnand %p161, %p162
    %p164 = pneg %p163
    // Predicated region
    $region9: #{bottleneck_forward.5} parent=5 // pred_check
      _
    $region10: #{bottleneck_forward.5} parent=5 // pred_check_branch
      %166 = sbr.rel (%p163) target = $region12
    $region11: #{bottleneck_forward.5} parent=5 // pred_region
      %s167 = ssub.s32 %s12, 1
      // Predicated region
      $region13: #{bottleneck_forward.5} parent=11 // pred_check
        %p168 = pneg %p59
      $region14: #{bottleneck_forward.5} parent=11 // pred_check_branch
        %170 = sbr.rel (%p168) target = $region16
      $region15: #{bottleneck_forward.5} parent=11 // pred_region
        _
      $region16: #{bottleneck_forward.5} parent=11 // pred_fallthru
        _
      // Predicated region
      $region17: #{bottleneck_forward.5} parent=11 // pred_check
        %p171 = pneg %p80
      $region18: #{bottleneck_forward.5} parent=11 // pred_check_branch
        %173 = sbr.rel (%p171) target = $region20
      $region19: #{bottleneck_forward.5} parent=11 // pred_region
        _
      $region20: #{bottleneck_forward.5} parent=11 // pred_fallthru
        _
      // Predicated region
      $region21: #{bottleneck_forward.5} parent=11 // pred_check
        %p174 = pneg %p101
      $region22: #{bottleneck_forward.5} parent=11 // pred_check_branch
        %176 = sbr.rel (%p174) target = $region24
      $region23: #{bottleneck_forward.5} parent=11 // pred_region
        _
      $region24: #{bottleneck_forward.5} parent=11 // pred_fallthru
        _
    $region12: #{bottleneck_forward.5} parent=5 // pred_fallthru
      _
    %p177 = scmp.lt.s32.totalorder %s12, 4
    // Predicated region
    $region25: #{bottleneck_forward.5} parent=5 // pred_check
      %p178 = pneg %p177
    $region26: #{bottleneck_forward.5} parent=5 // pred_check_branch
      %180 = sbr.rel (%p178) target = $region28
    $region27: #{bottleneck_forward.5} parent=5 // pred_region
      // Predicated region
      $region29: #{bottleneck_forward.5} parent=27 // pred_check
        %p181 = pneg %p32
      $region30: #{bottleneck_forward.5} parent=27 // pred_check_branch
        %183 = sbr.rel (%p181) target = $region32
      $region31: #{bottleneck_forward.5} parent=27 // pred_region
        %s184 = smul.u32 16, %s12
        %p185 = scmp.lt.s32.totalorder %s184, 63
        %s186 = scalar_select %p185, %s184, 63
        %s187 = smul.addr %s186, 8
        %s188 = scalar_lea.vmem %s0, %s187
        %s189 = smul.u32 16, %s12
      $region32: #{bottleneck_forward.5} parent=27 // pred_fallthru
        _
    $region28: #{bottleneck_forward.5} parent=5 // pred_fallthru
      _
    %p190 = scmp.le.s32.totalorder 1, %s12
    %p191 = scmp.lt.s32.totalorder %s12, 5
    %p192 = pnand %p190, %p191
    %p193 = pneg %p192
    // Predicated region
    $region33: #{bottleneck_forward.5} parent=5 // pred_check
      _
    $region34: #{bottleneck_forward.5} parent=5 // pred_check_branch
      %195 = sbr.rel (%p192) target = $region36
    $region35: #{bottleneck_forward.5} parent=5 // pred_region
      %s196 = ssub.s32 %s12, 1
      %s197 = smul.u32 16, %s17
      %p198 = scmp.lt.s32.totalorder %s197, 63
      %s199 = scalar_select %p198, %s197, 63
      %s200 = smul.addr %s199, 8
      %s201 = scalar_lea.vmem %s0, %s200
      %p202 = pneg %p38
      %p203 = pneg %p35
      %p204 = pneg %p59
      %p205 = pneg %p56
      %p206 = pneg %p80
      %p207 = pneg %p77
      %p208 = pneg %p101
      %p209 = pneg %p98
      %p210 = pneg %p127
      %p211 = pneg %p124
      %s212 = smul.u32 16, %s17
      %p213 = scmp.lt.s32.totalorder %s212, 63
      %s214 = scalar_select %p213, %s212, 63
      %s215 = smul.addr %s214, 4
      %s216 = scalar_lea.vmem %s4, %s215
      %p217 = pneg %p153
      %p218 = pneg %p150
      %p219 = scmp.lt.s32.totalorder %s17, 3
      %s220 = scalar_select %p219, %s17, 3
      %s221 = scalar_lea.vmem %s5, %s220
      %s222 = smul.u32 16, %s17
      %p223 = scmp.lt.s32.totalorder %s222, 63
      %s224 = scalar_select %p223, %s222, 63
      %s225 = smul.addr %s224, 8
      %s226 = scalar_lea.vmem %s0, %s225
      %s227 = smul.u32 16, %s17
      %s228 = smul.u32 16, %s17
      %p229 = scmp.lt.s32.totalorder %s228, 63
      %s230 = scalar_select %p229, %s228, 63
      %s231 = smul.addr %s230, 4
      %s232 = scalar_lea.vmem %s4, %s231
      %s233 = smul.u32 16, %s17
      %p234 = scmp.lt.s32.totalorder %s17, 3
      %s235 = scalar_select %p234, %s17, 3
      %s236 = scalar_lea.vmem %s5, %s235
      %v238 = vld [vmem:[%s226] sm:$0xff]
      %v239 = vld [vmem:[%s226 + $0x8] sm:$0xff]
      %v240 = vld [vmem:[%s226 + $0x10] sm:$0xff]
      %v241 = vld [vmem:[%s226 + $0x18] sm:$0xff]
      %v242 = vld [vmem:[%s226 + $0x20] sm:$0xff]
      %v243 = vld [vmem:[%s226 + $0x28] sm:$0xff]
      %v244 = vld [vmem:[%s226 + $0x30] sm:$0xff]
      %v245 = vld [vmem:[%s226 + $0x38] sm:$0xff]
      %v246 = vld [vmem:[%s226 + $0x40] sm:$0xff]
      %v247 = vld [vmem:[%s226 + $0x48] sm:$0xff]
      %v248 = vld [vmem:[%s226 + $0x50] sm:$0xff]
      %v249 = vld [vmem:[%s226 + $0x58] sm:$0xff]
      %v250 = vld [vmem:[%s226 + $0x60] sm:$0xff]
      %v251 = vld [vmem:[%s226 + $0x68] sm:$0xff]
      %v252 = vld [vmem:[%s226 + $0x70] sm:$0xff]
      %v253 = vld [vmem:[%s226 + $0x78] sm:$0xff]
      %v254 = vld [vmem:[%s1] sm:$0x1]
      %v256 = vlaneseq
      %v257 = vshrl.u32 %v256, 7
      %v258 = vsub.s32 0, %v257
      %v259 = vrot.slane %v254, %v258
      %v261 = vmul.f32 %v238, %v259
      %v262 = vmul.f32 %v239, %v259
      %v263 = vmul.f32 %v240, %v259
      %v264 = vmul.f32 %v241, %v259
      %v265 = vmul.f32 %v242, %v259
      %v266 = vmul.f32 %v243, %v259
      %v267 = vmul.f32 %v244, %v259
      %v268 = vmul.f32 %v245, %v259
      %v269 = vmul.f32 %v246, %v259
      %v270 = vmul.f32 %v247, %v259
      %v271 = vmul.f32 %v248, %v259
      %v272 = vmul.f32 %v249, %v259
      %v273 = vmul.f32 %v250, %v259
      %v274 = vmul.f32 %v251, %v259
      %v275 = vmul.f32 %v252, %v259
      %v276 = vmul.f32 %v253, %v259
      %v277 = vld [vmem:[%s2] sm:$0x1]
      %v279 = vlaneseq
      %v280 = vshrl.u32 %v279, 7
      %v281 = vsub.s32 0, %v280
      %v282 = vrot.slane %v277, %v281
      %v284 = vadd.f32 %v261, %v282
      %v285 = vadd.f32 %v262, %v282
      %v286 = vadd.f32 %v263, %v282
      %v287 = vadd.f32 %v264, %v282
      %v288 = vadd.f32 %v265, %v282
      %v289 = vadd.f32 %v266, %v282
      %v290 = vadd.f32 %v267, %v282
      %v291 = vadd.f32 %v268, %v282
      %v292 = vadd.f32 %v269, %v282
      %v293 = vadd.f32 %v270, %v282
      %v294 = vadd.f32 %v271, %v282
      %v295 = vadd.f32 %v272, %v282
      %v296 = vadd.f32 %v273, %v282
      %v297 = vadd.f32 %v274, %v282
      %v298 = vadd.f32 %v275, %v282
      %v299 = vadd.f32 %v276, %v282
      %v300 = vmax.f32 %v284, 0.0
      %v301 = vmax.f32 %v285, 0.0
      %v302 = vmax.f32 %v286, 0.0
      %v303 = vmax.f32 %v287, 0.0
      %v304 = vmax.f32 %v288, 0.0
      %v305 = vmax.f32 %v289, 0.0
      %v306 = vmax.f32 %v290, 0.0
      %v307 = vmax.f32 %v291, 0.0
      %v308 = vmax.f32 %v292, 0.0
      %v309 = vmax.f32 %v293, 0.0
      %v310 = vmax.f32 %v294, 0.0
      %v311 = vmax.f32 %v295, 0.0
      %v312 = vmax.f32 %v296, 0.0
      %v313 = vmax.f32 %v297, 0.0
      %v314 = vmax.f32 %v298, 0.0
      %v315 = vmax.f32 %v299, 0.0
      %v316 = vpack.c.bf16 %v301, %v300
      %v317 = vpack.c.bf16 %v303, %v302
      %v318 = vpack.c.bf16 %v305, %v304
      %v319 = vpack.c.bf16 %v307, %v306
      %v320 = vpack.c.bf16 %v309, %v308
      %v321 = vpack.c.bf16 %v311, %v310
      %v322 = vpack.c.bf16 %v313, %v312
      %v323 = vpack.c.bf16 %v315, %v314
      %v324 = vld [vmem:[%s3] sm:$0xf]
      %v325 = vld [vmem:[%s3 + $0x4] sm:$0xf]
      %v326 = vld [vmem:[%s3 + $0x8] sm:$0xf]
      %v327 = vld [vmem:[%s3 + $0xc] sm:$0xf]
      %v328 = vld [vmem:[%s3 + $0x10] sm:$0xf]
      %v329 = vld [vmem:[%s3 + $0x14] sm:$0xf]
      %v330 = vld [vmem:[%s3 + $0x18] sm:$0xf]
      %v331 = vld [vmem:[%s3 + $0x1c] sm:$0xf]
      %v340 = vunpack.c.l.b16 %v324
      %v341 = vunpack.c.l.b16 %v325
      %v342 = vunpack.c.l.b16 %v326
      %v343 = vunpack.c.l.b16 %v327
      %v344 = vunpack.c.l.b16 %v328
      %v345 = vunpack.c.l.b16 %v329
      %v346 = vunpack.c.l.b16 %v330
      %v347 = vunpack.c.l.b16 %v331
      %v348 = vpack.c.b16 %v341, %v340
      %v349 = vpack.c.b16 %v343, %v342
      %v350 = vpack.c.b16 %v345, %v344
      %v351 = vpack.c.b16 %v347, %v346
      %vm356 = vcmask 523264
      %v358 = vsel %vm356, %v316, 0
      %v361 = vsel %vm356, %v317, 0
      %v364 = vsel %vm356, %v318, 0
      %v367 = vsel %vm356, %v319, 0
      %v370 = vsel %vm356, %v320, 0
      %v373 = vsel %vm356, %v321, 0
      %v376 = vsel %vm356, %v322, 0
      %v379 = vsel %vm356, %v323, 0
      %381 = vmatprep.subr.bf16.mxu0 0
      %382 = vmatpush1.bf16.msra.mxu0 %v348
      %383 = vmatprep.subr.bf16.mxu0 0
      %384 = vmatpush1.bf16.msra.mxu0 %v349
      %385 = vmatprep.subr.bf16.mxu0 0
      %386 = vmatpush1.bf16.msra.mxu0 %v350
      %387 = vmatprep.subr.bf16.mxu0 0
      %388 = vmatpush1.bf16.msra.mxu0 %v351
      %389 = vmatprep.subr.bf16.mxu0 0
      %390 = vmatpush1.bf16.msra.mxu0 0
      %391 = vmatprep.subr.bf16.mxu0 0
      %392 = vmatpush1.bf16.msra.mxu0 0
      %393 = vmatprep.subr.bf16.mxu0 0
      %394 = vmatpush1.bf16.msra.mxu0 0
      %395 = vmatprep.subr.bf16.mxu0 0
      %396 = vmatpush1.bf16.msra.mxu0 0
      %397 = vmatprep.subr.bf16.mxu0 0
      %398 = vmatpush1.bf16.msra.mxu0 0
      %399 = vmatprep.subr.bf16.mxu0 0
      %400 = vmatpush1.bf16.msra.mxu0 0
      %401 = vmatprep.subr.bf16.mxu0 0
      %402 = vmatpush1.bf16.msra.mxu0 0
      %403 = vmatprep.subr.bf16.mxu0 0
      %404 = vmatpush1.bf16.msra.mxu0 0
      %405 = vmatprep.subr.bf16.mxu0 0
      %406 = vmatpush1.bf16.msra.mxu0 0
      %407 = vmatprep.subr.bf16.mxu0 0
      %408 = vmatpush1.bf16.msra.mxu0 0
      %409 = vmatprep.subr.bf16.mxu0 0
      %410 = vmatpush1.bf16.msra.mxu0 0
      %411 = vmatprep.subr.bf16.mxu0 0
      %412 = vmatpush1.bf16.msra.mxu0 0
      %413 = vmatprep.mubr.bf16.mxu0 0
      %414 = vmatmul.mubr.bf16.gmra.mrb[0].mxu0 %v358
      %v415 = vpop.f32.mrb[0].mxu0
      %v416 = vadd.f32 0.0, %v415
      %v417 = vpop.f32.mrb[0].mxu0
      %v418 = vpop.f32.mrb[0].mxu0
      %v419 = vadd.f32 0.0, %v418
      %v420 = vpop.f32.mrb[0].mxu0
      %421 = vmatprep.mubr.bf16.mxu0 0
      %422 = vmatmul.mubr.bf16.gmra.mrb[0].mxu0 %v361
      %v423 = vpop.f32.mrb[0].mxu0
      %v424 = vadd.f32 0.0, %v423
      %v425 = vpop.f32.mrb[0].mxu0
      %v426 = vpop.f32.mrb[0].mxu0
      %v427 = vadd.f32 0.0, %v426
      %v428 = vpop.f32.mrb[0].mxu0
      %429 = vmatprep.mubr.bf16.mxu0 0
      %430 = vmatmul.mubr.bf16.gmra.mrb[0].mxu0 %v364
      %v431 = vpop.f32.mrb[0].mxu0
      %v432 = vadd.f32 0.0, %v431
      %v433 = vpop.f32.mrb[0].mxu0
      %v434 = vpop.f32.mrb[0].mxu0
      %v435 = vadd.f32 0.0, %v434
      %v436 = vpop.f32.mrb[0].mxu0
      %437 = vmatprep.mubr.bf16.mxu0 0
      %438 = vmatmul.mubr.bf16.gmra.mrb[0].mxu0 %v367
      %v439 = vpop.f32.mrb[0].mxu0
      %v440 = vadd.f32 0.0, %v439
      %v441 = vpop.f32.mrb[0].mxu0
      %v442 = vpop.f32.mrb[0].mxu0
      %v443 = vadd.f32 0.0, %v442
      %v444 = vpop.f32.mrb[0].mxu0
      %445 = vmatprep.mubr.bf16.mxu0 0
      %446 = vmatmul.mubr.bf16.gmra.mrb[0].mxu0 %v370
      %v447 = vpop.f32.mrb[0].mxu0
      %v448 = vadd.f32 0.0, %v447
      %v449 = vpop.f32.mrb[0].mxu0
      %v450 = vpop.f32.mrb[0].mxu0
      %v451 = vadd.f32 0.0, %v450
      %v452 = vpop.f32.mrb[0].mxu0
      %453 = vmatprep.mubr.bf16.mxu0 0
      %454 = vmatmul.mubr.bf16.gmra.mrb[0].mxu0 %v373
      %v455 = vpop.f32.mrb[0].mxu0
      %v456 = vadd.f32 0.0, %v455
      %v457 = vpop.f32.mrb[0].mxu0
      %v458 = vpop.f32.mrb[0].mxu0
      %v459 = vadd.f32 0.0, %v458
      %v460 = vpop.f32.mrb[0].mxu0
      %461 = vmatprep.mubr.bf16.mxu0 0
      %462 = vmatmul.mubr.bf16.gmra.mrb[0].mxu0 %v376
      %v463 = vpop.f32.mrb[0].mxu0
      %v464 = vadd.f32 0.0, %v463
      %v465 = vpop.f32.mrb[0].mxu0
      %v466 = vpop.f32.mrb[0].mxu0
      %v467 = vadd.f32 0.0, %v466
      %v468 = vpop.f32.mrb[0].mxu0
      %469 = vmatprep.mubr.bf16.mxu0 0
      %470 = vmatmul.mubr.bf16.gmra.mrb[0].mxu0 %v379
      %v471 = vpop.f32.mrb[0].mxu0
      %v472 = vadd.f32 0.0, %v471
      %v473 = vpop.f32.mrb[0].mxu0
      %v474 = vpop.f32.mrb[0].mxu0
      %v475 = vadd.f32 0.0, %v474
      %v476 = vpop.f32.mrb[0].mxu0
      %477 = vdwg.mxu0
      %v478 = vpack.c.bf16 %v419, %v416
      %v479 = vpack.c.bf16 %v427, %v424
      %v480 = vpack.c.bf16 %v435, %v432
      %v481 = vpack.c.bf16 %v443, %v440
      %v482 = vpack.c.bf16 %v451, %v448
      %v483 = vpack.c.bf16 %v459, %v456
      %v484 = vpack.c.bf16 %v467, %v464
      %v485 = vpack.c.bf16 %v475, %v472
      %v494 = vunpack.c.l.b16 %v478
      %v495 = vunpack.c.h.b16 %v478
      %v496 = vunpack.c.l.b16 %v479
      %v497 = vunpack.c.h.b16 %v479
      %v498 = vunpack.c.l.b16 %v480
      %v499 = vunpack.c.h.b16 %v480
      %v500 = vunpack.c.l.b16 %v481
      %v501 = vunpack.c.h.b16 %v481
      %v502 = vunpack.c.l.b16 %v482
      %v503 = vunpack.c.h.b16 %v482
      %v504 = vunpack.c.l.b16 %v483
      %v505 = vunpack.c.h.b16 %v483
      %v506 = vunpack.c.l.b16 %v484
      %v507 = vunpack.c.h.b16 %v484
      %v508 = vunpack.c.l.b16 %v485
      %v509 = vunpack.c.h.b16 %v485
      %v510 = vpack.c.b16 %v494, %v494
      %v511 = vpack.c.b16 %v495, %v495
      %v512 = vpack.c.b16 %v496, %v496
      %v513 = vpack.c.b16 %v497, %v497
      %v514 = vpack.c.b16 %v498, %v498
      %v515 = vpack.c.b16 %v499, %v499
      %v516 = vpack.c.b16 %v500, %v500
      %v517 = vpack.c.b16 %v501, %v501
      %v518 = vpack.c.b16 %v502, %v502
      %v519 = vpack.c.b16 %v503, %v503
      %v520 = vpack.c.b16 %v504, %v504
      %v521 = vpack.c.b16 %v505, %v505
      %v522 = vpack.c.b16 %v506, %v506
      %v523 = vpack.c.b16 %v507, %v507
      %v524 = vpack.c.b16 %v508, %v508
      %v525 = vpack.c.b16 %v509, %v509
      %vm542 = vcmask 125952
      %543 = vst.msk [vmem:[%s232] sm:$0xf] %vm542, %v510
      %544 = vst.msk [vmem:[%s232 + $0x4] sm:$0xf] %vm542, %v511
      %545 = vst.msk [vmem:[%s232 + $0x8] sm:$0xf] %vm542, %v512
      %546 = vst.msk [vmem:[%s232 + $0xc] sm:$0xf] %vm542, %v513
      %547 = vst.msk [vmem:[%s232 + $0x10] sm:$0xf] %vm542, %v514
      %548 = vst.msk [vmem:[%s232 + $0x14] sm:$0xf] %vm542, %v515
      %549 = vst.msk [vmem:[%s232 + $0x18] sm:$0xf] %vm542, %v516
      %550 = vst.msk [vmem:[%s232 + $0x1c] sm:$0xf] %vm542, %v517
      %551 = vst.msk [vmem:[%s232 + $0x20] sm:$0xf] %vm542, %v518
      %552 = vst.msk [vmem:[%s232 + $0x24] sm:$0xf] %vm542, %v519
      %553 = vst.msk [vmem:[%s232 + $0x28] sm:$0xf] %vm542, %v520
      %554 = vst.msk [vmem:[%s232 + $0x2c] sm:$0xf] %vm542, %v521
      %555 = vst.msk [vmem:[%s232 + $0x30] sm:$0xf] %vm542, %v522
      %556 = vst.msk [vmem:[%s232 + $0x34] sm:$0xf] %vm542, %v523
      %557 = vst.msk [vmem:[%s232 + $0x38] sm:$0xf] %vm542, %v524
      %558 = vst.msk [vmem:[%s232 + $0x3c] sm:$0xf] %vm542, %v525
      %vm559 = vcmask 130048
      %v560 = vsel %vm559, %v416, 0.0
      %v561 = vsel %vm559, %v419, 0.0
      %v562 = vadd.f32 %v560, %v561
      %v563 = vsel %vm559, %v424, 0.0
      %v564 = vadd.f32 %v562, %v563
      %v565 = vsel %vm559, %v427, 0.0
      %v566 = vadd.f32 %v564, %v565
      %v567 = vsel %vm559, %v432, 0.0
      %v568 = vadd.f32 %v566, %v567
      %v569 = vsel %vm559, %v435, 0.0
      %v570 = vadd.f32 %v568, %v569
      %v571 = vsel %vm559, %v440, 0.0
      %v572 = vadd.f32 %v570, %v571
      %v573 = vsel %vm559, %v443, 0.0
      %v574 = vadd.f32 %v572, %v573
      %v575 = vsel %vm559, %v448, 0.0
      %v576 = vadd.f32 %v574, %v575
      %v577 = vsel %vm559, %v451, 0.0
      %v578 = vadd.f32 %v576, %v577
      %v579 = vsel %vm559, %v456, 0.0
      %v580 = vadd.f32 %v578, %v579
      %v581 = vsel %vm559, %v459, 0.0
      %v582 = vadd.f32 %v580, %v581
      %v583 = vsel %vm559, %v464, 0.0
      %v584 = vadd.f32 %v582, %v583
      %v585 = vsel %vm559, %v467, 0.0
      %v586 = vadd.f32 %v584, %v585
      %v587 = vsel %vm559, %v472, 0.0
      %v588 = vadd.f32 %v586, %v587
      %v589 = vsel %vm559, %v475, 0.0
      %v590 = vadd.f32 %v588, %v589
      %v591 = vrot.slane %v590, 4
      %v592 = vadd.f32 %v590, %v591
      %v593 = vrot.slane %v592, 2
      %v594 = vadd.f32 %v592, %v593
      %v595 = vrot.slane %v594, 1
      %v596 = vadd.f32 %v594, %v595
      %v597 = vmul.f32 %v596, 0.0078125
      %v598 = vsub.f32 %v416, %v597
      %v599 = vsub.f32 %v419, %v597
      %v600 = vsub.f32 %v424, %v597
      %v601 = vsub.f32 %v427, %v597
      %v602 = vsub.f32 %v432, %v597
      %v603 = vsub.f32 %v435, %v597
      %v604 = vsub.f32 %v440, %v597
      %v605 = vsub.f32 %v443, %v597
      %v606 = vsub.f32 %v448, %v597
      %v607 = vsub.f32 %v451, %v597
      %v608 = vsub.f32 %v456, %v597
      %v609 = vsub.f32 %v459, %v597
      %v610 = vsub.f32 %v464, %v597
      %v611 = vsub.f32 %v467, %v597
      %v612 = vsub.f32 %v472, %v597
      %v613 = vsub.f32 %v475, %v597
      %v614 = vmul.f32 %v598, %v598
      %v615 = vmul.f32 %v599, %v599
      %v616 = vmul.f32 %v600, %v600
      %v617 = vmul.f32 %v601, %v601
      %v618 = vmul.f32 %v602, %v602
      %v619 = vmul.f32 %v603, %v603
      %v620 = vmul.f32 %v604, %v604
      %v621 = vmul.f32 %v605, %v605
      %v622 = vmul.f32 %v606, %v606
      %v623 = vmul.f32 %v607, %v607
      %v624 = vmul.f32 %v608, %v608
      %v625 = vmul.f32 %v609, %v609
      %v626 = vmul.f32 %v610, %v610
      %v627 = vmul.f32 %v611, %v611
      %v628 = vmul.f32 %v612, %v612
      %v629 = vmul.f32 %v613, %v613
      %v630 = vsel %vm559, %v614, 0.0
      %v631 = vsel %vm559, %v615, 0.0
      %v632 = vadd.f32 %v630, %v631
      %v633 = vsel %vm559, %v616, 0.0
      %v634 = vadd.f32 %v632, %v633
      %v635 = vsel %vm559, %v617, 0.0
      %v636 = vadd.f32 %v634, %v635
      %v637 = vsel %vm559, %v618, 0.0
      %v638 = vadd.f32 %v636, %v637
      %v639 = vsel %vm559, %v619, 0.0
      %v640 = vadd.f32 %v638, %v639
      %v641 = vsel %vm559, %v620, 0.0
      %v642 = vadd.f32 %v640, %v641
      %v643 = vsel %vm559, %v621, 0.0
      %v644 = vadd.f32 %v642, %v643
      %v645 = vsel %vm559, %v622, 0.0
      %v646 = vadd.f32 %v644, %v645
      %v647 = vsel %vm559, %v623, 0.0
      %v648 = vadd.f32 %v646, %v647
      %v649 = vsel %vm559, %v624, 0.0
      %v650 = vadd.f32 %v648, %v649
      %v651 = vsel %vm559, %v625, 0.0
      %v652 = vadd.f32 %v650, %v651
      %v653 = vsel %vm559, %v626, 0.0
      %v654 = vadd.f32 %v652, %v653
      %v655 = vsel %vm559, %v627, 0.0
      %v656 = vadd.f32 %v654, %v655
      %v657 = vsel %vm559, %v628, 0.0
      %v658 = vadd.f32 %v656, %v657
      %v659 = vsel %vm559, %v629, 0.0
      %v660 = vadd.f32 %v658, %v659
      %v661 = vrot.slane %v660, 4
      %v662 = vadd.f32 %v660, %v661
      %v663 = vrot.slane %v662, 2
      %v664 = vadd.f32 %v662, %v663
      %v665 = vrot.slane %v664, 1
      %v666 = vadd.f32 %v664, %v665
      %668 = vrot.lane.b32.xlu0 %v666, 16
      %v669 = vpop.permute.xlu0 %668
      %v671 = vsel %vm559, %v596, %v669
      %vm672 = vcmask 253952
      %673 = vst.msk [vmem:[%s236] sm:$0x1] %vm672, %v671
      %s674 = smul.u32 16, %s17
      %p675 = scmp.lt.s32.totalorder %s674, 63
      %s676 = scalar_select %p675, %s674, 63
      %s677 = smul.addr %s676, 4
      %s678 = scalar_lea.vmem %s4, %s677
      %p679 = scmp.lt.s32.totalorder %s17, 3
      %s680 = scalar_select %p679, %s17, 3
      %s681 = scalar_lea.vmem %s5, %s680
      // Predicated region
      $region37: #{bottleneck_forward.5} parent=35 // pred_check
        %p682 = pneg %p124
      $region38: #{bottleneck_forward.5} parent=35 // pred_check_branch
        %684 = sbr.rel (%p682) target = $region40
      $region39: #{bottleneck_forward.5} parent=35 // pred_region
        %s685 = smul.u32 16, %s17
      $region40: #{bottleneck_forward.5} parent=35 // pred_fallthru
        _
      // Predicated region
      $region41: #{bottleneck_forward.5} parent=35 // pred_check
        %p686 = pneg %p150
      $region42: #{bottleneck_forward.5} parent=35 // pred_check_branch
        %688 = sbr.rel (%p686) target = $region44
      $region43: #{bottleneck_forward.5} parent=35 // pred_region
        _
      $region44: #{bottleneck_forward.5} parent=35 // pred_fallthru
        _
    $region36: #{bottleneck_forward.5} parent=5 // pred_fallthru
      _
    %p689 = scmp.le.s32.totalorder 2, %s12
    // Predicated region
    $region45: #{bottleneck_forward.5} parent=5 // pred_check
      %p690 = pneg %p689
    $region46: #{bottleneck_forward.5} parent=5 // pred_check_branch
      %692 = sbr.rel (%p690) target = $region48
    $region47: #{bottleneck_forward.5} parent=5 // pred_region
      %s693 = ssub.s32 %s12, 2
      // Predicated region
      $region49: #{bottleneck_forward.5} parent=47 // pred_check
        %p694 = pneg %p130
      $region50: #{bottleneck_forward.5} parent=47 // pred_check_branch
        %696 = sbr.rel (%p694) target = $region52
      $region51: #{bottleneck_forward.5} parent=47 // pred_region
        %s697 = smul.u32 16, %s18
        %p698 = scmp.lt.s32.totalorder %s697, 63
        %s699 = scalar_select %p698, %s697, 63
        %s700 = smul.addr %s699, 4
        %s701 = scalar_lea.vmem %s4, %s700
      $region52: #{bottleneck_forward.5} parent=47 // pred_fallthru
        _
      // Predicated region
      $region53: #{bottleneck_forward.5} parent=47 // pred_check
        %p702 = pneg %p156
      $region54: #{bottleneck_forward.5} parent=47 // pred_check_branch
        %704 = sbr.rel (%p702) target = $region56
      $region55: #{bottleneck_forward.5} parent=47 // pred_region
        %p705 = scmp.lt.s32.totalorder %s18, 3
        %s706 = scalar_select %p705, %s18, 3
        %s707 = scalar_lea.vmem %s5, %s706
      $region56: #{bottleneck_forward.5} parent=47 // pred_fallthru
        _
    $region48: #{bottleneck_forward.5} parent=5 // pred_fallthru
      _
  $region6: #{bottleneck_forward.5} parent=0 // loop_footer
    %s16 = sadd.s32 1, %s12
  $region7: #{bottleneck_forward.5} parent=0 // loop_footer_branch
    %11 = sbr.rel target = $region3
  $region8: #{bottleneck_forward.5} parent=0 // loop_exit
    _

// kernel: bottleneck_forward.6
$region0: #{bottleneck_forward.6}
  #allocation0 [shape = 'u32[]', space=smem, size = 0x4, offset = 0x4, fixed_abs, tag = 'smem constant byte address 0x4 - core index']
  #allocation1 [shape = 'u32[144,128]{1,0:T(1,128)}', space=vmem, size = 0x12000, scoped, tag = 'internal scratch']
  #allocation2 [shape = 'f32[128,16]{1,0:T(8,128)}', space=vmem, size = 0x10000, scoped, tag = 'scratch operand']
  %s0 = inlined_call_operand.vmem [shape: bf16[512,16], index: 0, kind: input, shape index: {}, may-alias: {0,1,2}]
  %s1 = inlined_call_operand.vmem [shape: bf16[512,16], index: 1, kind: input, shape index: {}, may-alias: {0,1,2}]
  %s2 = inlined_call_operand.vmem [shape: bf16[512,16], index: 2, kind: input, shape index: {}, may-alias: {0,1,2}]
  %s3 = inlined_call_operand.vmem [shape: f32[1,16], index: 3, kind: input, shape index: {}]
  %s4 = inlined_call_operand.vmem [shape: f32[1,16], index: 4, kind: input, shape index: {}]
  %s5 = inlined_call_operand.vmem [shape: bf16[3,48,16], index: 5, kind: input, shape index: {}]
  %s6 = inlined_call_operand.vmem [shape: bf16[512,16], index: 6, kind: output, shape index: {0}]
  %s7 = inlined_call_operand.vmem [shape: f32[4,1,32], index: 7, kind: output, shape index: {1}]
  %8 = xla_tuple %s6, %s7
  %s9 = sld [smem:[#allocation0]]
  $region65: #{bottleneck_forward.6} parent=0
    _
  %s11 = ssub.s32 1, %s9
  %s12 = scalar_select 0, %s11, %s9
  loop: start=0, step=1, limit=6
  $region2: #{bottleneck_forward.6} parent=0 // loop_pre_header
    _
  $region3: #{bottleneck_forward.6} parent=0 // loop_header
    %s14 = sphi 0, %s18
    %p15 = scmp.ge.s32.totalorder %s14, 6
    %s21 = sphi 0, %s33
    %s22 = sphi 0, %s29
    %s23 = sphi 0, %s21
    %s24 = sphi 0, %s22
    %s25 = sphi 0, %s23
    %s26 = sphi 0, %s24
    %s40 = sphi 0, %s42
    %s43 = sphi 0, %s40
    %s44 = sphi 0, %s43
    %s60 = sphi 0, %s44
    %s78 = sphi 0, %s80
    %s81 = sphi 0, %s78
    %s82 = sphi 0, %s81
    %s98 = sphi 0, %s82
    %s116 = sphi 0, %s118
    %s119 = sphi 0, %s116
    %s120 = sphi 0, %s119
    %s136 = sphi 0, %s120
    %s140 = sphi 0, %s140
    %s142 = sphi 0, %s140
    %s143 = sphi 0, %s142
    %s157 = sphi 0, %s143
    %s161 = sphi 0, %s161
    %s163 = sphi 0, %s161
    %s164 = sphi 0, %s163
    %s178 = sphi 0, %s164
    %s182 = sphi 0, %s182
    %s184 = sphi 0, %s182
    %s185 = sphi 0, %s184
    %s199 = sphi 0, %s185
    %s209 = sphi 0, %s211
    %s212 = sphi 0, %s209
    %s213 = sphi 0, %s212
    %s229 = sphi 0, %s213
    %s239 = sphi 0, %s241
    %s242 = sphi 0, %s239
    %s243 = sphi 0, %s242
    %s259 = sphi 0, %s243
  $region4: #{bottleneck_forward.6} parent=0 // loop_header_branch
    %17 = sbr.rel (%p15) target = $region8
  $region5: #{bottleneck_forward.6} parent=0 // loop_body
    %s19 = ssub.s32 %s14, 1
    %s20 = ssub.s32 %s14, 2
    %s27 = sadd.s32 1, %s22
    %p28 = scmp.ge.s32.totalorder %s27, 2
    %s29 = scalar_select %p28, 0, %s27
    %s30 = sadd.s32 1, %s21
    %s31 = scalar_select %p28, %s30, %s21
    %p32 = scmp.ge.s32.totalorder %s31, 2
    %s33 = scalar_select %p32, 0, %s31
    %s34 = smul.u32 %s21, 2
    %s35 = sadd.s32 %s34, %s22
    %s36 = smul.u32 %s33, 2
    %s37 = sadd.s32 %s36, %s29
    %s38 = ssub.s32 %s35, %s37
    %p39 = scmp.eq.s32.totalorder %s38, 0
    %s41 = sadd.s32 %s40, 1
    %s42 = scalar_select %p39, %s40, %s41
    %p45 = pneg %p39
    %p46 = scmp.eq.s32.totalorder %s14, 3
    %p47 = por %p45, %p46
    %p48 = scmp.ne.s32.totalorder %s40, %s43
    %p49 = scmp.eq.s32.totalorder %s14, 0
    %p50 = por %p48, %p49
    %p51 = scmp.ne.s32.totalorder %s40, %s43
    %p52 = scmp.eq.s32.totalorder %s19, 3
    %p53 = por %p51, %p52
    %p54 = scmp.ne.s32.totalorder %s43, %s44
    %p55 = scmp.eq.s32.totalorder %s19, 0
    %p56 = por %p54, %p55
    %p57 = scmp.ne.s32.totalorder %s43, %s44
    %p58 = scmp.eq.s32.totalorder %s20, 3
    %p59 = por %p57, %p58
    %p61 = scmp.ne.s32.totalorder %s44, %s60
    %p62 = scmp.eq.s32.totalorder %s20, 0
    %p63 = por %p61, %p62
    %s64 = smul.u32 %s21, 16
    %s65 = smul.u32 %s22, 8
    %s66 = sadd.s32 %s64, %s65
    %s67 = ssub.s32 %s66, 1
    %p68 = scmp.gt.s32.totalorder %s67, 0
    %s69 = scalar_select %p68, %s67, 0
    %s70 = smul.u32 %s33, 16
    %s71 = smul.u32 %s29, 8
    %s72 = sadd.s32 %s70, %s71
    %s73 = ssub.s32 %s72, 1
    %p74 = scmp.gt.s32.totalorder %s73, 0
    %s75 = scalar_select %p74, %s73, 0
    %s76 = ssub.s32 %s69, %s75
    %p77 = scmp.eq.s32.totalorder %s76, 0
    %s79 = sadd.s32 %s78, 1
    %s80 = scalar_select %p77, %s78, %s79
    %p83 = pneg %p77
    %p84 = scmp.eq.s32.totalorder %s14, 3
    %p85 = por %p83, %p84
    %p86 = scmp.ne.s32.totalorder %s78, %s81
    %p87 = scmp.eq.s32.totalorder %s14, 0
    %p88 = por %p86, %p87
    %p89 = scmp.ne.s32.totalorder %s78, %s81
    %p90 = scmp.eq.s32.totalorder %s19, 3
    %p91 = por %p89, %p90
    %p92 = scmp.ne.s32.totalorder %s81, %s82
    %p93 = scmp.eq.s32.totalorder %s19, 0
    %p94 = por %p92, %p93
    %p95 = scmp.ne.s32.totalorder %s81, %s82
    %p96 = scmp.eq.s32.totalorder %s20, 3
    %p97 = por %p95, %p96
    %p99 = scmp.ne.s32.totalorder %s82, %s98
    %p100 = scmp.eq.s32.totalorder %s20, 0
    %p101 = por %p99, %p100
    %s102 = smul.u32 %s21, 16
    %s103 = smul.u32 %s22, 8
    %s104 = sadd.s32 %s102, %s103
    %s105 = sadd.s32 %s104, 8
    %p106 = scmp.lt.s32.totalorder %s105, 31
    %s107 = scalar_select %p106, %s105, 31
    %s108 = smul.u32 %s33, 16
    %s109 = smul.u32 %s29, 8
    %s110 = sadd.s32 %s108, %s109
    %s111 = sadd.s32 %s110, 8
    %p112 = scmp.lt.s32.totalorder %s111, 31
    %s113 = scalar_select %p112, %s111, 31
    %s114 = ssub.s32 %s107, %s113
    %p115 = scmp.eq.s32.totalorder %s114, 0
    %s117 = sadd.s32 %s116, 1
    %s118 = scalar_select %p115, %s116, %s117
    %p121 = pneg %p115
    %p122 = scmp.eq.s32.totalorder %s14, 3
    %p123 = por %p121, %p122
    %p124 = scmp.ne.s32.totalorder %s116, %s119
    %p125 = scmp.eq.s32.totalorder %s14, 0
    %p126 = por %p124, %p125
    %p127 = scmp.ne.s32.totalorder %s116, %s119
    %p128 = scmp.eq.s32.totalorder %s19, 3
    %p129 = por %p127, %p128
    %p130 = scmp.ne.s32.totalorder %s119, %s120
    %p131 = scmp.eq.s32.totalorder %s19, 0
    %p132 = por %p130, %p131
    %p133 = scmp.ne.s32.totalorder %s119, %s120
    %p134 = scmp.eq.s32.totalorder %s20, 3
    %p135 = por %p133, %p134
    %p137 = scmp.ne.s32.totalorder %s120, %s136
    %p138 = scmp.eq.s32.totalorder %s20, 0
    %p139 = por %p137, %p138
    %s141 = sadd.s32 %s140, 1
    %p144 = scmp.eq.s32.totalorder %s14, 3
    %p145 = scmp.ne.s32.totalorder %s140, %s142
    %p146 = scmp.eq.s32.totalorder %s14, 0
    %p147 = por %p145, %p146
    %p148 = scmp.ne.s32.totalorder %s140, %s142
    %p149 = scmp.eq.s32.totalorder %s19, 3
    %p150 = por %p148, %p149
    %p151 = scmp.ne.s32.totalorder %s142, %s143
    %p152 = scmp.eq.s32.totalorder %s19, 0
    %p153 = por %p151, %p152
    %p154 = scmp.ne.s32.totalorder %s142, %s143
    %p155 = scmp.eq.s32.totalorder %s20, 3
    %p156 = por %p154, %p155
    %p158 = scmp.ne.s32.totalorder %s143, %s157
    %p159 = scmp.eq.s32.totalorder %s20, 0
    %p160 = por %p158, %p159
    %s162 = sadd.s32 %s161, 1
    %p165 = scmp.eq.s32.totalorder %s14, 3
    %p166 = scmp.ne.s32.totalorder %s161, %s163
    %p167 = scmp.eq.s32.totalorder %s14, 0
    %p168 = por %p166, %p167
    %p169 = scmp.ne.s32.totalorder %s161, %s163
    %p170 = scmp.eq.s32.totalorder %s19, 3
    %p171 = por %p169, %p170
    %p172 = scmp.ne.s32.totalorder %s163, %s164
    %p173 = scmp.eq.s32.totalorder %s19, 0
    %p174 = por %p172, %p173
    %p175 = scmp.ne.s32.totalorder %s163, %s164
    %p176 = scmp.eq.s32.totalorder %s20, 3
    %p177 = por %p175, %p176
    %p179 = scmp.ne.s32.totalorder %s164, %s178
    %p180 = scmp.eq.s32.totalorder %s20, 0
    %p181 = por %p179, %p180
    %s183 = sadd.s32 %s182, 1
    %p186 = scmp.eq.s32.totalorder %s14, 3
    %p187 = scmp.ne.s32.totalorder %s182, %s184
    %p188 = scmp.eq.s32.totalorder %s14, 0
    %p189 = por %p187, %p188
    %p190 = scmp.ne.s32.totalorder %s182, %s184
    %p191 = scmp.eq.s32.totalorder %s19, 3
    %p192 = por %p190, %p191
    %p193 = scmp.ne.s32.totalorder %s184, %s185
    %p194 = scmp.eq.s32.totalorder %s19, 0
    %p195 = por %p193, %p194
    %p196 = scmp.ne.s32.totalorder %s184, %s185
    %p197 = scmp.eq.s32.totalorder %s20, 3
    %p198 = por %p196, %p197
    %p200 = scmp.ne.s32.totalorder %s185, %s199
    %p201 = scmp.eq.s32.totalorder %s20, 0
    %p202 = por %p200, %p201
    %s203 = smul.u32 %s21, 2
    %s204 = sadd.s32 %s203, %s22
    %s205 = smul.u32 %s33, 2
    %s206 = sadd.s32 %s205, %s29
    %s207 = ssub.s32 %s204, %s206
    %p208 = scmp.eq.s32.totalorder %s207, 0
    %s210 = sadd.s32 %s209, 1
    %s211 = scalar_select %p208, %s209, %s210
    %p214 = pneg %p208
    %p215 = scmp.eq.s32.totalorder %s14, 3
    %p216 = por %p214, %p215
    %p217 = scmp.ne.s32.totalorder %s209, %s212
    %p218 = scmp.eq.s32.totalorder %s14, 0
    %p219 = por %p217, %p218
    %p220 = scmp.ne.s32.totalorder %s209, %s212
    %p221 = scmp.eq.s32.totalorder %s19, 3
    %p222 = por %p220, %p221
    %p223 = scmp.ne.s32.totalorder %s212, %s213
    %p224 = scmp.eq.s32.totalorder %s19, 0
    %p225 = por %p223, %p224
    %p226 = scmp.ne.s32.totalorder %s212, %s213
    %p227 = scmp.eq.s32.totalorder %s20, 3
    %p228 = por %p226, %p227
    %p230 = scmp.ne.s32.totalorder %s213, %s229
    %p231 = scmp.eq.s32.totalorder %s20, 0
    %p232 = por %p230, %p231
    %s233 = smul.u32 %s21, 2
    %s234 = sadd.s32 %s233, %s22
    %s235 = smul.u32 %s33, 2
    %s236 = sadd.s32 %s235, %s29
    %s237 = ssub.s32 %s234, %s236
    %p238 = scmp.eq.s32.totalorder %s237, 0
    %s240 = sadd.s32 %s239, 1
    %s241 = scalar_select %p238, %s239, %s240
    %p244 = pneg %p238
    %p245 = scmp.eq.s32.totalorder %s14, 3
    %p246 = por %p244, %p245
    %p247 = scmp.ne.s32.totalorder %s239, %s242
    %p248 = scmp.eq.s32.totalorder %s14, 0
    %p249 = por %p247, %p248
    %p250 = scmp.ne.s32.totalorder %s239, %s242
    %p251 = scmp.eq.s32.totalorder %s19, 3
    %p252 = por %p250, %p251
    %p253 = scmp.ne.s32.totalorder %s242, %s243
    %p254 = scmp.eq.s32.totalorder %s19, 0
    %p255 = por %p253, %p254
    %p256 = scmp.ne.s32.totalorder %s242, %s243
    %p257 = scmp.eq.s32.totalorder %s20, 3
    %p258 = por %p256, %p257
    %p260 = scmp.ne.s32.totalorder %s243, %s259
    %p261 = scmp.eq.s32.totalorder %s20, 0
    %p262 = por %p260, %p261
    %p263 = scmp.le.s32.totalorder 1, %s14
    %p264 = scmp.lt.s32.totalorder %s14, 5
    %p265 = pnand %p263, %p264
    %p266 = pneg %p265
    // Predicated region
    $region9: #{bottleneck_forward.6} parent=5 // pred_check
      _
    $region10: #{bottleneck_forward.6} parent=5 // pred_check_branch
      %268 = sbr.rel (%p265) target = $region12
    $region11: #{bottleneck_forward.6} parent=5 // pred_region
      %s269 = ssub.s32 %s14, 1
      // Predicated region
      $region13: #{bottleneck_forward.6} parent=11 // pred_check
        %p270 = pneg %p153
      $region14: #{bottleneck_forward.6} parent=11 // pred_check_branch
        %272 = sbr.rel (%p270) target = $region16
      $region15: #{bottleneck_forward.6} parent=11 // pred_region
        _
      $region16: #{bottleneck_forward.6} parent=11 // pred_fallthru
        _
      // Predicated region
      $region17: #{bottleneck_forward.6} parent=11 // pred_check
        %p273 = pneg %p174
      $region18: #{bottleneck_forward.6} parent=11 // pred_check_branch
        %275 = sbr.rel (%p273) target = $region20
      $region19: #{bottleneck_forward.6} parent=11 // pred_region
        _
      $region20: #{bottleneck_forward.6} parent=11 // pred_fallthru
        _
      // Predicated region
      $region21: #{bottleneck_forward.6} parent=11 // pred_check
        %p276 = pneg %p195
      $region22: #{bottleneck_forward.6} parent=11 // pred_check_branch
        %278 = sbr.rel (%p276) target = $region24
      $region23: #{bottleneck_forward.6} parent=11 // pred_region
        _
      $region24: #{bottleneck_forward.6} parent=11 // pred_fallthru
        _
    $region12: #{bottleneck_forward.6} parent=5 // pred_fallthru
      _
    %p279 = scmp.lt.s32.totalorder %s14, 4
    // Predicated region
    $region25: #{bottleneck_forward.6} parent=5 // pred_check
      %p280 = pneg %p279
    $region26: #{bottleneck_forward.6} parent=5 // pred_check_branch
      %282 = sbr.rel (%p280) target = $region28
    $region27: #{bottleneck_forward.6} parent=5 // pred_region
      // Predicated region
      $region29: #{bottleneck_forward.6} parent=27 // pred_check
        %p283 = pneg %p50
      $region30: #{bottleneck_forward.6} parent=27 // pred_check_branch
        %285 = sbr.rel (%p283) target = $region32
      $region31: #{bottleneck_forward.6} parent=27 // pred_region
        %s286 = smul.u32 %s21, 2
        %s287 = sadd.s32 %s286, %s22
        %s288 = smul.u32 16, %s287
        %p289 = scmp.lt.s32.totalorder %s288, 63
        %s290 = scalar_select %p289, %s288, 63
        %s291 = smul.addr %s290, 4
        %s292 = scalar_lea.vmem %s0, %s291
        %s293 = smul.u32 %s21, 2
        %s294 = sadd.s32 %s293, %s22
        %s295 = smul.u32 16, %s294
      $region32: #{bottleneck_forward.6} parent=27 // pred_fallthru
        _
      // Predicated region
      $region33: #{bottleneck_forward.6} parent=27 // pred_check
        %p296 = pneg %p88
      $region34: #{bottleneck_forward.6} parent=27 // pred_check_branch
        %298 = sbr.rel (%p296) target = $region36
      $region35: #{bottleneck_forward.6} parent=27 // pred_region
        %s299 = smul.u32 %s21, 16
        %s300 = smul.u32 %s22, 8
        %s301 = sadd.s32 %s299, %s300
        %s302 = ssub.s32 %s301, 1
        %p303 = scmp.gt.s32.totalorder %s302, 0
        %s304 = scalar_select %p303, %s302, 0
        %s305 = smul.u32 2, %s304
        %p306 = scmp.lt.s32.totalorder %s305, 63
        %s307 = scalar_select %p306, %s305, 63
        %s308 = smul.addr %s307, 4
        %s309 = scalar_lea.vmem %s1, %s308
        %s310 = smul.u32 %s21, 16
        %s311 = smul.u32 %s22, 8
        %s312 = sadd.s32 %s310, %s311
        %s313 = ssub.s32 %s312, 1
        %p314 = scmp.gt.s32.totalorder %s313, 0
        %s315 = scalar_select %p314, %s313, 0
        %s316 = smul.u32 2, %s315
      $region36: #{bottleneck_forward.6} parent=27 // pred_fallthru
        _
      // Predicated region
      $region37: #{bottleneck_forward.6} parent=27 // pred_check
        %p317 = pneg %p126
      $region38: #{bottleneck_forward.6} parent=27 // pred_check_branch
        %319 = sbr.rel (%p317) target = $region40
      $region39: #{bottleneck_forward.6} parent=27 // pred_region
        %s320 = smul.u32 %s21, 16
        %s321 = smul.u32 %s22, 8
        %s322 = sadd.s32 %s320, %s321
        %s323 = sadd.s32 %s322, 8
        %p324 = scmp.lt.s32.totalorder %s323, 31
        %s325 = scalar_select %p324, %s323, 31
        %s326 = smul.u32 2, %s325
        %p327 = scmp.lt.s32.totalorder %s326, 63
        %s328 = scalar_select %p327, %s326, 63
        %s329 = smul.addr %s328, 4
        %s330 = scalar_lea.vmem %s2, %s329
        %s331 = smul.u32 %s21, 16
        %s332 = smul.u32 %s22, 8
        %s333 = sadd.s32 %s331, %s332
        %s334 = sadd.s32 %s333, 8
        %p335 = scmp.lt.s32.totalorder %s334, 31
        %s336 = scalar_select %p335, %s334, 31
        %s337 = smul.u32 2, %s336
      $region40: #{bottleneck_forward.6} parent=27 // pred_fallthru
        _
    $region28: #{bottleneck_forward.6} parent=5 // pred_fallthru
      _
    %p338 = scmp.le.s32.totalorder 1, %s14
    %p339 = scmp.lt.s32.totalorder %s14, 5
    %p340 = pnand %p338, %p339
    %p341 = pneg %p340
    // Predicated region
    $region41: #{bottleneck_forward.6} parent=5 // pred_check
      _
    $region42: #{bottleneck_forward.6} parent=5 // pred_check_branch
      %343 = sbr.rel (%p340) target = $region44
    $region43: #{bottleneck_forward.6} parent=5 // pred_region
      %s344 = ssub.s32 %s14, 1
      %s345 = smul.u32 %s23, 2
      %s346 = sadd.s32 %s345, %s24
      %s347 = smul.u32 16, %s346
      %p348 = scmp.lt.s32.totalorder %s347, 63
      %s349 = scalar_select %p348, %s347, 63
      %s350 = smul.addr %s349, 4
      %s351 = scalar_lea.vmem %s0, %s350
      %p352 = pneg %p56
      %p353 = pneg %p53
      %s354 = smul.u32 %s23, 16
      %s355 = smul.u32 %s24, 8
      %s356 = sadd.s32 %s354, %s355
      %s357 = ssub.s32 %s356, 1
      %p358 = scmp.gt.s32.totalorder %s357, 0
      %s359 = scalar_select %p358, %s357, 0
      %s360 = smul.u32 2, %s359
      %p361 = scmp.lt.s32.totalorder %s360, 63
      %s362 = scalar_select %p361, %s360, 63
      %s363 = smul.addr %s362, 4
      %s364 = scalar_lea.vmem %s1, %s363
      %p365 = pneg %p94
      %p366 = pneg %p91
      %s367 = smul.u32 %s23, 16
      %s368 = smul.u32 %s24, 8
      %s369 = sadd.s32 %s367, %s368
      %s370 = sadd.s32 %s369, 8
      %p371 = scmp.lt.s32.totalorder %s370, 31
      %s372 = scalar_select %p371, %s370, 31
      %s373 = smul.u32 2, %s372
      %p374 = scmp.lt.s32.totalorder %s373, 63
      %s375 = scalar_select %p374, %s373, 63
      %s376 = smul.addr %s375, 4
      %s377 = scalar_lea.vmem %s2, %s376
      %p378 = pneg %p132
      %p379 = pneg %p129
      %p380 = pneg %p153
      %p381 = pneg %p150
      %p382 = pneg %p174
      %p383 = pneg %p171
      %p384 = pneg %p195
      %p385 = pneg %p192
      %p386 = pneg %p225
      %p387 = pneg %p222
      %s388 = smul.u32 %s23, 2
      %s389 = sadd.s32 %s388, %s24
      %s390 = smul.u32 16, %s389
      %p391 = scmp.lt.s32.totalorder %s390, 63
      %s392 = scalar_select %p391, %s390, 63
      %s393 = smul.addr %s392, 4
      %s394 = scalar_lea.vmem %s6, %s393
      %p395 = pneg %p255
      %p396 = pneg %p252
      %s397 = smul.u32 %s23, 2
      %s398 = sadd.s32 %s397, %s24
      %p399 = scmp.lt.s32.totalorder %s398, 3
      %s400 = scalar_select %p399, %s398, 3
      %s401 = scalar_lea.vmem %s7, %s400
      %s402 = smul.u32 %s23, 2
      %s403 = sadd.s32 %s402, %s24
      %s404 = smul.u32 16, %s403
      %p405 = scmp.lt.s32.totalorder %s404, 63
      %s406 = scalar_select %p405, %s404, 63
      %s407 = smul.addr %s406, 4
      %s408 = scalar_lea.vmem %s0, %s407
      %s409 = smul.u32 %s23, 2
      %s410 = sadd.s32 %s409, %s24
      %s411 = smul.u32 16, %s410
      %s412 = smul.u32 %s23, 16
      %s413 = smul.u32 %s24, 8
      %s414 = sadd.s32 %s412, %s413
      %s415 = ssub.s32 %s414, 1
      %p416 = scmp.gt.s32.totalorder %s415, 0
      %s417 = scalar_select %p416, %s415, 0
      %s418 = smul.u32 2, %s417
      %p419 = scmp.lt.s32.totalorder %s418, 63
      %s420 = scalar_select %p419, %s418, 63
      %s421 = smul.addr %s420, 4
      %s422 = scalar_lea.vmem %s1, %s421
      %s423 = smul.u32 %s23, 16
      %s424 = smul.u32 %s24, 8
      %s425 = sadd.s32 %s423, %s424
      %s426 = ssub.s32 %s425, 1
      %p427 = scmp.gt.s32.totalorder %s426, 0
      %s428 = scalar_select %p427, %s426, 0
      %s429 = smul.u32 2, %s428
      %s430 = smul.u32 %s23, 16
      %s431 = smul.u32 %s24, 8
      %s432 = sadd.s32 %s430, %s431
      %s433 = sadd.s32 %s432, 8
      %p434 = scmp.lt.s32.totalorder %s433, 31
      %s435 = scalar_select %p434, %s433, 31
      %s436 = smul.u32 2, %s435
      %p437 = scmp.lt.s32.totalorder %s436, 63
      %s438 = scalar_select %p437, %s436, 63
      %s439 = smul.addr %s438, 4
      %s440 = scalar_lea.vmem %s2, %s439
      %s441 = smul.u32 %s23, 16
      %s442 = smul.u32 %s24, 8
      %s443 = sadd.s32 %s441, %s442
      %s444 = sadd.s32 %s443, 8
      %p445 = scmp.lt.s32.totalorder %s444, 31
      %s446 = scalar_select %p445, %s444, 31
      %s447 = smul.u32 2, %s446
      %s448 = smul.u32 %s23, 2
      %s449 = sadd.s32 %s448, %s24
      %s450 = smul.u32 16, %s449
      %p451 = scmp.lt.s32.totalorder %s450, 63
      %s452 = scalar_select %p451, %s450, 63
      %s453 = smul.addr %s452, 4
      %s454 = scalar_lea.vmem %s6, %s453
      %s455 = smul.u32 %s23, 2
      %s456 = sadd.s32 %s455, %s24
      %s457 = smul.u32 16, %s456
      %s458 = smul.u32 %s23, 2
      %s459 = sadd.s32 %s458, %s24
      %p460 = scmp.lt.s32.totalorder %s459, 3
      %s461 = scalar_select %p460, %s459, 3
      %s462 = scalar_lea.vmem %s7, %s461
      %s463 = smul.u32 %s23, 2
      %s464 = sadd.s32 %s463, %s24
      %v466 = vld [vmem:[%s3] sm:$0x1]
      %v467 = vld [vmem:[%s4] sm:$0x1]
      %p468 = scmp.gt.s32.totalorder %s24, 0
      %s469 = scalar_select %p468, 1, 0
      %s470 = scvt.s32.f32 %s469
      %p471 = scmp.lt.s32.totalorder %s24, 1
      %s472 = scalar_select %p471, 1, 0
      %s473 = scvt.s32.f32 %s472
      %v474 = vld [vmem:[%s422] sm:$0xf]
      %v475 = vld [vmem:[%s422 + $0x4] sm:$0xf]
      %v476 = vunpack.c.l.bf16 %v474
      %v477 = vunpack.c.l.bf16 %v475
      %v479 = vlaneseq
      %v480 = vshrl.u32 %v479, 7
      %v481 = vsub.s32 0, %v480
      %v482 = vrot.slane %v466, %v481
      %v484 = vmul.f32 %v476, %v482
      %v485 = vmul.f32 %v477, %v482
      %v487 = vlaneseq
      %v488 = vshrl.u32 %v487, 7
      %v489 = vsub.s32 0, %v488
      %v490 = vrot.slane %v467, %v489
      %v492 = vadd.f32 %v484, %v490
      %v493 = vadd.f32 %v485, %v490
      %v494 = vmax.f32 %v492, 0.0
      %v495 = vmax.f32 %v493, 0.0
      %v496 = vstv %s470
      %v497 = vmul.f32 %v494, %v496
      %v498 = vmul.f32 %v495, %v496
      %v499 = vld [vmem:[%s408] sm:$0xf]
      %v500 = vld [vmem:[%s408 + $0x4] sm:$0xf]
      %v501 = vld [vmem:[%s408 + $0x8] sm:$0xf]
      %v502 = vld [vmem:[%s408 + $0xc] sm:$0xf]
      %v503 = vld [vmem:[%s408 + $0x10] sm:$0xf]
      %v504 = vld [vmem:[%s408 + $0x14] sm:$0xf]
      %v505 = vld [vmem:[%s408 + $0x18] sm:$0xf]
      %v506 = vld [vmem:[%s408 + $0x1c] sm:$0xf]
      %v507 = vld [vmem:[%s408 + $0x20] sm:$0xf]
      %v508 = vld [vmem:[%s408 + $0x24] sm:$0xf]
      %v509 = vld [vmem:[%s408 + $0x28] sm:$0xf]
      %v510 = vld [vmem:[%s408 + $0x2c] sm:$0xf]
      %v511 = vld [vmem:[%s408 + $0x30] sm:$0xf]
      %v512 = vld [vmem:[%s408 + $0x34] sm:$0xf]
      %v513 = vld [vmem:[%s408 + $0x38] sm:$0xf]
      %v514 = vld [vmem:[%s408 + $0x3c] sm:$0xf]
      %v515 = vunpack.c.l.bf16 %v499
      %v516 = vunpack.c.l.bf16 %v500
      %v517 = vunpack.c.l.bf16 %v501
      %v518 = vunpack.c.l.bf16 %v502
      %v519 = vunpack.c.l.bf16 %v503
      %v520 = vunpack.c.l.bf16 %v504
      %v521 = vunpack.c.l.bf16 %v505
      %v522 = vunpack.c.l.bf16 %v506
      %v523 = vunpack.c.l.bf16 %v507
      %v524 = vunpack.c.l.bf16 %v508
      %v525 = vunpack.c.l.bf16 %v509
      %v526 = vunpack.c.l.bf16 %v510
      %v527 = vunpack.c.l.bf16 %v511
      %v528 = vunpack.c.l.bf16 %v512
      %v529 = vunpack.c.l.bf16 %v513
      %v530 = vunpack.c.l.bf16 %v514
      %v531 = vmul.f32 %v515, %v482
      %v532 = vmul.f32 %v516, %v482
      %v533 = vmul.f32 %v517, %v482
      %v534 = vmul.f32 %v518, %v482
      %v535 = vmul.f32 %v519, %v482
      %v536 = vmul.f32 %v520, %v482
      %v537 = vmul.f32 %v521, %v482
      %v538 = vmul.f32 %v522, %v482
      %v539 = vmul.f32 %v523, %v482
      %v540 = vmul.f32 %v524, %v482
      %v541 = vmul.f32 %v525, %v482
      %v542 = vmul.f32 %v526, %v482
      %v543 = vmul.f32 %v527, %v482
      %v544 = vmul.f32 %v528, %v482
      %v545 = vmul.f32 %v529, %v482
      %v546 = vmul.f32 %v530, %v482
      %v547 = vadd.f32 %v531, %v490
      %v548 = vadd.f32 %v532, %v490
      %v549 = vadd.f32 %v533, %v490
      %v550 = vadd.f32 %v534, %v490
      %v551 = vadd.f32 %v535, %v490
      %v552 = vadd.f32 %v536, %v490
      %v553 = vadd.f32 %v537, %v490
      %v554 = vadd.f32 %v538, %v490
      %v555 = vadd.f32 %v539, %v490
      %v556 = vadd.f32 %v540, %v490
      %v557 = vadd.f32 %v541, %v490
      %v558 = vadd.f32 %v542, %v490
      %v559 = vadd.f32 %v543, %v490
      %v560 = vadd.f32 %v544, %v490
      %v561 = vadd.f32 %v545, %v490
      %v562 = vadd.f32 %v546, %v490
      %v563 = vmax.f32 %v547, 0.0
      %v564 = vmax.f32 %v548, 0.0
      %v565 = vmax.f32 %v549, 0.0
      %v566 = vmax.f32 %v550, 0.0
      %v567 = vmax.f32 %v551, 0.0
      %v568 = vmax.f32 %v552, 0.0
      %v569 = vmax.f32 %v553, 0.0
      %v570 = vmax.f32 %v554, 0.0
      %v571 = vmax.f32 %v555, 0.0
      %v572 = vmax.f32 %v556, 0.0
      %v573 = vmax.f32 %v557, 0.0
      %v574 = vmax.f32 %v558, 0.0
      %v575 = vmax.f32 %v559, 0.0
      %v576 = vmax.f32 %v560, 0.0
      %v577 = vmax.f32 %v561, 0.0
      %v578 = vmax.f32 %v562, 0.0
      %v579 = vld [vmem:[%s440] sm:$0xf]
      %v580 = vld [vmem:[%s440 + $0x4] sm:$0xf]
      %v581 = vunpack.c.l.bf16 %v579
      %v582 = vunpack.c.l.bf16 %v580
      %v583 = vmul.f32 %v581, %v482
      %v584 = vmul.f32 %v582, %v482
      %v585 = vadd.f32 %v583, %v490
      %v586 = vadd.f32 %v584, %v490
      %v587 = vmax.f32 %v585, 0.0
      %v588 = vmax.f32 %v586, 0.0
      %v589 = vstv %s473
      %v590 = vmul.f32 %v587, %v589
      %v591 = vmul.f32 %v588, %v589
      %vm612 = vcmask 1040384
      %v613 = vrot.slane %v497, 7
      %v614 = vrot.slane %v498, 7
      %v615 = vsel %vm612, %v613, %v614
      %v616 = vrot.slane %v563, 7
      %v617 = vsel %vm612, %v614, %v616
      %v618 = vrot.slane %v564, 7
      %v619 = vsel %vm612, %v616, %v618
      %v620 = vrot.slane %v565, 7
      %v621 = vsel %vm612, %v618, %v620
      %v622 = vrot.slane %v566, 7
      %v623 = vsel %vm612, %v620, %v622
      %v624 = vrot.slane %v567, 7
      %v625 = vsel %vm612, %v622, %v624
      %v626 = vrot.slane %v568, 7
      %v627 = vsel %vm612, %v624, %v626
      %v628 = vrot.slane %v569, 7
      %v629 = vsel %vm612, %v626, %v628
      %v630 = vrot.slane %v570, 7
      %v631 = vsel %vm612, %v628, %v630
      %v632 = vrot.slane %v571, 7
      %v633 = vsel %vm612, %v630, %v632
      %v634 = vrot.slane %v572, 7
      %v635 = vsel %vm612, %v632, %v634
      %v636 = vrot.slane %v573, 7
      %v637 = vsel %vm612, %v634, %v636
      %v638 = vrot.slane %v574, 7
      %v639 = vsel %vm612, %v636, %v638
      %v640 = vrot.slane %v575, 7
      %v641 = vsel %vm612, %v638, %v640
      %v642 = vrot.slane %v576, 7
      %v643 = vsel %vm612, %v640, %v642
      %v644 = vrot.slane %v577, 7
      %v645 = vsel %vm612, %v642, %v644
      %v646 = vrot.slane %v578, 7
      %v647 = vsel %vm612, %v644, %v646
      %v648 = vrot.slane %v590, 7
      %v649 = vsel %vm612, %v646, %v648
      %v650 = vrot.slane %v591, 7
      %v651 = vsel %vm612, %v648, %v650
      %v673 = vsel %vm612, 0.0, %v613
      %v674 = vsel %vm612, %v650, 0.0
      %v675 = vlaneseq
      %v676 = vshrl.u32 %v675, 7
      %v677 = vadd.s32 %v676, 8
      %v678 = vadd.s32 %v676, 16
      %v679 = vadd.s32 %v676, 24
      %v680 = vadd.s32 %v676, 32
      %v681 = vadd.s32 %v676, 40
      %v682 = vadd.s32 %v676, 48
      %v683 = vadd.s32 %v676, 56
      %v684 = vadd.s32 %v676, 64
      %v685 = vadd.s32 %v676, 72
      %v686 = vadd.s32 %v676, 80
      %v687 = vadd.s32 %v676, 88
      %v688 = vadd.s32 %v676, 96
      %v689 = vadd.s32 %v676, 104
      %v690 = vadd.s32 %v676, 112
      %v691 = vadd.s32 %v676, 120
      %v692 = vadd.s32 %v676, 128
      %v693 = vadd.s32 %v676, 136
      %v694 = vadd.s32 %v676, 144
      %v695 = vadd.s32 %v676, 152
      %vm696 = vcmp.lt.s32.totalorder %v676, 0
      %v697 = vsub.s32 0, %v676
      %v698 = vsel %vm696, %v697, %v676
      %v699 = vshrl.u32 %v698, 4
      %v700 = vand.u32 %v698, 15
      %v701 = vsub.s32 0, %v700
      %v702 = vsel %vm696, %v701, %v700
      %vm703 = vcmp.lt.s32.totalorder %v677, 0
      %v704 = vsub.s32 0, %v677
      %v705 = vsel %vm703, %v704, %v677
      %v706 = vshrl.u32 %v705, 4
      %v707 = vand.u32 %v705, 15
      %v708 = vsub.s32 0, %v707
      %v709 = vsel %vm703, %v708, %v707
      %vm710 = vcmp.lt.s32.totalorder %v678, 0
      %v711 = vsub.s32 0, %v678
      %v712 = vsel %vm710, %v711, %v678
      %v713 = vshrl.u32 %v712, 4
      %v714 = vand.u32 %v712, 15
      %v715 = vsub.s32 0, %v714
      %v716 = vsel %vm710, %v715, %v714
      %vm717 = vcmp.lt.s32.totalorder %v679, 0
      %v718 = vsub.s32 0, %v679
      %v719 = vsel %vm717, %v718, %v679
      %v720 = vshrl.u32 %v719, 4
      %v721 = vand.u32 %v719, 15
      %v722 = vsub.s32 0, %v721
      %v723 = vsel %vm717, %v722, %v721
      %vm724 = vcmp.lt.s32.totalorder %v680, 0
      %v725 = vsub.s32 0, %v680
      %v726 = vsel %vm724, %v725, %v680
      %v727 = vshrl.u32 %v726, 4
      %v728 = vand.u32 %v726, 15
      %v729 = vsub.s32 0, %v728
      %v730 = vsel %vm724, %v729, %v728
      %vm731 = vcmp.lt.s32.totalorder %v681, 0
      %v732 = vsub.s32 0, %v681
      %v733 = vsel %vm731, %v732, %v681
      %v734 = vshrl.u32 %v733, 4
      %v735 = vand.u32 %v733, 15
      %v736 = vsub.s32 0, %v735
      %v737 = vsel %vm731, %v736, %v735
      %vm738 = vcmp.lt.s32.totalorder %v682, 0
      %v739 = vsub.s32 0, %v682
      %v740 = vsel %vm738, %v739, %v682
      %v741 = vshrl.u32 %v740, 4
      %v742 = vand.u32 %v740, 15
      %v743 = vsub.s32 0, %v742
      %v744 = vsel %vm738, %v743, %v742
      %vm745 = vcmp.lt.s32.totalorder %v683, 0
      %v746 = vsub.s32 0, %v683
      %v747 = vsel %vm745, %v746, %v683
      %v748 = vshrl.u32 %v747, 4
      %v749 = vand.u32 %v747, 15
      %v750 = vsub.s32 0, %v749
      %v751 = vsel %vm745, %v750, %v749
      %vm752 = vcmp.lt.s32.totalorder %v684, 0
      %v753 = vsub.s32 0, %v684
      %v754 = vsel %vm752, %v753, %v684
      %v755 = vshrl.u32 %v754, 4
      %v756 = vand.u32 %v754, 15
      %v757 = vsub.s32 0, %v756
      %v758 = vsel %vm752, %v757, %v756
      %vm759 = vcmp.lt.s32.totalorder %v685, 0
      %v760 = vsub.s32 0, %v685
      %v761 = vsel %vm759, %v760, %v685
      %v762 = vshrl.u32 %v761, 4
      %v763 = vand.u32 %v761, 15
      %v764 = vsub.s32 0, %v763
      %v765 = vsel %vm759, %v764, %v763
      %vm766 = vcmp.lt.s32.totalorder %v686, 0
      %v767 = vsub.s32 0, %v686
      %v768 = vsel %vm766, %v767, %v686
      %v769 = vshrl.u32 %v768, 4
      %v770 = vand.u32 %v768, 15
      %v771 = vsub.s32 0, %v770
      %v772 = vsel %vm766, %v771, %v770
      %vm773 = vcmp.lt.s32.totalorder %v687, 0
      %v774 = vsub.s32 0, %v687
      %v775 = vsel %vm773, %v774, %v687
      %v776 = vshrl.u32 %v775, 4
      %v777 = vand.u32 %v775, 15
      %v778 = vsub.s32 0, %v777
      %v779 = vsel %vm773, %v778, %v777
      %vm780 = vcmp.lt.s32.totalorder %v688, 0
      %v781 = vsub.s32 0, %v688
      %v782 = vsel %vm780, %v781, %v688
      %v783 = vshrl.u32 %v782, 4
      %v784 = vand.u32 %v782, 15
      %v785 = vsub.s32 0, %v784
      %v786 = vsel %vm780, %v785, %v784
      %vm787 = vcmp.lt.s32.totalorder %v689, 0
      %v788 = vsub.s32 0, %v689
      %v789 = vsel %vm787, %v788, %v689
      %v790 = vshrl.u32 %v789, 4
      %v791 = vand.u32 %v789, 15
      %v792 = vsub.s32 0, %v791
      %v793 = vsel %vm787, %v792, %v791
      %vm794 = vcmp.lt.s32.totalorder %v690, 0
      %v795 = vsub.s32 0, %v690
      %v796 = vsel %vm794, %v795, %v690
      %v797 = vshrl.u32 %v796, 4
      %v798 = vand.u32 %v796, 15
      %v799 = vsub.s32 0, %v798
      %v800 = vsel %vm794, %v799, %v798
      %vm801 = vcmp.lt.s32.totalorder %v691, 0
      %v802 = vsub.s32 0, %v691
      %v803 = vsel %vm801, %v802, %v691
      %v804 = vshrl.u32 %v803, 4
      %v805 = vand.u32 %v803, 15
      %v806 = vsub.s32 0, %v805
      %v807 = vsel %vm801, %v806, %v805
      %vm808 = vcmp.lt.s32.totalorder %v692, 0
      %v809 = vsub.s32 0, %v692
      %v810 = vsel %vm808, %v809, %v692
      %v811 = vshrl.u32 %v810, 4
      %v812 = vand.u32 %v810, 15
      %v813 = vsub.s32 0, %v812
      %v814 = vsel %vm808, %v813, %v812
      %vm815 = vcmp.lt.s32.totalorder %v693, 0
      %v816 = vsub.s32 0, %v693
      %v817 = vsel %vm815, %v816, %v693
      %v818 = vshrl.u32 %v817, 4
      %v819 = vand.u32 %v817, 15
      %v820 = vsub.s32 0, %v819
      %v821 = vsel %vm815, %v820, %v819
      %vm822 = vcmp.lt.s32.totalorder %v694, 0
      %v823 = vsub.s32 0, %v694
      %v824 = vsel %vm822, %v823, %v694
      %v825 = vshrl.u32 %v824, 4
      %v826 = vand.u32 %v824, 15
      %v827 = vsub.s32 0, %v826
      %v828 = vsel %vm822, %v827, %v826
      %vm829 = vcmp.lt.s32.totalorder %v695, 0
      %v830 = vsub.s32 0, %v695
      %v831 = vsel %vm829, %v830, %v695
      %v832 = vshrl.u32 %v831, 4
      %v833 = vand.u32 %v831, 15
      %v834 = vsub.s32 0, %v833
      %v835 = vsel %vm829, %v834, %v833
      %vm836 = vcmp.ne.s32.totalorder %v702, 0
      %vm837 = vcmp.ne.s32.totalorder %v709, 0
      %vm838 = vcmp.ne.s32.totalorder %v716, 0
      %vm839 = vcmp.ne.s32.totalorder %v723, 0
      %vm840 = vcmp.ne.s32.totalorder %v730, 0
      %vm841 = vcmp.ne.s32.totalorder %v737, 0
      %vm842 = vcmp.ne.s32.totalorder %v744, 0
      %vm843 = vcmp.ne.s32.totalorder %v751, 0
      %vm844 = vcmp.ne.s32.totalorder %v758, 0
      %vm845 = vcmp.ne.s32.totalorder %v765, 0
      %vm846 = vcmp.ne.s32.totalorder %v772, 0
      %vm847 = vcmp.ne.s32.totalorder %v779, 0
      %vm848 = vcmp.ne.s32.totalorder %v786, 0
      %vm849 = vcmp.ne.s32.totalorder %v793, 0
      %vm850 = vcmp.ne.s32.totalorder %v800, 0
      %vm851 = vcmp.ne.s32.totalorder %v807, 0
      %vm852 = vcmp.ne.s32.totalorder %v814, 0
      %vm853 = vcmp.ne.s32.totalorder %v821, 0
      %vm854 = vcmp.ne.s32.totalorder %v828, 0
      %vm855 = vcmp.ne.s32.totalorder %v835, 0
      %vm856 = vcmp.lt.s32.totalorder %v702, 0
      %vm857 = vcmp.lt.s32.totalorder %v709, 0
      %vm858 = vcmp.lt.s32.totalorder %v716, 0
      %vm859 = vcmp.lt.s32.totalorder %v723, 0
      %vm860 = vcmp.lt.s32.totalorder %v730, 0
      %vm861 = vcmp.lt.s32.totalorder %v737, 0
      %vm862 = vcmp.lt.s32.totalorder %v744, 0
      %vm863 = vcmp.lt.s32.totalorder %v751, 0
      %vm864 = vcmp.lt.s32.totalorder %v758, 0
      %vm865 = vcmp.lt.s32.totalorder %v765, 0
      %vm866 = vcmp.lt.s32.totalorder %v772, 0
      %vm867 = vcmp.lt.s32.totalorder %v779, 0
      %vm868 = vcmp.lt.s32.totalorder %v786, 0
      %vm869 = vcmp.lt.s32.totalorder %v793, 0
      %vm870 = vcmp.lt.s32.totalorder %v800, 0
      %vm871 = vcmp.lt.s32.totalorder %v807, 0
      %vm872 = vcmp.lt.s32.totalorder %v814, 0
      %vm873 = vcmp.lt.s32.totalorder %v821, 0
      %vm874 = vcmp.lt.s32.totalorder %v828, 0
      %vm875 = vcmp.lt.s32.totalorder %v835, 0
      %vm876 = vmand %vm856, %vm836
      %vm877 = vmand %vm857, %vm837
      %vm878 = vmand %vm858, %vm838
      %vm879 = vmand %vm859, %vm839
      %vm880 = vmand %vm860, %vm840
      %vm881 = vmand %vm861, %vm841
      %vm882 = vmand %vm862, %vm842
      %vm883 = vmand %vm863, %vm843
      %vm884 = vmand %vm864, %vm844
      %vm885 = vmand %vm865, %vm845
      %vm886 = vmand %vm866, %vm846
      %vm887 = vmand %vm867, %vm847
      %vm888 = vmand %vm868, %vm848
      %vm889 = vmand %vm869, %vm849
      %vm890 = vmand %vm870, %vm850
      %vm891 = vmand %vm871, %vm851
      %vm892 = vmand %vm872, %vm852
      %vm893 = vmand %vm873, %vm853
      %vm894 = vmand %vm874, %vm854
      %vm895 = vmand %vm875, %vm855
      %v896 = vadd.s32 %v702, 16
      %v897 = vadd.s32 %v709, 16
      %v898 = vadd.s32 %v716, 16
      %v899 = vadd.s32 %v723, 16
      %v900 = vadd.s32 %v730, 16
      %v901 = vadd.s32 %v737, 16
      %v902 = vadd.s32 %v744, 16
      %v903 = vadd.s32 %v751, 16
      %v904 = vadd.s32 %v758, 16
      %v905 = vadd.s32 %v765, 16
      %v906 = vadd.s32 %v772, 16
      %v907 = vadd.s32 %v779, 16
      %v908 = vadd.s32 %v786, 16
      %v909 = vadd.s32 %v793, 16
      %v910 = vadd.s32 %v800, 16
      %v911 = vadd.s32 %v807, 16
      %v912 = vadd.s32 %v814, 16
      %v913 = vadd.s32 %v821, 16
      %v914 = vadd.s32 %v828, 16
      %v915 = vadd.s32 %v835, 16
      %v916 = vsel %vm876, %v896, %v702
      %v917 = vsel %vm877, %v897, %v709
      %v918 = vsel %vm878, %v898, %v716
      %v919 = vsel %vm879, %v899, %v723
      %v920 = vsel %vm880, %v900, %v730
      %v921 = vsel %vm881, %v901, %v737
      %v922 = vsel %vm882, %v902, %v744
      %v923 = vsel %vm883, %v903, %v751
      %v924 = vsel %vm884, %v904, %v758
      %v925 = vsel %vm885, %v905, %v765
      %v926 = vsel %vm886, %v906, %v772
      %v927 = vsel %vm887, %v907, %v779
      %v928 = vsel %vm888, %v908, %v786
      %v929 = vsel %vm889, %v909, %v793
      %v930 = vsel %vm890, %v910, %v800
      %v931 = vsel %vm891, %v911, %v807
      %v932 = vsel %vm892, %v912, %v814
      %v933 = vsel %vm893, %v913, %v821
      %v934 = vsel %vm894, %v914, %v828
      %v935 = vsel %vm895, %v915, %v835
      %vm936 = vcmp.eq.s32.totalorder %v916, 0
      %vm937 = vcmp.eq.s32.totalorder %v917, 0
      %vm938 = vcmp.eq.s32.totalorder %v918, 0
      %vm939 = vcmp.eq.s32.totalorder %v919, 0
      %vm940 = vcmp.eq.s32.totalorder %v920, 0
      %vm941 = vcmp.eq.s32.totalorder %v921, 0
      %vm942 = vcmp.eq.s32.totalorder %v922, 0
      %vm943 = vcmp.eq.s32.totalorder %v923, 0
      %vm944 = vcmp.eq.s32.totalorder %v924, 0
      %vm945 = vcmp.eq.s32.totalorder %v925, 0
      %vm946 = vcmp.eq.s32.totalorder %v926, 0
      %vm947 = vcmp.eq.s32.totalorder %v927, 0
      %vm948 = vcmp.eq.s32.totalorder %v928, 0
      %vm949 = vcmp.eq.s32.totalorder %v929, 0
      %vm950 = vcmp.eq.s32.totalorder %v930, 0
      %vm951 = vcmp.eq.s32.totalorder %v931, 0
      %vm952 = vcmp.eq.s32.totalorder %v932, 0
      %vm953 = vcmp.eq.s32.totalorder %v933, 0
      %vm954 = vcmp.eq.s32.totalorder %v934, 0
      %vm955 = vcmp.eq.s32.totalorder %v935, 0
      %v956 = vsel %vm936, 0.0, %v673
      %v957 = vsel %vm937, 0.0, %v615
      %v958 = vsel %vm938, 0.0, %v617
      %v959 = vsel %vm939, 0.0, %v619
      %v960 = vsel %vm940, 0.0, %v621
      %v961 = vsel %vm941, 0.0, %v623
      %v962 = vsel %vm942, 0.0, %v625
      %v963 = vsel %vm943, 0.0, %v627
      %v964 = vsel %vm944, 0.0, %v629
      %v965 = vsel %vm945, 0.0, %v631
      %v966 = vsel %vm946, 0.0, %v633
      %v967 = vsel %vm947, 0.0, %v635
      %v968 = vsel %vm948, 0.0, %v637
      %v969 = vsel %vm949, 0.0, %v639
      %v970 = vsel %vm950, 0.0, %v641
      %v971 = vsel %vm951, 0.0, %v643
      %v972 = vsel %vm952, 0.0, %v645
      %v973 = vsel %vm953, 0.0, %v647
      %v974 = vsel %vm954, 0.0, %v649
      %v975 = vsel %vm955, 0.0, %v651
      %vm976 = vcmp.eq.s32.totalorder %v916, 15
      %vm977 = vcmp.eq.s32.totalorder %v917, 15
      %vm978 = vcmp.eq.s32.totalorder %v918, 15
      %vm979 = vcmp.eq.s32.totalorder %v919, 15
      %vm980 = vcmp.eq.s32.totalorder %v920, 15
      %vm981 = vcmp.eq.s32.totalorder %v921, 15
      %vm982 = vcmp.eq.s32.totalorder %v922, 15
      %vm983 = vcmp.eq.s32.totalorder %v923, 15
      %vm984 = vcmp.eq.s32.totalorder %v924, 15
      %vm985 = vcmp.eq.s32.totalorder %v925, 15
      %vm986 = vcmp.eq.s32.totalorder %v926, 15
      %vm987 = vcmp.eq.s32.totalorder %v927, 15
      %vm988 = vcmp.eq.s32.totalorder %v928, 15
      %vm989 = vcmp.eq.s32.totalorder %v929, 15
      %vm990 = vcmp.eq.s32.totalorder %v930, 15
      %vm991 = vcmp.eq.s32.totalorder %v931, 15
      %vm992 = vcmp.eq.s32.totalorder %v932, 15
      %vm993 = vcmp.eq.s32.totalorder %v933, 15
      %vm994 = vcmp.eq.s32.totalorder %v934, 15
      %vm995 = vcmp.eq.s32.totalorder %v935, 15
      %vm998 = vcmask 1045504
      %v999 = vrot.slane %v673, 2
      %v1000 = vrot.slane %v615, 2
      %v1001 = vsel %vm998, %v999, %v1000
      %v1002 = vrot.slane %v617, 2
      %v1003 = vsel %vm998, %v1000, %v1002
      %v1004 = vrot.slane %v619, 2
      %v1005 = vsel %vm998, %v1002, %v1004
      %v1006 = vrot.slane %v621, 2
      %v1007 = vsel %vm998, %v1004, %v1006
      %v1008 = vrot.slane %v623, 2
      %v1009 = vsel %vm998, %v1006, %v1008
      %v1010 = vrot.slane %v625, 2
      %v1011 = vsel %vm998, %v1008, %v1010
      %v1012 = vrot.slane %v627, 2
      %v1013 = vsel %vm998, %v1010, %v1012
      %v1014 = vrot.slane %v629, 2
      %v1015 = vsel %vm998, %v1012, %v1014
      %v1016 = vrot.slane %v631, 2
      %v1017 = vsel %vm998, %v1014, %v1016
      %v1018 = vrot.slane %v633, 2
      %v1019 = vsel %vm998, %v1016, %v1018
      %v1020 = vrot.slane %v635, 2
      %v1021 = vsel %vm998, %v1018, %v1020
      %v1022 = vrot.slane %v637, 2
      %v1023 = vsel %vm998, %v1020, %v1022
      %v1024 = vrot.slane %v639, 2
      %v1025 = vsel %vm998, %v1022, %v1024
      %v1026 = vrot.slane %v641, 2
      %v1027 = vsel %vm998, %v1024, %v1026
      %v1028 = vrot.slane %v643, 2
      %v1029 = vsel %vm998, %v1026, %v1028
      %v1030 = vrot.slane %v645, 2
      %v1031 = vsel %vm998, %v1028, %v1030
      %v1032 = vrot.slane %v647, 2
      %v1033 = vsel %vm998, %v1030, %v1032
      %v1034 = vrot.slane %v649, 2
      %v1035 = vsel %vm998, %v1032, %v1034
      %v1036 = vrot.slane %v651, 2
      %v1037 = vsel %vm998, %v1034, %v1036
      %v1038 = vrot.slane %v674, 2
      %v1039 = vsel %vm998, %v1036, %v1038
      %v1060 = vsel %vm976, 0.0, %v1001
      %v1061 = vsel %vm977, 0.0, %v1003
      %v1062 = vsel %vm978, 0.0, %v1005
      %v1063 = vsel %vm979, 0.0, %v1007
      %v1064 = vsel %vm980, 0.0, %v1009
      %v1065 = vsel %vm981, 0.0, %v1011
      %v1066 = vsel %vm982, 0.0, %v1013
      %v1067 = vsel %vm983, 0.0, %v1015
      %v1068 = vsel %vm984, 0.0, %v1017
      %v1069 = vsel %vm985, 0.0, %v1019
      %v1070 = vsel %vm986, 0.0, %v1021
      %v1071 = vsel %vm987, 0.0, %v1023
      %v1072 = vsel %vm988, 0.0, %v1025
      %v1073 = vsel %vm989, 0.0, %v1027
      %v1074 = vsel %vm990, 0.0, %v1029
      %v1075 = vsel %vm991, 0.0, %v1031
      %v1076 = vsel %vm992, 0.0, %v1033
      %v1077 = vsel %vm993, 0.0, %v1035
      %v1078 = vsel %vm994, 0.0, %v1037
      %v1079 = vsel %vm995, 0.0, %v1039
      %1080 = vrot.lane.b32.xlu0 %v497, 16
      %v1081 = vpop.permute.xlu0 %1080
      %1082 = vrot.lane.b32.xlu0 %v498, 16
      %v1083 = vpop.permute.xlu0 %1082
      %1084 = vrot.lane.b32.xlu0 %v563, 16
      %v1085 = vpop.permute.xlu0 %1084
      %1086 = vrot.lane.b32.xlu0 %v564, 16
      %v1087 = vpop.permute.xlu0 %1086
      %1088 = vrot.lane.b32.xlu0 %v565, 16
      %v1089 = vpop.permute.xlu0 %1088
      %1090 = vrot.lane.b32.xlu0 %v566, 16
      %v1091 = vpop.permute.xlu0 %1090
      %1092 = vrot.lane.b32.xlu0 %v567, 16
      %v1093 = vpop.permute.xlu0 %1092
      %1094 = vrot.lane.b32.xlu0 %v568, 16
      %v1095 = vpop.permute.xlu0 %1094
      %1096 = vrot.lane.b32.xlu0 %v569, 16
      %v1097 = vpop.permute.xlu0 %1096
      %1098 = vrot.lane.b32.xlu0 %v570, 16
      %v1099 = vpop.permute.xlu0 %1098
      %1100 = vrot.lane.b32.xlu0 %v571, 16
      %v1101 = vpop.permute.xlu0 %1100
      %1102 = vrot.lane.b32.xlu0 %v572, 16
      %v1103 = vpop.permute.xlu0 %1102
      %1104 = vrot.lane.b32.xlu0 %v573, 16
      %v1105 = vpop.permute.xlu0 %1104
      %1106 = vrot.lane.b32.xlu0 %v574, 16
      %v1107 = vpop.permute.xlu0 %1106
      %1108 = vrot.lane.b32.xlu0 %v575, 16
      %v1109 = vpop.permute.xlu0 %1108
      %1110 = vrot.lane.b32.xlu0 %v576, 16
      %v1111 = vpop.permute.xlu0 %1110
      %1112 = vrot.lane.b32.xlu0 %v577, 16
      %v1113 = vpop.permute.xlu0 %1112
      %1114 = vrot.lane.b32.xlu0 %v578, 16
      %v1115 = vpop.permute.xlu0 %1114
      %1116 = vrot.lane.b32.xlu0 %v590, 16
      %v1117 = vpop.permute.xlu0 %1116
      %1118 = vrot.lane.b32.xlu0 %v591, 16
      %v1119 = vpop.permute.xlu0 %1118
      %1160 = vrot.lane.b32.xlu0 %v1060, 32
      %v1161 = vpop.permute.xlu0 %1160
      %1162 = vrot.lane.b32.xlu0 %v1061, 32
      %v1163 = vpop.permute.xlu0 %1162
      %1164 = vrot.lane.b32.xlu0 %v1062, 32
      %v1165 = vpop.permute.xlu0 %1164
      %1166 = vrot.lane.b32.xlu0 %v1063, 32
      %v1167 = vpop.permute.xlu0 %1166
      %1168 = vrot.lane.b32.xlu0 %v1064, 32
      %v1169 = vpop.permute.xlu0 %1168
      %1170 = vrot.lane.b32.xlu0 %v1065, 32
      %v1171 = vpop.permute.xlu0 %1170
      %1172 = vrot.lane.b32.xlu0 %v1066, 32
      %v1173 = vpop.permute.xlu0 %1172
      %1174 = vrot.lane.b32.xlu0 %v1067, 32
      %v1175 = vpop.permute.xlu0 %1174
      %1176 = vrot.lane.b32.xlu0 %v1068, 32
      %v1177 = vpop.permute.xlu0 %1176
      %1178 = vrot.lane.b32.xlu0 %v1069, 32
      %v1179 = vpop.permute.xlu0 %1178
      %1180 = vrot.lane.b32.xlu0 %v1070, 32
      %v1181 = vpop.permute.xlu0 %1180
      %1182 = vrot.lane.b32.xlu0 %v1071, 32
      %v1183 = vpop.permute.xlu0 %1182
      %1184 = vrot.lane.b32.xlu0 %v1072, 32
      %v1185 = vpop.permute.xlu0 %1184
      %1186 = vrot.lane.b32.xlu0 %v1073, 32
      %v1187 = vpop.permute.xlu0 %1186
      %1188 = vrot.lane.b32.xlu0 %v1074, 32
      %v1189 = vpop.permute.xlu0 %1188
      %1190 = vrot.lane.b32.xlu0 %v1075, 32
      %v1191 = vpop.permute.xlu0 %1190
      %1192 = vrot.lane.b32.xlu0 %v1076, 32
      %v1193 = vpop.permute.xlu0 %1192
      %1194 = vrot.lane.b32.xlu0 %v1077, 32
      %v1195 = vpop.permute.xlu0 %1194
      %1196 = vrot.lane.b32.xlu0 %v1078, 32
      %v1197 = vpop.permute.xlu0 %1196
      %1198 = vrot.lane.b32.xlu0 %v1079, 32
      %v1199 = vpop.permute.xlu0 %1198
      %vm1220 = vcmask 130048
      %v1221 = vsel %vm1220, %v956, %v1081
      %v1222 = vsel %vm1220, %v957, %v1083
      %v1223 = vsel %vm1220, %v958, %v1085
      %v1224 = vsel %vm1220, %v959, %v1087
      %v1225 = vsel %vm1220, %v960, %v1089
      %v1226 = vsel %vm1220, %v961, %v1091
      %v1227 = vsel %vm1220, %v962, %v1093
      %v1228 = vsel %vm1220, %v963, %v1095
      %v1229 = vsel %vm1220, %v964, %v1097
      %v1230 = vsel %vm1220, %v965, %v1099
      %v1231 = vsel %vm1220, %v966, %v1101
      %v1232 = vsel %vm1220, %v967, %v1103
      %v1233 = vsel %vm1220, %v968, %v1105
      %v1234 = vsel %vm1220, %v969, %v1107
      %v1235 = vsel %vm1220, %v970, %v1109
      %v1236 = vsel %vm1220, %v971, %v1111
      %v1237 = vsel %vm1220, %v972, %v1113
      %v1238 = vsel %vm1220, %v973, %v1115
      %v1239 = vsel %vm1220, %v974, %v1117
      %v1240 = vsel %vm1220, %v975, %v1119
      %vm1241 = vcmask 261120
      %v1242 = vsel %vm1241, %v1221, %v1161
      %v1243 = vsel %vm1241, %v1222, %v1163
      %v1244 = vsel %vm1241, %v1223, %v1165
      %v1245 = vsel %vm1241, %v1224, %v1167
      %v1246 = vsel %vm1241, %v1225, %v1169
      %v1247 = vsel %vm1241, %v1226, %v1171
      %v1248 = vsel %vm1241, %v1227, %v1173
      %v1249 = vsel %vm1241, %v1228, %v1175
      %v1250 = vsel %vm1241, %v1229, %v1177
      %v1251 = vsel %vm1241, %v1230, %v1179
      %v1252 = vsel %vm1241, %v1231, %v1181
      %v1253 = vsel %vm1241, %v1232, %v1183
      %v1254 = vsel %vm1241, %v1233, %v1185
      %v1255 = vsel %vm1241, %v1234, %v1187
      %v1256 = vsel %vm1241, %v1235, %v1189
      %v1257 = vsel %vm1241, %v1236, %v1191
      %v1258 = vsel %vm1241, %v1237, %v1193
      %v1259 = vsel %vm1241, %v1238, %v1195
      %v1260 = vsel %vm1241, %v1239, %v1197
      %v1261 = vsel %vm1241, %v1240, %v1199
      %v1262 = vpack.c.bf16 %v1243, %v1242
      %v1263 = vpack.c.bf16 %v1245, %v1244
      %v1264 = vpack.c.bf16 %v1247, %v1246
      %v1265 = vpack.c.bf16 %v1249, %v1248
      %v1266 = vpack.c.bf16 %v1251, %v1250
      %v1267 = vpack.c.bf16 %v1253, %v1252
      %v1268 = vpack.c.bf16 %v1255, %v1254
      %v1269 = vpack.c.bf16 %v1257, %v1256
      %v1270 = vpack.c.bf16 %v1259, %v1258
      %v1271 = vpack.c.bf16 %v1261, %v1260
      %1272 = vst.msk [vmem:[#allocation2] sm:$0xff] %vm1220, 0.0
      %1273 = vst.msk [vmem:[#allocation2 + $0x8] sm:$0xff] %vm1220, 0.0
      %1274 = vst.msk [vmem:[#allocation2 + $0x10] sm:$0xff] %vm1220, 0.0
      %1275 = vst.msk [vmem:[#allocation2 + $0x18] sm:$0xff] %vm1220, 0.0
      %1276 = vst.msk [vmem:[#allocation2 + $0x20] sm:$0xff] %vm1220, 0.0
      %1277 = vst.msk [vmem:[#allocation2 + $0x28] sm:$0xff] %vm1220, 0.0
      %1278 = vst.msk [vmem:[#allocation2 + $0x30] sm:$0xff] %vm1220, 0.0
      %1279 = vst.msk [vmem:[#allocation2 + $0x38] sm:$0xff] %vm1220, 0.0
      %1280 = vst.msk [vmem:[#allocation2 + $0x40] sm:$0xff] %vm1220, 0.0
      %1281 = vst.msk [vmem:[#allocation2 + $0x48] sm:$0xff] %vm1220, 0.0
      %1282 = vst.msk [vmem:[#allocation2 + $0x50] sm:$0xff] %vm1220, 0.0
      %1283 = vst.msk [vmem:[#allocation2 + $0x58] sm:$0xff] %vm1220, 0.0
      %1284 = vst.msk [vmem:[#allocation2 + $0x60] sm:$0xff] %vm1220, 0.0
      %1285 = vst.msk [vmem:[#allocation2 + $0x68] sm:$0xff] %vm1220, 0.0
      %1286 = vst.msk [vmem:[#allocation2 + $0x70] sm:$0xff] %vm1220, 0.0
      %1287 = vst.msk [vmem:[#allocation2 + $0x78] sm:$0xff] %vm1220, 0.0
      %v1288 = vld [vmem:[#allocation2] sm:$0xff]
      %v1289 = vld [vmem:[#allocation2 + $0x8] sm:$0xff]
      %v1290 = vld [vmem:[#allocation2 + $0x10] sm:$0xff]
      %v1291 = vld [vmem:[#allocation2 + $0x18] sm:$0xff]
      %v1292 = vld [vmem:[#allocation2 + $0x20] sm:$0xff]
      %v1293 = vld [vmem:[#allocation2 + $0x28] sm:$0xff]
      %v1294 = vld [vmem:[#allocation2 + $0x30] sm:$0xff]
      %v1295 = vld [vmem:[#allocation2 + $0x38] sm:$0xff]
      %v1296 = vld [vmem:[#allocation2 + $0x40] sm:$0xff]
      %v1297 = vld [vmem:[#allocation2 + $0x48] sm:$0xff]
      %v1298 = vld [vmem:[#allocation2 + $0x50] sm:$0xff]
      %v1299 = vld [vmem:[#allocation2 + $0x58] sm:$0xff]
      %v1300 = vld [vmem:[#allocation2 + $0x60] sm:$0xff]
      %v1301 = vld [vmem:[#allocation2 + $0x68] sm:$0xff]
      %v1302 = vld [vmem:[#allocation2 + $0x70] sm:$0xff]
      %v1303 = vld [vmem:[#allocation2 + $0x78] sm:$0xff]
      %v1304 = vld [vmem:[%s5] sm:$0xf]
      %v1305 = vld [vmem:[%s5 + $0x4] sm:$0xf]
      %v1306 = vld [vmem:[%s5 + $0x8] sm:$0xf]
      %v1307 = vld [vmem:[%s5 + $0xc] sm:$0xf]
      %v1308 = vld [vmem:[%s5 + $0x10] sm:$0xf]
      %v1309 = vld [vmem:[%s5 + $0x14] sm:$0xf]
      %v1316 = vunpack.c.l.b16 %v1304
      %v1317 = vunpack.c.l.b16 %v1305
      %v1318 = vunpack.c.l.b16 %v1306
      %v1319 = vunpack.c.l.b16 %v1307
      %v1320 = vunpack.c.l.b16 %v1308
      %v1321 = vunpack.c.l.b16 %v1309
      %v1322 = vpack.c.b16 %v1317, %v1316
      %v1323 = vpack.c.b16 %v1319, %v1318
      %v1324 = vpack.c.b16 %v1321, %v1320
      %vm1328 = vcmask 392192
      %v1330 = vsel %vm1328, %v1262, 0
      %v1333 = vsel %vm1328, %v1263, 0
      %v1336 = vsel %vm1328, %v1264, 0
      %v1339 = vsel %vm1328, %v1265, 0
      %v1342 = vsel %vm1328, %v1266, 0
      %v1345 = vsel %vm1328, %v1267, 0
      %v1348 = vsel %vm1328, %v1268, 0
      %v1351 = vsel %vm1328, %v1269, 0
      %1353 = vmatprep.subr.bf16.mxu0 0
      %1354 = vmatpush1.bf16.msra.mxu0 %v1322
      %1355 = vmatprep.subr.bf16.mxu0 0
      %1356 = vmatpush1.bf16.msra.mxu0 %v1323
      %1357 = vmatprep.subr.bf16.mxu0 0
      %1358 = vmatpush1.bf16.msra.mxu0 %v1324
      %1359 = vmatprep.subr.bf16.mxu0 0
      %1360 = vmatpush1.bf16.msra.mxu0 0
      %1361 = vmatprep.subr.bf16.mxu0 0
      %1362 = vmatpush1.bf16.msra.mxu0 0
      %1363 = vmatprep.subr.bf16.mxu0 0
      %1364 = vmatpush1.bf16.msra.mxu0 0
      %1365 = vmatprep.subr.bf16.mxu0 0
      %1366 = vmatpush1.bf16.msra.mxu0 0
      %1367 = vmatprep.subr.bf16.mxu0 0
      %1368 = vmatpush1.bf16.msra.mxu0 0
      %1369 = vmatprep.subr.bf16.mxu0 0
      %1370 = vmatpush1.bf16.msra.mxu0 0
      %1371 = vmatprep.subr.bf16.mxu0 0
      %1372 = vmatpush1.bf16.msra.mxu0 0
      %1373 = vmatprep.subr.bf16.mxu0 0
      %1374 = vmatpush1.bf16.msra.mxu0 0
      %1375 = vmatprep.subr.bf16.mxu0 0
      %1376 = vmatpush1.bf16.msra.mxu0 0
      %1377 = vmatprep.subr.bf16.mxu0 0
      %1378 = vmatpush1.bf16.msra.mxu0 0
      %1379 = vmatprep.subr.bf16.mxu0 0
      %1380 = vmatpush1.bf16.msra.mxu0 0
      %1381 = vmatprep.subr.bf16.mxu0 0
      %1382 = vmatpush1.bf16.msra.mxu0 0
      %1383 = vmatprep.subr.bf16.mxu0 0
      %1384 = vmatpush1.bf16.msra.mxu0 0
      %1385 = vmatprep.mubr.bf16.mxu0 0
      %1386 = vmatmul.mubr.bf16.gmra.mrb[0].mxu0 %v1330
      %v1387 = vpop.f32.mrb[0].mxu0
      %v1388 = vadd.f32 0.0, %v1387
      %v1389 = vpop.f32.mrb[0].mxu0
      %v1390 = vpop.f32.mrb[0].mxu0
      %v1391 = vadd.f32 0.0, %v1390
      %v1392 = vpop.f32.mrb[0].mxu0
      %1393 = vmatprep.mubr.bf16.mxu0 0
      %1394 = vmatmul.mubr.bf16.gmra.mrb[0].mxu0 %v1333
      %v1395 = vpop.f32.mrb[0].mxu0
      %v1396 = vadd.f32 0.0, %v1395
      %v1397 = vpop.f32.mrb[0].mxu0
      %v1398 = vpop.f32.mrb[0].mxu0
      %v1399 = vadd.f32 0.0, %v1398
      %v1400 = vpop.f32.mrb[0].mxu0
      %1401 = vmatprep.mubr.bf16.mxu0 0
      %1402 = vmatmul.mubr.bf16.gmra.mrb[0].mxu0 %v1336
      %v1403 = vpop.f32.mrb[0].mxu0
      %v1404 = vadd.f32 0.0, %v1403
      %v1405 = vpop.f32.mrb[0].mxu0
      %v1406 = vpop.f32.mrb[0].mxu0
      %v1407 = vadd.f32 0.0, %v1406
      %v1408 = vpop.f32.mrb[0].mxu0
      %1409 = vmatprep.mubr.bf16.mxu0 0
      %1410 = vmatmul.mubr.bf16.gmra.mrb[0].mxu0 %v1339
      %v1411 = vpop.f32.mrb[0].mxu0
      %v1412 = vadd.f32 0.0, %v1411
      %v1413 = vpop.f32.mrb[0].mxu0
      %v1414 = vpop.f32.mrb[0].mxu0
      %v1415 = vadd.f32 0.0, %v1414
      %v1416 = vpop.f32.mrb[0].mxu0
      %1417 = vmatprep.mubr.bf16.mxu0 0
      %1418 = vmatmul.mubr.bf16.gmra.mrb[0].mxu0 %v1342
      %v1419 = vpop.f32.mrb[0].mxu0
      %v1420 = vadd.f32 0.0, %v1419
      %v1421 = vpop.f32.mrb[0].mxu0
      %v1422 = vpop.f32.mrb[0].mxu0
      %v1423 = vadd.f32 0.0, %v1422
      %v1424 = vpop.f32.mrb[0].mxu0
      %1425 = vmatprep.mubr.bf16.mxu0 0
      %1426 = vmatmul.mubr.bf16.gmra.mrb[0].mxu0 %v1345
      %v1427 = vpop.f32.mrb[0].mxu0
      %v1428 = vadd.f32 0.0, %v1427
      %v1429 = vpop.f32.mrb[0].mxu0
      %v1430 = vpop.f32.mrb[0].mxu0
      %v1431 = vadd.f32 0.0, %v1430
      %v1432 = vpop.f32.mrb[0].mxu0
      %1433 = vmatprep.mubr.bf16.mxu0 0
      %1434 = vmatmul.mubr.bf16.gmra.mrb[0].mxu0 %v1348
      %v1435 = vpop.f32.mrb[0].mxu0
      %v1436 = vadd.f32 0.0, %v1435
      %v1437 = vpop.f32.mrb[0].mxu0
      %v1438 = vpop.f32.mrb[0].mxu0
      %v1439 = vadd.f32 0.0, %v1438
      %v1440 = vpop.f32.mrb[0].mxu0
      %1441 = vmatprep.mubr.bf16.mxu0 0
      %1442 = vmatmul.mubr.bf16.gmra.mrb[0].mxu0 %v1351
      %v1443 = vpop.f32.mrb[0].mxu0
      %v1444 = vadd.f32 0.0, %v1443
      %v1445 = vpop.f32.mrb[0].mxu0
      %v1446 = vpop.f32.mrb[0].mxu0
      %v1447 = vadd.f32 0.0, %v1446
      %v1448 = vpop.f32.mrb[0].mxu0
      %1449 = vdwg.mxu0
      %v1450 = vadd.f32 %v1288, %v1388
      %v1451 = vadd.f32 %v1289, %v1391
      %v1452 = vadd.f32 %v1290, %v1396
      %v1453 = vadd.f32 %v1291, %v1399
      %v1454 = vadd.f32 %v1292, %v1404
      %v1455 = vadd.f32 %v1293, %v1407
      %v1456 = vadd.f32 %v1294, %v1412
      %v1457 = vadd.f32 %v1295, %v1415
      %v1458 = vadd.f32 %v1296, %v1420
      %v1459 = vadd.f32 %v1297, %v1423
      %v1460 = vadd.f32 %v1298, %v1428
      %v1461 = vadd.f32 %v1299, %v1431
      %v1462 = vadd.f32 %v1300, %v1436
      %v1463 = vadd.f32 %v1301, %v1439
      %v1464 = vadd.f32 %v1302, %v1444
      %v1465 = vadd.f32 %v1303, %v1447
      %1466 = vst.msk [vmem:[#allocation2] sm:$0xff] %vm1220, %v1450
      %1467 = vst.msk [vmem:[#allocation2 + $0x8] sm:$0xff] %vm1220, %v1451
      %1468 = vst.msk [vmem:[#allocation2 + $0x10] sm:$0xff] %vm1220, %v1452
      %1469 = vst.msk [vmem:[#allocation2 + $0x18] sm:$0xff] %vm1220, %v1453
      %1470 = vst.msk [vmem:[#allocation2 + $0x20] sm:$0xff] %vm1220, %v1454
      %1471 = vst.msk [vmem:[#allocation2 + $0x28] sm:$0xff] %vm1220, %v1455
      %1472 = vst.msk [vmem:[#allocation2 + $0x30] sm:$0xff] %vm1220, %v1456
      %1473 = vst.msk [vmem:[#allocation2 + $0x38] sm:$0xff] %vm1220, %v1457
      %1474 = vst.msk [vmem:[#allocation2 + $0x40] sm:$0xff] %vm1220, %v1458
      %1475 = vst.msk [vmem:[#allocation2 + $0x48] sm:$0xff] %vm1220, %v1459
      %1476 = vst.msk [vmem:[#allocation2 + $0x50] sm:$0xff] %vm1220, %v1460
      %1477 = vst.msk [vmem:[#allocation2 + $0x58] sm:$0xff] %vm1220, %v1461
      %1478 = vst.msk [vmem:[#allocation2 + $0x60] sm:$0xff] %vm1220, %v1462
      %1479 = vst.msk [vmem:[#allocation2 + $0x68] sm:$0xff] %vm1220, %v1463
      %1480 = vst.msk [vmem:[#allocation2 + $0x70] sm:$0xff] %vm1220, %v1464
      %1481 = vst.msk [vmem:[#allocation2 + $0x78] sm:$0xff] %vm1220, %v1465
      %v1482 = vld [vmem:[#allocation2] sm:$0xff]
      %v1483 = vld [vmem:[#allocation2 + $0x8] sm:$0xff]
      %v1484 = vld [vmem:[#allocation2 + $0x10] sm:$0xff]
      %v1485 = vld [vmem:[#allocation2 + $0x18] sm:$0xff]
      %v1486 = vld [vmem:[#allocation2 + $0x20] sm:$0xff]
      %v1487 = vld [vmem:[#allocation2 + $0x28] sm:$0xff]
      %v1488 = vld [vmem:[#allocation2 + $0x30] sm:$0xff]
      %v1489 = vld [vmem:[#allocation2 + $0x38] sm:$0xff]
      %v1490 = vld [vmem:[#allocation2 + $0x40] sm:$0xff]
      %v1491 = vld [vmem:[#allocation2 + $0x48] sm:$0xff]
      %v1492 = vld [vmem:[#allocation2 + $0x50] sm:$0xff]
      %v1493 = vld [vmem:[#allocation2 + $0x58] sm:$0xff]
      %v1494 = vld [vmem:[#allocation2 + $0x60] sm:$0xff]
      %v1495 = vld [vmem:[#allocation2 + $0x68] sm:$0xff]
      %v1496 = vld [vmem:[#allocation2 + $0x70] sm:$0xff]
      %v1497 = vld [vmem:[#allocation2 + $0x78] sm:$0xff]
      %s1498 = scalar_lea.vmem %s5, 24
      %v1499 = vld [vmem:[%s1498] sm:$0xf]
      %v1500 = vld [vmem:[%s1498 + $0x4] sm:$0xf]
      %v1501 = vld [vmem:[%s1498 + $0x8] sm:$0xf]
      %v1502 = vld [vmem:[%s1498 + $0xc] sm:$0xf]
      %v1503 = vld [vmem:[%s1498 + $0x10] sm:$0xf]
      %v1504 = vld [vmem:[%s1498 + $0x14] sm:$0xf]
      %v1511 = vunpack.c.l.b16 %v1499
      %v1512 = vunpack.c.l.b16 %v1500
      %v1513 = vunpack.c.l.b16 %v1501
      %v1514 = vunpack.c.l.b16 %v1502
      %v1515 = vunpack.c.l.b16 %v1503
      %v1516 = vunpack.c.l.b16 %v1504
      %v1517 = vpack.c.b16 %v1512, %v1511
      %v1518 = vpack.c.b16 %v1514, %v1513
      %v1519 = vpack.c.b16 %v1516, %v1515
      %v1524 = vsel %vm1328, %v1270, 0
      %1526 = vmatprep.subr.bf16.mxu0 0
      %1527 = vmatpush1.bf16.msra.mxu0 %v1517
      %1528 = vmatprep.subr.bf16.mxu0 0
      %1529 = vmatpush1.bf16.msra.mxu0 %v1518
      %1530 = vmatprep.subr.bf16.mxu0 0
      %1531 = vmatpush1.bf16.msra.mxu0 %v1519
      %1532 = vmatprep.subr.bf16.mxu0 0
      %1533 = vmatpush1.bf16.msra.mxu0 0
      %1534 = vmatprep.subr.bf16.mxu0 0
      %1535 = vmatpush1.bf16.msra.mxu0 0
      %1536 = vmatprep.subr.bf16.mxu0 0
      %1537 = vmatpush1.bf16.msra.mxu0 0
      %1538 = vmatprep.subr.bf16.mxu0 0
      %1539 = vmatpush1.bf16.msra.mxu0 0
      %1540 = vmatprep.subr.bf16.mxu0 0
      %1541 = vmatpush1.bf16.msra.mxu0 0
      %1542 = vmatprep.subr.bf16.mxu0 0
      %1543 = vmatpush1.bf16.msra.mxu0 0
      %1544 = vmatprep.subr.bf16.mxu0 0
      %1545 = vmatpush1.bf16.msra.mxu0 0
      %1546 = vmatprep.subr.bf16.mxu0 0
      %1547 = vmatpush1.bf16.msra.mxu0 0
      %1548 = vmatprep.subr.bf16.mxu0 0
      %1549 = vmatpush1.bf16.msra.mxu0 0
      %1550 = vmatprep.subr.bf16.mxu0 0
      %1551 = vmatpush1.bf16.msra.mxu0 0
      %1552 = vmatprep.subr.bf16.mxu0 0
      %1553 = vmatpush1.bf16.msra.mxu0 0
      %1554 = vmatprep.subr.bf16.mxu0 0
      %1555 = vmatpush1.bf16.msra.mxu0 0
      %1556 = vmatprep.subr.bf16.mxu0 0
      %1557 = vmatpush1.bf16.msra.mxu0 0
      %1558 = vmatprep.mubr.bf16.mxu0 0
      %1559 = vmatmul.mubr.bf16.gmra.mrb[0].mxu0 %v1333
      %v1560 = vpop.f32.mrb[0].mxu0
      %v1561 = vadd.f32 0.0, %v1560
      %v1562 = vpop.f32.mrb[0].mxu0
      %v1563 = vpop.f32.mrb[0].mxu0
      %v1564 = vadd.f32 0.0, %v1563
      %v1565 = vpop.f32.mrb[0].mxu0
      %1566 = vmatprep.mubr.bf16.mxu0 0
      %1567 = vmatmul.mubr.bf16.gmra.mrb[0].mxu0 %v1336
      %v1568 = vpop.f32.mrb[0].mxu0
      %v1569 = vadd.f32 0.0, %v1568
      %v1570 = vpop.f32.mrb[0].mxu0
      %v1571 = vpop.f32.mrb[0].mxu0
      %v1572 = vadd.f32 0.0, %v1571
      %v1573 = vpop.f32.mrb[0].mxu0
      %1574 = vmatprep.mubr.bf16.mxu0 0
      %1575 = vmatmul.mubr.bf16.gmra.mrb[0].mxu0 %v1339
      %v1576 = vpop.f32.mrb[0].mxu0
      %v1577 = vadd.f32 0.0, %v1576
      %v1578 = vpop.f32.mrb[0].mxu0
      %v1579 = vpop.f32.mrb[0].mxu0
      %v1580 = vadd.f32 0.0, %v1579
      %v1581 = vpop.f32.mrb[0].mxu0
      %1582 = vmatprep.mubr.bf16.mxu0 0
      %1583 = vmatmul.mubr.bf16.gmra.mrb[0].mxu0 %v1342
      %v1584 = vpop.f32.mrb[0].mxu0
      %v1585 = vadd.f32 0.0, %v1584
      %v1586 = vpop.f32.mrb[0].mxu0
      %v1587 = vpop.f32.mrb[0].mxu0
      %v1588 = vadd.f32 0.0, %v1587
      %v1589 = vpop.f32.mrb[0].mxu0
      %1590 = vmatprep.mubr.bf16.mxu0 0
      %1591 = vmatmul.mubr.bf16.gmra.mrb[0].mxu0 %v1345
      %v1592 = vpop.f32.mrb[0].mxu0
      %v1593 = vadd.f32 0.0, %v1592
      %v1594 = vpop.f32.mrb[0].mxu0
      %v1595 = vpop.f32.mrb[0].mxu0
      %v1596 = vadd.f32 0.0, %v1595
      %v1597 = vpop.f32.mrb[0].mxu0
      %1598 = vmatprep.mubr.bf16.mxu0 0
      %1599 = vmatmul.mubr.bf16.gmra.mrb[0].mxu0 %v1348
      %v1600 = vpop.f32.mrb[0].mxu0
      %v1601 = vadd.f32 0.0, %v1600
      %v1602 = vpop.f32.mrb[0].mxu0
      %v1603 = vpop.f32.mrb[0].mxu0
      %v1604 = vadd.f32 0.0, %v1603
      %v1605 = vpop.f32.mrb[0].mxu0
      %1606 = vmatprep.mubr.bf16.mxu0 0
      %1607 = vmatmul.mubr.bf16.gmra.mrb[0].mxu0 %v1351
      %v1608 = vpop.f32.mrb[0].mxu0
      %v1609 = vadd.f32 0.0, %v1608
      %v1610 = vpop.f32.mrb[0].mxu0
      %v1611 = vpop.f32.mrb[0].mxu0
      %v1612 = vadd.f32 0.0, %v1611
      %v1613 = vpop.f32.mrb[0].mxu0
      %1614 = vmatprep.mubr.bf16.mxu0 0
      %1615 = vmatmul.mubr.bf16.gmra.mrb[0].mxu0 %v1524
      %v1616 = vpop.f32.mrb[0].mxu0
      %v1617 = vadd.f32 0.0, %v1616
      %v1618 = vpop.f32.mrb[0].mxu0
      %v1619 = vpop.f32.mrb[0].mxu0
      %v1620 = vadd.f32 0.0, %v1619
      %v1621 = vpop.f32.mrb[0].mxu0
      %1622 = vdwg.mxu0
      %v1623 = vadd.f32 %v1482, %v1561
      %v1624 = vadd.f32 %v1483, %v1564
      %v1625 = vadd.f32 %v1484, %v1569
      %v1626 = vadd.f32 %v1485, %v1572
      %v1627 = vadd.f32 %v1486, %v1577
      %v1628 = vadd.f32 %v1487, %v1580
      %v1629 = vadd.f32 %v1488, %v1585
      %v1630 = vadd.f32 %v1489, %v1588
      %v1631 = vadd.f32 %v1490, %v1593
      %v1632 = vadd.f32 %v1491, %v1596
      %v1633 = vadd.f32 %v1492, %v1601
      %v1634 = vadd.f32 %v1493, %v1604
      %v1635 = vadd.f32 %v1494, %v1609
      %v1636 = vadd.f32 %v1495, %v1612
      %v1637 = vadd.f32 %v1496, %v1617
      %v1638 = vadd.f32 %v1497, %v1620
      %1639 = vst.msk [vmem:[#allocation2] sm:$0xff] %vm1220, %v1623
      %1640 = vst.msk [vmem:[#allocation2 + $0x8] sm:$0xff] %vm1220, %v1624
      %1641 = vst.msk [vmem:[#allocation2 + $0x10] sm:$0xff] %vm1220, %v1625
      %1642 = vst.msk [vmem:[#allocation2 + $0x18] sm:$0xff] %vm1220, %v1626
      %1643 = vst.msk [vmem:[#allocation2 + $0x20] sm:$0xff] %vm1220, %v1627
      %1644 = vst.msk [vmem:[#allocation2 + $0x28] sm:$0xff] %vm1220, %v1628
      %1645 = vst.msk [vmem:[#allocation2 + $0x30] sm:$0xff] %vm1220, %v1629
      %1646 = vst.msk [vmem:[#allocation2 + $0x38] sm:$0xff] %vm1220, %v1630
      %1647 = vst.msk [vmem:[#allocation2 + $0x40] sm:$0xff] %vm1220, %v1631
      %1648 = vst.msk [vmem:[#allocation2 + $0x48] sm:$0xff] %vm1220, %v1632
      %1649 = vst.msk [vmem:[#allocation2 + $0x50] sm:$0xff] %vm1220, %v1633
      %1650 = vst.msk [vmem:[#allocation2 + $0x58] sm:$0xff] %vm1220, %v1634
      %1651 = vst.msk [vmem:[#allocation2 + $0x60] sm:$0xff] %vm1220, %v1635
      %1652 = vst.msk [vmem:[#allocation2 + $0x68] sm:$0xff] %vm1220, %v1636
      %1653 = vst.msk [vmem:[#allocation2 + $0x70] sm:$0xff] %vm1220, %v1637
      %1654 = vst.msk [vmem:[#allocation2 + $0x78] sm:$0xff] %vm1220, %v1638
      %v1655 = vld [vmem:[#allocation2] sm:$0xff]
      %v1656 = vld [vmem:[#allocation2 + $0x8] sm:$0xff]
      %v1657 = vld [vmem:[#allocation2 + $0x10] sm:$0xff]
      %v1658 = vld [vmem:[#allocation2 + $0x18] sm:$0xff]
      %v1659 = vld [vmem:[#allocation2 + $0x20] sm:$0xff]
      %v1660 = vld [vmem:[#allocation2 + $0x28] sm:$0xff]
      %v1661 = vld [vmem:[#allocation2 + $0x30] sm:$0xff]
      %v1662 = vld [vmem:[#allocation2 + $0x38] sm:$0xff]
      %v1663 = vld [vmem:[#allocation2 + $0x40] sm:$0xff]
      %v1664 = vld [vmem:[#allocation2 + $0x48] sm:$0xff]
      %v1665 = vld [vmem:[#allocation2 + $0x50] sm:$0xff]
      %v1666 = vld [vmem:[#allocation2 + $0x58] sm:$0xff]
      %v1667 = vld [vmem:[#allocation2 + $0x60] sm:$0xff]
      %v1668 = vld [vmem:[#allocation2 + $0x68] sm:$0xff]
      %v1669 = vld [vmem:[#allocation2 + $0x70] sm:$0xff]
      %v1670 = vld [vmem:[#allocation2 + $0x78] sm:$0xff]
      %s1671 = scalar_lea.vmem %s5, 48
      %v1672 = vld [vmem:[%s1671] sm:$0xf]
      %v1673 = vld [vmem:[%s1671 + $0x4] sm:$0xf]
      %v1674 = vld [vmem:[%s1671 + $0x8] sm:$0xf]
      %v1675 = vld [vmem:[%s1671 + $0xc] sm:$0xf]
      %v1676 = vld [vmem:[%s1671 + $0x10] sm:$0xf]
      %v1677 = vld [vmem:[%s1671 + $0x14] sm:$0xf]
      %v1684 = vunpack.c.l.b16 %v1672
      %v1685 = vunpack.c.l.b16 %v1673
      %v1686 = vunpack.c.l.b16 %v1674
      %v1687 = vunpack.c.l.b16 %v1675
      %v1688 = vunpack.c.l.b16 %v1676
      %v1689 = vunpack.c.l.b16 %v1677
      %v1690 = vpack.c.b16 %v1685, %v1684
      %v1691 = vpack.c.b16 %v1687, %v1686
      %v1692 = vpack.c.b16 %v1689, %v1688
      %v1697 = vsel %vm1328, %v1271, 0
      %1699 = vmatprep.subr.bf16.mxu0 0
      %1700 = vmatpush1.bf16.msra.mxu0 %v1690
      %1701 = vmatprep.subr.bf16.mxu0 0
      %1702 = vmatpush1.bf16.msra.mxu0 %v1691
      %1703 = vmatprep.subr.bf16.mxu0 0
      %1704 = vmatpush1.bf16.msra.mxu0 %v1692
      %1705 = vmatprep.subr.bf16.mxu0 0
      %1706 = vmatpush1.bf16.msra.mxu0 0
      %1707 = vmatprep.subr.bf16.mxu0 0
      %1708 = vmatpush1.bf16.msra.mxu0 0
      %1709 = vmatprep.subr.bf16.mxu0 0
      %1710 = vmatpush1.bf16.msra.mxu0 0
      %1711 = vmatprep.subr.bf16.mxu0 0
      %1712 = vmatpush1.bf16.msra.mxu0 0
      %1713 = vmatprep.subr.bf16.mxu0 0
      %1714 = vmatpush1.bf16.msra.mxu0 0
      %1715 = vmatprep.subr.bf16.mxu0 0
      %1716 = vmatpush1.bf16.msra.mxu0 0
      %1717 = vmatprep.subr.bf16.mxu0 0
      %1718 = vmatpush1.bf16.msra.mxu0 0
      %1719 = vmatprep.subr.bf16.mxu0 0
      %1720 = vmatpush1.bf16.msra.mxu0 0
      %1721 = vmatprep.subr.bf16.mxu0 0
      %1722 = vmatpush1.bf16.msra.mxu0 0
      %1723 = vmatprep.subr.bf16.mxu0 0
      %1724 = vmatpush1.bf16.msra.mxu0 0
      %1725 = vmatprep.subr.bf16.mxu0 0
      %1726 = vmatpush1.bf16.msra.mxu0 0
      %1727 = vmatprep.subr.bf16.mxu0 0
      %1728 = vmatpush1.bf16.msra.mxu0 0
      %1729 = vmatprep.subr.bf16.mxu0 0
      %1730 = vmatpush1.bf16.msra.mxu0 0
      %1731 = vmatprep.mubr.bf16.mxu0 0
      %1732 = vmatmul.mubr.bf16.gmra.mrb[0].mxu0 %v1336
      %v1733 = vpop.f32.mrb[0].mxu0
      %v1734 = vadd.f32 0.0, %v1733
      %v1735 = vpop.f32.mrb[0].mxu0
      %v1736 = vpop.f32.mrb[0].mxu0
      %v1737 = vadd.f32 0.0, %v1736
      %v1738 = vpop.f32.mrb[0].mxu0
      %1739 = vmatprep.mubr.bf16.mxu0 0
      %1740 = vmatmul.mubr.bf16.gmra.mrb[0].mxu0 %v1339
      %v1741 = vpop.f32.mrb[0].mxu0
      %v1742 = vadd.f32 0.0, %v1741
      %v1743 = vpop.f32.mrb[0].mxu0
      %v1744 = vpop.f32.mrb[0].mxu0
      %v1745 = vadd.f32 0.0, %v1744
      %v1746 = vpop.f32.mrb[0].mxu0
      %1747 = vmatprep.mubr.bf16.mxu0 0
      %1748 = vmatmul.mubr.bf16.gmra.mrb[0].mxu0 %v1342
      %v1749 = vpop.f32.mrb[0].mxu0
      %v1750 = vadd.f32 0.0, %v1749
      %v1751 = vpop.f32.mrb[0].mxu0
      %v1752 = vpop.f32.mrb[0].mxu0
      %v1753 = vadd.f32 0.0, %v1752
      %v1754 = vpop.f32.mrb[0].mxu0
      %1755 = vmatprep.mubr.bf16.mxu0 0
      %1756 = vmatmul.mubr.bf16.gmra.mrb[0].mxu0 %v1345
      %v1757 = vpop.f32.mrb[0].mxu0
      %v1758 = vadd.f32 0.0, %v1757
      %v1759 = vpop.f32.mrb[0].mxu0
      %v1760 = vpop.f32.mrb[0].mxu0
      %v1761 = vadd.f32 0.0, %v1760
      %v1762 = vpop.f32.mrb[0].mxu0
      %1763 = vmatprep.mubr.bf16.mxu0 0
      %1764 = vmatmul.mubr.bf16.gmra.mrb[0].mxu0 %v1348
      %v1765 = vpop.f32.mrb[0].mxu0
      %v1766 = vadd.f32 0.0, %v1765
      %v1767 = vpop.f32.mrb[0].mxu0
      %v1768 = vpop.f32.mrb[0].mxu0
      %v1769 = vadd.f32 0.0, %v1768
      %v1770 = vpop.f32.mrb[0].mxu0
      %1771 = vmatprep.mubr.bf16.mxu0 0
      %1772 = vmatmul.mubr.bf16.gmra.mrb[0].mxu0 %v1351
      %v1773 = vpop.f32.mrb[0].mxu0
      %v1774 = vadd.f32 0.0, %v1773
      %v1775 = vpop.f32.mrb[0].mxu0
      %v1776 = vpop.f32.mrb[0].mxu0
      %v1777 = vadd.f32 0.0, %v1776
      %v1778 = vpop.f32.mrb[0].mxu0
      %1779 = vmatprep.mubr.bf16.mxu0 0
      %1780 = vmatmul.mubr.bf16.gmra.mrb[0].mxu0 %v1524
      %v1781 = vpop.f32.mrb[0].mxu0
      %v1782 = vadd.f32 0.0, %v1781
      %v1783 = vpop.f32.mrb[0].mxu0
      %v1784 = vpop.f32.mrb[0].mxu0
      %v1785 = vadd.f32 0.0, %v1784
      %v1786 = vpop.f32.mrb[0].mxu0
      %1787 = vmatprep.mubr.bf16.mxu0 0
      %1788 = vmatmul.mubr.bf16.gmra.mrb[0].mxu0 %v1697
      %v1789 = vpop.f32.mrb[0].mxu0
      %v1790 = vadd.f32 0.0, %v1789
      %v1791 = vpop.f32.mrb[0].mxu0
      %v1792 = vpop.f32.mrb[0].mxu0
      %v1793 = vadd.f32 0.0, %v1792
      %v1794 = vpop.f32.mrb[0].mxu0
      %1795 = vdwg.mxu0
      %v1796 = vadd.f32 %v1655, %v1734
      %v1797 = vadd.f32 %v1656, %v1737
      %v1798 = vadd.f32 %v1657, %v1742
      %v1799 = vadd.f32 %v1658, %v1745
      %v1800 = vadd.f32 %v1659, %v1750
      %v1801 = vadd.f32 %v1660, %v1753
      %v1802 = vadd.f32 %v1661, %v1758
      %v1803 = vadd.f32 %v1662, %v1761
      %v1804 = vadd.f32 %v1663, %v1766
      %v1805 = vadd.f32 %v1664, %v1769
      %v1806 = vadd.f32 %v1665, %v1774
      %v1807 = vadd.f32 %v1666, %v1777
      %v1808 = vadd.f32 %v1667, %v1782
      %v1809 = vadd.f32 %v1668, %v1785
      %v1810 = vadd.f32 %v1669, %v1790
      %v1811 = vadd.f32 %v1670, %v1793
      %1812 = vst.msk [vmem:[#allocation2] sm:$0xff] %vm1220, %v1796
      %1813 = vst.msk [vmem:[#allocation2 + $0x8] sm:$0xff] %vm1220, %v1797
      %1814 = vst.msk [vmem:[#allocation2 + $0x10] sm:$0xff] %vm1220, %v1798
      %1815 = vst.msk [vmem:[#allocation2 + $0x18] sm:$0xff] %vm1220, %v1799
      %1816 = vst.msk [vmem:[#allocation2 + $0x20] sm:$0xff] %vm1220, %v1800
      %1817 = vst.msk [vmem:[#allocation2 + $0x28] sm:$0xff] %vm1220, %v1801
      %1818 = vst.msk [vmem:[#allocation2 + $0x30] sm:$0xff] %vm1220, %v1802
      %1819 = vst.msk [vmem:[#allocation2 + $0x38] sm:$0xff] %vm1220, %v1803
      %1820 = vst.msk [vmem:[#allocation2 + $0x40] sm:$0xff] %vm1220, %v1804
      %1821 = vst.msk [vmem:[#allocation2 + $0x48] sm:$0xff] %vm1220, %v1805
      %1822 = vst.msk [vmem:[#allocation2 + $0x50] sm:$0xff] %vm1220, %v1806
      %1823 = vst.msk [vmem:[#allocation2 + $0x58] sm:$0xff] %vm1220, %v1807
      %1824 = vst.msk [vmem:[#allocation2 + $0x60] sm:$0xff] %vm1220, %v1808
      %1825 = vst.msk [vmem:[#allocation2 + $0x68] sm:$0xff] %vm1220, %v1809
      %1826 = vst.msk [vmem:[#allocation2 + $0x70] sm:$0xff] %vm1220, %v1810
      %1827 = vst.msk [vmem:[#allocation2 + $0x78] sm:$0xff] %vm1220, %v1811
      %v1828 = vld [vmem:[#allocation2] sm:$0xff]
      %v1829 = vld [vmem:[#allocation2 + $0x8] sm:$0xff]
      %v1830 = vld [vmem:[#allocation2 + $0x10] sm:$0xff]
      %v1831 = vld [vmem:[#allocation2 + $0x18] sm:$0xff]
      %v1832 = vld [vmem:[#allocation2 + $0x20] sm:$0xff]
      %v1833 = vld [vmem:[#allocation2 + $0x28] sm:$0xff]
      %v1834 = vld [vmem:[#allocation2 + $0x30] sm:$0xff]
      %v1835 = vld [vmem:[#allocation2 + $0x38] sm:$0xff]
      %v1836 = vld [vmem:[#allocation2 + $0x40] sm:$0xff]
      %v1837 = vld [vmem:[#allocation2 + $0x48] sm:$0xff]
      %v1838 = vld [vmem:[#allocation2 + $0x50] sm:$0xff]
      %v1839 = vld [vmem:[#allocation2 + $0x58] sm:$0xff]
      %v1840 = vld [vmem:[#allocation2 + $0x60] sm:$0xff]
      %v1841 = vld [vmem:[#allocation2 + $0x68] sm:$0xff]
      %v1842 = vld [vmem:[#allocation2 + $0x70] sm:$0xff]
      %v1843 = vld [vmem:[#allocation2 + $0x78] sm:$0xff]
      %v1844 = vpack.c.bf16 %v1829, %v1828
      %v1845 = vpack.c.bf16 %v1831, %v1830
      %v1846 = vpack.c.bf16 %v1833, %v1832
      %v1847 = vpack.c.bf16 %v1835, %v1834
      %v1848 = vpack.c.bf16 %v1837, %v1836
      %v1849 = vpack.c.bf16 %v1839, %v1838
      %v1850 = vpack.c.bf16 %v1841, %v1840
      %v1851 = vpack.c.bf16 %v1843, %v1842
      %v1860 = vunpack.c.l.b16 %v1844
      %v1861 = vunpack.c.h.b16 %v1844
      %v1862 = vunpack.c.l.b16 %v1845
      %v1863 = vunpack.c.h.b16 %v1845
      %v1864 = vunpack.c.l.b16 %v1846
      %v1865 = vunpack.c.h.b16 %v1846
      %v1866 = vunpack.c.l.b16 %v1847
      %v1867 = vunpack.c.h.b16 %v1847
      %v1868 = vunpack.c.l.b16 %v1848
      %v1869 = vunpack.c.h.b16 %v1848
      %v1870 = vunpack.c.l.b16 %v1849
      %v1871 = vunpack.c.h.b16 %v1849
      %v1872 = vunpack.c.l.b16 %v1850
      %v1873 = vunpack.c.h.b16 %v1850
      %v1874 = vunpack.c.l.b16 %v1851
      %v1875 = vunpack.c.h.b16 %v1851
      %v1876 = vpack.c.b16 %v1860, %v1860
      %v1877 = vpack.c.b16 %v1861, %v1861
      %v1878 = vpack.c.b16 %v1862, %v1862
      %v1879 = vpack.c.b16 %v1863, %v1863
      %v1880 = vpack.c.b16 %v1864, %v1864
      %v1881 = vpack.c.b16 %v1865, %v1865
      %v1882 = vpack.c.b16 %v1866, %v1866
      %v1883 = vpack.c.b16 %v1867, %v1867
      %v1884 = vpack.c.b16 %v1868, %v1868
      %v1885 = vpack.c.b16 %v1869, %v1869
      %v1886 = vpack.c.b16 %v1870, %v1870
      %v1887 = vpack.c.b16 %v1871, %v1871
      %v1888 = vpack.c.b16 %v1872, %v1872
      %v1889 = vpack.c.b16 %v1873, %v1873
      %v1890 = vpack.c.b16 %v1874, %v1874
      %v1891 = vpack.c.b16 %v1875, %v1875
      %vm1908 = vcmask 125952
      %1909 = vst.msk [vmem:[%s454] sm:$0xf] %vm1908, %v1876
      %1910 = vst.msk [vmem:[%s454 + $0x4] sm:$0xf] %vm1908, %v1877
      %1911 = vst.msk [vmem:[%s454 + $0x8] sm:$0xf] %vm1908, %v1878
      %1912 = vst.msk [vmem:[%s454 + $0xc] sm:$0xf] %vm1908, %v1879
      %1913 = vst.msk [vmem:[%s454 + $0x10] sm:$0xf] %vm1908, %v1880
      %1914 = vst.msk [vmem:[%s454 + $0x14] sm:$0xf] %vm1908, %v1881
      %1915 = vst.msk [vmem:[%s454 + $0x18] sm:$0xf] %vm1908, %v1882
      %1916 = vst.msk [vmem:[%s454 + $0x1c] sm:$0xf] %vm1908, %v1883
      %1917 = vst.msk [vmem:[%s454 + $0x20] sm:$0xf] %vm1908, %v1884
      %1918 = vst.msk [vmem:[%s454 + $0x24] sm:$0xf] %vm1908, %v1885
      %1919 = vst.msk [vmem:[%s454 + $0x28] sm:$0xf] %vm1908, %v1886
      %1920 = vst.msk [vmem:[%s454 + $0x2c] sm:$0xf] %vm1908, %v1887
      %1921 = vst.msk [vmem:[%s454 + $0x30] sm:$0xf] %vm1908, %v1888
      %1922 = vst.msk [vmem:[%s454 + $0x34] sm:$0xf] %vm1908, %v1889
      %1923 = vst.msk [vmem:[%s454 + $0x38] sm:$0xf] %vm1908, %v1890
      %1924 = vst.msk [vmem:[%s454 + $0x3c] sm:$0xf] %vm1908, %v1891
      %v1925 = vsel %vm1220, %v1828, 0.0
      %v1926 = vsel %vm1220, %v1829, 0.0
      %v1927 = vadd.f32 %v1925, %v1926
      %v1928 = vsel %vm1220, %v1830, 0.0
      %v1929 = vadd.f32 %v1927, %v1928
      %v1930 = vsel %vm1220, %v1831, 0.0
      %v1931 = vadd.f32 %v1929, %v1930
      %v1932 = vsel %vm1220, %v1832, 0.0
      %v1933 = vadd.f32 %v1931, %v1932
      %v1934 = vsel %vm1220, %v1833, 0.0
      %v1935 = vadd.f32 %v1933, %v1934
      %v1936 = vsel %vm1220, %v1834, 0.0
      %v1937 = vadd.f32 %v1935, %v1936
      %v1938 = vsel %vm1220, %v1835, 0.0
      %v1939 = vadd.f32 %v1937, %v1938
      %v1940 = vsel %vm1220, %v1836, 0.0
      %v1941 = vadd.f32 %v1939, %v1940
      %v1942 = vsel %vm1220, %v1837, 0.0
      %v1943 = vadd.f32 %v1941, %v1942
      %v1944 = vsel %vm1220, %v1838, 0.0
      %v1945 = vadd.f32 %v1943, %v1944
      %v1946 = vsel %vm1220, %v1839, 0.0
      %v1947 = vadd.f32 %v1945, %v1946
      %v1948 = vsel %vm1220, %v1840, 0.0
      %v1949 = vadd.f32 %v1947, %v1948
      %v1950 = vsel %vm1220, %v1841, 0.0
      %v1951 = vadd.f32 %v1949, %v1950
      %v1952 = vsel %vm1220, %v1842, 0.0
      %v1953 = vadd.f32 %v1951, %v1952
      %v1954 = vsel %vm1220, %v1843, 0.0
      %v1955 = vadd.f32 %v1953, %v1954
      %v1956 = vrot.slane %v1955, 4
      %v1957 = vadd.f32 %v1955, %v1956
      %v1958 = vrot.slane %v1957, 2
      %v1959 = vadd.f32 %v1957, %v1958
      %v1960 = vrot.slane %v1959, 1
      %v1961 = vadd.f32 %v1959, %v1960
      %v1962 = vmul.f32 %v1961, 0.0078125
      %v1963 = vsub.f32 %v1828, %v1962
      %v1964 = vsub.f32 %v1829, %v1962
      %v1965 = vsub.f32 %v1830, %v1962
      %v1966 = vsub.f32 %v1831, %v1962
      %v1967 = vsub.f32 %v1832, %v1962
      %v1968 = vsub.f32 %v1833, %v1962
      %v1969 = vsub.f32 %v1834, %v1962
      %v1970 = vsub.f32 %v1835, %v1962
      %v1971 = vsub.f32 %v1836, %v1962
      %v1972 = vsub.f32 %v1837, %v1962
      %v1973 = vsub.f32 %v1838, %v1962
      %v1974 = vsub.f32 %v1839, %v1962
      %v1975 = vsub.f32 %v1840, %v1962
      %v1976 = vsub.f32 %v1841, %v1962
      %v1977 = vsub.f32 %v1842, %v1962
      %v1978 = vsub.f32 %v1843, %v1962
      %v1979 = vmul.f32 %v1963, %v1963
      %v1980 = vmul.f32 %v1964, %v1964
      %v1981 = vmul.f32 %v1965, %v1965
      %v1982 = vmul.f32 %v1966, %v1966
      %v1983 = vmul.f32 %v1967, %v1967
      %v1984 = vmul.f32 %v1968, %v1968
      %v1985 = vmul.f32 %v1969, %v1969
      %v1986 = vmul.f32 %v1970, %v1970
      %v1987 = vmul.f32 %v1971, %v1971
      %v1988 = vmul.f32 %v1972, %v1972
      %v1989 = vmul.f32 %v1973, %v1973
      %v1990 = vmul.f32 %v1974, %v1974
      %v1991 = vmul.f32 %v1975, %v1975
      %v1992 = vmul.f32 %v1976, %v1976
      %v1993 = vmul.f32 %v1977, %v1977
      %v1994 = vmul.f32 %v1978, %v1978
      %v1995 = vsel %vm1220, %v1979, 0.0
      %v1996 = vsel %vm1220, %v1980, 0.0
      %v1997 = vadd.f32 %v1995, %v1996
      %v1998 = vsel %vm1220, %v1981, 0.0
      %v1999 = vadd.f32 %v1997, %v1998
      %v2000 = vsel %vm1220, %v1982, 0.0
      %v2001 = vadd.f32 %v1999, %v2000
      %v2002 = vsel %vm1220, %v1983, 0.0
      %v2003 = vadd.f32 %v2001, %v2002
      %v2004 = vsel %vm1220, %v1984, 0.0
      %v2005 = vadd.f32 %v2003, %v2004
      %v2006 = vsel %vm1220, %v1985, 0.0
      %v2007 = vadd.f32 %v2005, %v2006
      %v2008 = vsel %vm1220, %v1986, 0.0
      %v2009 = vadd.f32 %v2007, %v2008
      %v2010 = vsel %vm1220, %v1987, 0.0
      %v2011 = vadd.f32 %v2009, %v2010
      %v2012 = vsel %vm1220, %v1988, 0.0
      %v2013 = vadd.f32 %v2011, %v2012
      %v2014 = vsel %vm1220, %v1989, 0.0
      %v2015 = vadd.f32 %v2013, %v2014
      %v2016 = vsel %vm1220, %v1990, 0.0
      %v2017 = vadd.f32 %v2015, %v2016
      %v2018 = vsel %vm1220, %v1991, 0.0
      %v2019 = vadd.f32 %v2017, %v2018
      %v2020 = vsel %vm1220, %v1992, 0.0
      %v2021 = vadd.f32 %v2019, %v2020
      %v2022 = vsel %vm1220, %v1993, 0.0
      %v2023 = vadd.f32 %v2021, %v2022
      %v2024 = vsel %vm1220, %v1994, 0.0
      %v2025 = vadd.f32 %v2023, %v2024
      %v2026 = vrot.slane %v2025, 4
      %v2027 = vadd.f32 %v2025, %v2026
      %v2028 = vrot.slane %v2027, 2
      %v2029 = vadd.f32 %v2027, %v2028
      %v2030 = vrot.slane %v2029, 1
      %v2031 = vadd.f32 %v2029, %v2030
      %2033 = vrot.lane.b32.xlu0 %v2031, 16
      %v2034 = vpop.permute.xlu0 %2033
      %v2036 = vsel %vm1220, %v1961, %v2034
      %vm2037 = vcmask 253952
      %2038 = vst.msk [vmem:[%s462] sm:$0x1] %vm2037, %v2036
      %s2039 = smul.u32 %s23, 2
      %s2040 = sadd.s32 %s2039, %s24
      %s2041 = smul.u32 16, %s2040
      %p2042 = scmp.lt.s32.totalorder %s2041, 63
      %s2043 = scalar_select %p2042, %s2041, 63
      %s2044 = smul.addr %s2043, 4
      %s2045 = scalar_lea.vmem %s6, %s2044
      %s2046 = smul.u32 %s23, 2
      %s2047 = sadd.s32 %s2046, %s24
      %p2048 = scmp.lt.s32.totalorder %s2047, 3
      %s2049 = scalar_select %p2048, %s2047, 3
      %s2050 = scalar_lea.vmem %s7, %s2049
      // Predicated region
      $region45: #{bottleneck_forward.6} parent=43 // pred_check
        %p2051 = pneg %p222
      $region46: #{bottleneck_forward.6} parent=43 // pred_check_branch
        %2053 = sbr.rel (%p2051) target = $region48
      $region47: #{bottleneck_forward.6} parent=43 // pred_region
        %s2054 = smul.u32 %s23, 2
        %s2055 = sadd.s32 %s2054, %s24
        %s2056 = smul.u32 16, %s2055
      $region48: #{bottleneck_forward.6} parent=43 // pred_fallthru
        _
      // Predicated region
      $region49: #{bottleneck_forward.6} parent=43 // pred_check
        %p2057 = pneg %p252
      $region50: #{bottleneck_forward.6} parent=43 // pred_check_branch
        %2059 = sbr.rel (%p2057) target = $region52
      $region51: #{bottleneck_forward.6} parent=43 // pred_region
        %s2060 = smul.u32 %s23, 2
        %s2061 = sadd.s32 %s2060, %s24
      $region52: #{bottleneck_forward.6} parent=43 // pred_fallthru
        _
    $region44: #{bottleneck_forward.6} parent=5 // pred_fallthru
      _
    %p2062 = scmp.le.s32.totalorder 2, %s14
    // Predicated region
    $region53: #{bottleneck_forward.6} parent=5 // pred_check
      %p2063 = pneg %p2062
    $region54: #{bottleneck_forward.6} parent=5 // pred_check_branch
      %2065 = sbr.rel (%p2063) target = $region56
    $region55: #{bottleneck_forward.6} parent=5 // pred_region
      %s2066 = ssub.s32 %s14, 2
      // Predicated region
      $region57: #{bottleneck_forward.6} parent=55 // pred_check
        %p2067 = pneg %p228
      $region58: #{bottleneck_forward.6} parent=55 // pred_check_branch
        %2069 = sbr.rel (%p2067) target = $region60
      $region59: #{bottleneck_forward.6} parent=55 // pred_region
        %s2070 = smul.u32 %s25, 2
        %s2071 = sadd.s32 %s2070, %s26
        %s2072 = smul.u32 16, %s2071
        %p2073 = scmp.lt.s32.totalorder %s2072, 63
        %s2074 = scalar_select %p2073, %s2072, 63
        %s2075 = smul.addr %s2074, 4
        %s2076 = scalar_lea.vmem %s6, %s2075
      $region60: #{bottleneck_forward.6} parent=55 // pred_fallthru
        _
      // Predicated region
      $region61: #{bottleneck_forward.6} parent=55 // pred_check
        %p2077 = pneg %p258
      $region62: #{bottleneck_forward.6} parent=55 // pred_check_branch
        %2079 = sbr.rel (%p2077) target = $region64
      $region63: #{bottleneck_forward.6} parent=55 // pred_region
        %s2080 = smul.u32 %s25, 2
        %s2081 = sadd.s32 %s2080, %s26
        %p2082 = scmp.lt.s32.totalorder %s2081, 3
        %s2083 = scalar_select %p2082, %s2081, 3
        %s2084 = scalar_lea.vmem %s7, %s2083
      $region64: #{bottleneck_forward.6} parent=55 // pred_fallthru
        _
    $region56: #{bottleneck_forward.6} parent=5 // pred_fallthru
      _
  $region6: #{bottleneck_forward.6} parent=0 // loop_footer
    %s18 = sadd.s32 1, %s14
  $region7: #{bottleneck_forward.6} parent=0 // loop_footer_branch
    %13 = sbr.rel target = $region3
  $region8: #{bottleneck_forward.6} parent=0 // loop_exit
    _

</llo_original>
